<compile_context>
chip_gen: v5e
topology: v5e:2x2
jax: 0.10.0
libtpu: 0.0.40
codegen_flags: <defaults>
</compile_context>

<pallas_src>
import functools

import jax
import jax.numpy as jnp
from jax.experimental import pallas as pl
from jax.experimental.pallas import tpu as pltpu


def _rbm_cdk_kernel(v_ref, w_ref, wt_ref, bh_ref, bv_ref, uh_ref, uv_ref,
                    v1_ref, *, k):
    """One batch tile of CD-k Gibbs sampling.

    v_ref  : (TB, V) f32     visible input tile
    w_ref  : (H, V)  bf16    weight (torch nn.Linear.weight layout), resident
    wt_ref : (V, H)  bf16    pre-transposed weight, resident
    bh_ref : (1, H)  f32     hidden bias
    bv_ref : (1, V)  f32     visible bias
    uh_ref : (k, TB, H) f32  uniforms for the k hidden draws that matter
    uv_ref : (k, TB, V) f32  uniforms for the k visible draws
    v1_ref : (TB, V) f32     output tile
    """
    tb = v_ref.shape[0]
    h_dim = bh_ref.shape[1]
    v_dim = bv_ref.shape[1]

    # Hoist the bias broadcasts out of the Gibbs loop (JAX does not CSE them).
    bh_b = jnp.broadcast_to(bh_ref[...], (tb, h_dim))
    bv_b = jnp.broadcast_to(bv_ref[...], (tb, v_dim))

    def sample_h_given_v(v_bf16, u):
        # F.linear(v, W, b_h) = v @ W.T + b_h -> use the pre-transposed copy
        # so no per-iteration XLU transpose is emitted.
        logits = jnp.dot(v_bf16, wt_ref[...],
                         preferred_element_type=jnp.float32) + bh_b
        return u < jax.nn.sigmoid(logits)          # bool Bernoulli sample

    def sample_v_given_h(h_bf16, u):
        # F.linear(h, W.T, b_v) = h @ W + b_v
        logits = jnp.dot(h_bf16, w_ref[...],
                         preferred_element_type=jnp.float32) + bv_b
        return u < jax.nn.sigmoid(logits)

    # Binary samples are exact in bf16 -> ~2x MXU rate, f32 accumulation.
    h = sample_h_given_v(v_ref[...].astype(jnp.bfloat16),
                         uh_ref[0]).astype(jnp.bfloat16)
    v1 = None
    for i in range(k):                      # k is a small static Python int
        v1 = sample_v_given_h(h, uv_ref[i])
        if i + 1 < k:
            # The hidden sample of the final iteration never feeds the
            # returned v1 in the reference module -> skip it entirely.
            h = sample_h_given_v(v1.astype(jnp.bfloat16),
                                 uh_ref[i + 1]).astype(jnp.bfloat16)

    v1_ref[...] = v1.astype(v1_ref.dtype)


def rbm_forward(v, weight, bias_h, bias_v, key, *, k=1, tile_b=128):
    """Mirrors RBM.forward: returns (v, v1) after k steps of CD Gibbs sampling.

    v       : (B, V) f32   visible input (values in [0,1], typically binary)
    weight  : (H, V) f32   torch nn.Linear.weight layout
    bias_h  : (H,)   f32   hidden bias
    bias_v  : (V,)   f32   visible bias
    key     : jax PRNG key for the Bernoulli draws
    """
    assert k >= 1, "k must be >= 1 (matches the PyTorch module)"
    B, V = v.shape
    H = weight.shape[0]
    tile_b = min(tile_b, B)
    assert B % tile_b == 0, "batch must be divisible by the batch tile"
    grid = (B // tile_b,)

    # Uniforms for every Bernoulli draw that can influence v1: k hidden draws
    # and k visible draws per sample (the dead final hidden draw is dropped).
    key_h, key_v = jax.random.split(key)
    u_h = jax.random.uniform(key_h, (k, B, H), jnp.float32)
    u_v = jax.random.uniform(key_v, (k, B, V), jnp.float32)

    w_bf = weight.astype(jnp.bfloat16)           # (H, V)
    wt_bf = jnp.transpose(w_bf)                  # (V, H), transposed once
    b_h2 = bias_h.reshape(1, H).astype(jnp.float32)
    b_v2 = bias_v.reshape(1, V).astype(jnp.float32)

    v1 = pl.pallas_call(
        functools.partial(_rbm_cdk_kernel, k=k),
        out_shape=jax.ShapeDtypeStruct((B, V), jnp.float32),
        grid=grid,
        in_specs=[
            pl.BlockSpec((tile_b, V), lambda i: (i, 0)),        # v tile
            pl.BlockSpec((H, V), lambda i: (0, 0)),             # W (resident)
            pl.BlockSpec((V, H), lambda i: (0, 0)),             # W.T (resident)
            pl.BlockSpec((1, H), lambda i: (0, 0)),             # b_h (resident)
            pl.BlockSpec((1, V), lambda i: (0, 0)),             # b_v (resident)
            pl.BlockSpec((k, tile_b, H), lambda i: (0, i, 0)),  # hidden uniforms
            pl.BlockSpec((k, tile_b, V), lambda i: (0, i, 0)),  # visible uniforms
        ],
        out_specs=pl.BlockSpec((tile_b, V), lambda i: (i, 0)),
        compiler_params=pltpu.CompilerParams(
            dimension_semantics=("parallel",)),  # shard batch tiles across TCs
    )(v, w_bf, wt_bf, b_h2, b_v2, u_h, u_v)
    return v, v1


if __name__ == "__main__":
    # Small, lane/sublane-friendly shapes consistent with the module's forward.
    B = 256           # batch (tiled 2 x 128 -> exercises the grid)
    INPUT_SIZE = 256  # visible units  (multiple of 128 lanes)
    HIDDEN_SIZE = 128 # hidden units   (multiple of 128 lanes)
    K = 2
    TILE_B = 128

    key = jax.random.PRNGKey(0)
    k_w, k_bh, k_v, k_rng = jax.random.split(key, 4)

    # Parameter init mimicking torch.nn.Linear defaults:
    # U(-1/sqrt(in), 1/sqrt(in)) for weight and hidden bias; bias_b = zeros.
    bound = 1.0 / jnp.sqrt(jnp.float32(INPUT_SIZE))
    weight = jax.random.uniform(k_w, (HIDDEN_SIZE, INPUT_SIZE),
                                jnp.float32, -bound, bound)
    bias_h = jax.random.uniform(k_bh, (HIDDEN_SIZE,), jnp.float32,
                                -bound, bound)
    bias_v = jnp.zeros((INPUT_SIZE,), jnp.float32)

    # Binary visible input (as an RBM would see).
    v = (jax.random.uniform(k_v, (B, INPUT_SIZE), jnp.float32) < 0.5
         ).astype(jnp.float32)

    v_out, v1_out = rbm_forward(v, weight, bias_h, bias_v, k_rng,
                                k=K, tile_b=TILE_B)
    jax.block_until_ready((v_out, v1_out))

    assert v_out.shape == (B, INPUT_SIZE) and v1_out.shape == (B, INPUT_SIZE)
    assert v1_out.dtype == jnp.float32
    # The forward pass returns the input unchanged as the first element.
    assert bool(jnp.all(v_out == v))
    # Gibbs samples must be binary.
    assert bool(jnp.all((v1_out == 0.0) | (v1_out == 1.0)))

    print("KERNEL_OK")
</pallas_src>

<mosaic_0001>
module attributes {stable_mosaic.version = 11 : i64} {
  func.func @_rbm_cdk_kernel(%arg0: i32, %arg1: memref<128x256xf32, #tpu.memory_space<vmem>>, %arg2: memref<128x256xbf16, #tpu.memory_space<vmem>>, %arg3: memref<256x128xbf16, #tpu.memory_space<vmem>>, %arg4: memref<1x128xf32, #tpu.memory_space<vmem>>, %arg5: memref<1x256xf32, #tpu.memory_space<vmem>>, %arg6: memref<2x128x128xf32, #tpu.memory_space<vmem>>, %arg7: memref<2x128x256xf32, #tpu.memory_space<vmem>>, %arg8: memref<128x256xf32, #tpu.memory_space<vmem>>) attributes {dimension_semantics = [#tpu.dimension_semantics<parallel>], iteration_bounds = array<i64: 2>, scalar_prefetch = 0 : i64, scratch_operands = 0 : i64, tpu.core_type = #tpu.core_type<tc>, window_params = [{transform_indices = @transform_0, window_bounds = array<i64: 128, 256>}, {pipeline_mode = #tpu.pipeline_mode<synchronous>, transform_indices = @transform_1, window_bounds = array<i64: 128, 256>}, {pipeline_mode = #tpu.pipeline_mode<synchronous>, transform_indices = @transform_2, window_bounds = array<i64: 256, 128>}, {pipeline_mode = #tpu.pipeline_mode<synchronous>, transform_indices = @transform_3, window_bounds = array<i64: 1, 128>}, {pipeline_mode = #tpu.pipeline_mode<synchronous>, transform_indices = @transform_4, window_bounds = array<i64: 1, 256>}, {transform_indices = @transform_5, window_bounds = array<i64: 2, 128, 128>}, {transform_indices = @transform_6, window_bounds = array<i64: 2, 128, 256>}, {transform_indices = @transform_7, window_bounds = array<i64: 128, 256>}]} {
    %c0 = arith.constant 0 : index
    %c0_0 = arith.constant 0 : index
    %0 = vector.load %arg4[%c0, %c0_0] : memref<1x128xf32, #tpu.memory_space<vmem>>, vector<1x128xf32>
    %1 = vector.shape_cast %0 : vector<1x128xf32> to vector<1x128xf32>
    %2 = vector.broadcast %1 : vector<1x128xf32> to vector<128x128xf32>
    %c0_1 = arith.constant 0 : index
    %c0_2 = arith.constant 0 : index
    %3 = vector.load %arg5[%c0_1, %c0_2] : memref<1x256xf32, #tpu.memory_space<vmem>>, vector<1x256xf32>
    %4 = vector.shape_cast %3 : vector<1x256xf32> to vector<1x256xf32>
    %5 = vector.broadcast %4 : vector<1x256xf32> to vector<128x256xf32>
    %c0_3 = arith.constant 0 : index
    %c0_4 = arith.constant 0 : index
    %6 = vector.load %arg1[%c0_3, %c0_4] : memref<128x256xf32, #tpu.memory_space<vmem>>, vector<128x256xf32>
    %7 = arith.truncf %6 : vector<128x256xf32> to vector<128x256xbf16>
    %c0_5 = arith.constant 0 : index
    %c0_6 = arith.constant 0 : index
    %c0_7 = arith.constant 0 : index
    %8 = vector.load %arg6[%c0_5, %c0_6, %c0_7] : memref<2x128x128xf32, #tpu.memory_space<vmem>>, vector<1x128x128xf32>
    %9 = vector.shape_cast %8 : vector<1x128x128xf32> to vector<128x128xf32>
    %c0_8 = arith.constant 0 : index
    %c0_9 = arith.constant 0 : index
    %10 = vector.load %arg3[%c0_8, %c0_9] : memref<256x128xbf16, #tpu.memory_space<vmem>>, vector<256x128xbf16>
    %cst = arith.constant dense<0.000000e+00> : vector<128x128xf32>
    %11 = tpu.matmul %7, %10, %cst {dimension_numbers = #tpu.dot_dimension_numbers<[1], [0], [0], [1], [0, 0, 1, 1], [], []>} : vector<128x256xbf16>, vector<256x128xbf16>, vector<128x128xf32> -> vector<128x128xf32>
    %12 = arith.addf %11, %2 : vector<128x128xf32>
    %13 = arith.negf %12 : vector<128x128xf32>
    %14 = math.exp %13 : vector<128x128xf32>
    %cst_10 = arith.constant 1.000000e+00 : f32
    %15 = vector.broadcast %cst_10 : f32 to vector<128x128xf32>
    %16 = arith.addf %15, %14 : vector<128x128xf32>
    %17 = arith.divf %15, %16 : vector<128x128xf32>
    %18 = arith.cmpf olt, %9, %17 : vector<128x128xf32>
    %19 = arith.extui %18 : vector<128x128xi1> to vector<128x128xi32>
    %20 = arith.sitofp %19 : vector<128x128xi32> to vector<128x128xf32>
    %21 = arith.truncf %20 : vector<128x128xf32> to vector<128x128xbf16>
    %c0_11 = arith.constant 0 : index
    %c0_12 = arith.constant 0 : index
    %c0_13 = arith.constant 0 : index
    %22 = vector.load %arg7[%c0_11, %c0_12, %c0_13] : memref<2x128x256xf32, #tpu.memory_space<vmem>>, vector<1x128x256xf32>
    %23 = vector.shape_cast %22 : vector<1x128x256xf32> to vector<128x256xf32>
    %c0_14 = arith.constant 0 : index
    %c0_15 = arith.constant 0 : index
    %24 = vector.load %arg2[%c0_14, %c0_15] : memref<128x256xbf16, #tpu.memory_space<vmem>>, vector<128x256xbf16>
    %cst_16 = arith.constant dense<0.000000e+00> : vector<128x256xf32>
    %25 = tpu.matmul %21, %24, %cst_16 {dimension_numbers = #tpu.dot_dimension_numbers<[1], [0], [0], [1], [0, 0, 1, 1], [], []>} : vector<128x128xbf16>, vector<128x256xbf16>, vector<128x256xf32> -> vector<128x256xf32>
    %26 = arith.addf %25, %5 : vector<128x256xf32>
    %27 = arith.negf %26 : vector<128x256xf32>
    %28 = math.exp %27 : vector<128x256xf32>
    %cst_17 = arith.constant 1.000000e+00 : f32
    %29 = vector.broadcast %cst_17 : f32 to vector<128x256xf32>
    %30 = arith.addf %29, %28 : vector<128x256xf32>
    %31 = arith.divf %29, %30 : vector<128x256xf32>
    %32 = arith.cmpf olt, %23, %31 : vector<128x256xf32>
    %33 = arith.extui %32 : vector<128x256xi1> to vector<128x256xi32>
    %34 = arith.sitofp %33 : vector<128x256xi32> to vector<128x256xf32>
    %35 = arith.truncf %34 : vector<128x256xf32> to vector<128x256xbf16>
    %c1 = arith.constant 1 : index
    %c0_18 = arith.constant 0 : index
    %c0_19 = arith.constant 0 : index
    %36 = vector.load %arg6[%c1, %c0_18, %c0_19] : memref<2x128x128xf32, #tpu.memory_space<vmem>>, vector<1x128x128xf32>
    %37 = vector.shape_cast %36 : vector<1x128x128xf32> to vector<128x128xf32>
    %c0_20 = arith.constant 0 : index
    %c0_21 = arith.constant 0 : index
    %38 = vector.load %arg3[%c0_20, %c0_21] : memref<256x128xbf16, #tpu.memory_space<vmem>>, vector<256x128xbf16>
    %cst_22 = arith.constant dense<0.000000e+00> : vector<128x128xf32>
    %39 = tpu.matmul %35, %38, %cst_22 {dimension_numbers = #tpu.dot_dimension_numbers<[1], [0], [0], [1], [0, 0, 1, 1], [], []>} : vector<128x256xbf16>, vector<256x128xbf16>, vector<128x128xf32> -> vector<128x128xf32>
    %40 = arith.addf %39, %2 : vector<128x128xf32>
    %41 = arith.negf %40 : vector<128x128xf32>
    %42 = math.exp %41 : vector<128x128xf32>
    %cst_23 = arith.constant 1.000000e+00 : f32
    %43 = vector.broadcast %cst_23 : f32 to vector<128x128xf32>
    %44 = arith.addf %43, %42 : vector<128x128xf32>
    %45 = arith.divf %43, %44 : vector<128x128xf32>
    %46 = arith.cmpf olt, %37, %45 : vector<128x128xf32>
    %47 = arith.extui %46 : vector<128x128xi1> to vector<128x128xi32>
    %48 = arith.sitofp %47 : vector<128x128xi32> to vector<128x128xf32>
    %49 = arith.truncf %48 : vector<128x128xf32> to vector<128x128xbf16>
    %c1_24 = arith.constant 1 : index
    %c0_25 = arith.constant 0 : index
    %c0_26 = arith.constant 0 : index
    %50 = vector.load %arg7[%c1_24, %c0_25, %c0_26] : memref<2x128x256xf32, #tpu.memory_space<vmem>>, vector<1x128x256xf32>
    %51 = vector.shape_cast %50 : vector<1x128x256xf32> to vector<128x256xf32>
    %c0_27 = arith.constant 0 : index
    %c0_28 = arith.constant 0 : index
    %52 = vector.load %arg2[%c0_27, %c0_28] : memref<128x256xbf16, #tpu.memory_space<vmem>>, vector<128x256xbf16>
    %cst_29 = arith.constant dense<0.000000e+00> : vector<128x256xf32>
    %53 = tpu.matmul %49, %52, %cst_29 {dimension_numbers = #tpu.dot_dimension_numbers<[1], [0], [0], [1], [0, 0, 1, 1], [], []>} : vector<128x128xbf16>, vector<128x256xbf16>, vector<128x256xf32> -> vector<128x256xf32>
    %54 = arith.addf %53, %5 : vector<128x256xf32>
    %55 = arith.negf %54 : vector<128x256xf32>
    %56 = math.exp %55 : vector<128x256xf32>
    %cst_30 = arith.constant 1.000000e+00 : f32
    %57 = vector.broadcast %cst_30 : f32 to vector<128x256xf32>
    %58 = arith.addf %57, %56 : vector<128x256xf32>
    %59 = arith.divf %57, %58 : vector<128x256xf32>
    %60 = arith.cmpf olt, %51, %59 : vector<128x256xf32>
    %61 = arith.extui %60 : vector<128x256xi1> to vector<128x256xi32>
    %62 = arith.sitofp %61 : vector<128x256xi32> to vector<128x256xf32>
    %c0_31 = arith.constant 0 : index
    %c0_32 = arith.constant 0 : index
    %63 = vector.load %arg8[%c0_31, %c0_32] : memref<128x256xf32, #tpu.memory_space<vmem>>, vector<128x256xf32>
    tpu.vector_store %arg8[%c0_31, %c0_32], %62 {strides = array<i32>} : memref<128x256xf32, #tpu.memory_space<vmem>>, vector<128x256xf32>,
    return
  }
  func.func @transform_0(%arg0: i32) -> (i32, i32) {
    %c0_i32 = arith.constant 0 : i32
    %c0_i32_0 = arith.constant 0 : i32
    return %arg0, %c0_i32 : i32, i32
  }
  func.func @transform_1(%arg0: i32) -> (i32, i32) {
    %c0_i32 = arith.constant 0 : i32
    %c0_i32_0 = arith.constant 0 : i32
    %c0_i32_1 = arith.constant 0 : i32
    return %c0_i32, %c0_i32_0 : i32, i32
  }
  func.func @transform_2(%arg0: i32) -> (i32, i32) {
    %c0_i32 = arith.constant 0 : i32
    %c0_i32_0 = arith.constant 0 : i32
    %c0_i32_1 = arith.constant 0 : i32
    return %c0_i32, %c0_i32_0 : i32, i32
  }
  func.func @transform_3(%arg0: i32) -> (i32, i32) {
    %c0_i32 = arith.constant 0 : i32
    %c0_i32_0 = arith.constant 0 : i32
    %c0_i32_1 = arith.constant 0 : i32
    return %c0_i32, %c0_i32_0 : i32, i32
  }
  func.func @transform_4(%arg0: i32) -> (i32, i32) {
    %c0_i32 = arith.constant 0 : i32
    %c0_i32_0 = arith.constant 0 : i32
    %c0_i32_1 = arith.constant 0 : i32
    return %c0_i32, %c0_i32_0 : i32, i32
  }
  func.func @transform_5(%arg0: i32) -> (i32, i32, i32) {
    %c0_i32 = arith.constant 0 : i32
    %c0_i32_0 = arith.constant 0 : i32
    %c0_i32_1 = arith.constant 0 : i32
    return %c0_i32, %arg0, %c0_i32_0 : i32, i32, i32
  }
  func.func @transform_6(%arg0: i32) -> (i32, i32, i32) {
    %c0_i32 = arith.constant 0 : i32
    %c0_i32_0 = arith.constant 0 : i32
    %c0_i32_1 = arith.constant 0 : i32
    return %c0_i32, %arg0, %c0_i32_0 : i32, i32, i32
  }
  func.func @transform_7(%arg0: i32) -> (i32, i32) {
    %c0_i32 = arith.constant 0 : i32
    %c0_i32_0 = arith.constant 0 : i32
    return %arg0, %c0_i32 : i32, i32
  }
}

</mosaic_0001>

<llo_original>
// kernel: tpu_custom_call.1
$region0: #{tpu_custom_call.1}
  #allocation0 [shape = 'u32[]', space=smem, size = 0x4, offset = 0x4, fixed_abs, tag = 'smem constant byte address 0x4 - core index']
  #allocation1 [shape = 'u32[72,128]{1,0:T(1,128)}', space=vmem, size = 0x9000, scoped, tag = 'internal scratch']
  #allocation12 [shape = 's32[]', space=sflag, size = 0x4, offset = 0, fixed_abs, tag = 'sflag constant byte address 0x0 - dummy sync flag']
  #allocation14 [shape = 's32[]', space=sflag, size = 0x4, offset = 0, fixed_abs, tag = 'sflag constant byte address 0x0 - dummy sync flag']
  %s0 = inlined_call_operand.hbm [shape: f32[256,256], index: 0, kind: input, shape index: {}]
  %s1 = inlined_call_operand.hbm [shape: bf16[128,256], index: 1, kind: input, shape index: {}]
  %s2 = inlined_call_operand.hbm [shape: bf16[256,128], index: 2, kind: input, shape index: {}]
  %s3 = inlined_call_operand.vmem [shape: f32[1,128], index: 3, kind: input, shape index: {}]
  %s4 = inlined_call_operand.vmem [shape: f32[1,256], index: 4, kind: input, shape index: {}]
  %s5 = inlined_call_operand.hbm [shape: f32[2,256,128], index: 5, kind: input, shape index: {}]
  %s6 = inlined_call_operand.hbm [shape: f32[2,256,256], index: 6, kind: input, shape index: {}]
  %s7 = inlined_call_operand.hbm [shape: f32[256,256], index: 7, kind: output, shape index: {}]
  %s8 = sld [smem:[#allocation0]]
  $region81: #{tpu_custom_call.1} parent=0
    _
  %s10 = ssub.s32 1, %s8
  %s11 = scalar_select 0, %s10, %s8
  $region1: #{tpu_custom_call.1} parent=0
    #allocation2 [shape = 'u8[262144]{0}', space=vmem, size = 0x40000, scoped, tag = 'input window, operand 0']
    #allocation3 [shape = 's32[2]{0}', space=sflag, size = 0x8, scoped, tag = 'scoped memory for tpu_custom_call.1']
    #allocation4 [shape = 's32[2]{0}', space=sflag, size = 0x8, scoped, tag = 'scoped memory for tpu_custom_call.1']
    #allocation5 [shape = 'u8[65536]{0}', space=vmem, size = 0x10000, scoped, tag = 'input window, operand 1, single buffered']
    #allocation6 [shape = 's32[1]{0}', space=sflag, size = 0x4, scoped, tag = 'scoped memory for tpu_custom_call.1']
    #allocation7 [shape = 'u8[65536]{0}', space=vmem, size = 0x10000, scoped, tag = 'input window, operand 2, single buffered']
    #allocation8 [shape = 'u8[262144]{0}', space=vmem, size = 0x40000, scoped, tag = 'input window, operand 5']
    #allocation9 [shape = 's32[2]{0}', space=sflag, size = 0x8, scoped, tag = 'scoped memory for tpu_custom_call.1']
    #allocation10 [shape = 'u8[524288]{0}', space=vmem, size = 0x80000, scoped, tag = 'input window, operand 6']
    #allocation11 [shape = 'u8[262144]{0}', space=vmem, size = 0x40000, scoped, tag = 'output window, operand 0']
    %12 = vsyncpa [#allocation3], 0
    %s13 = scalar_lea.sflag [#allocation3], 1
    %14 = vsyncpa %s13, 0
    %15 = vsyncpa [#allocation6], 0
    %16 = vsyncpa [#allocation9], 0
    %s17 = scalar_lea.sflag [#allocation9], 1
    %18 = vsyncpa %s17, 0
    %19 = vsyncpa [#allocation4], 0
    %s20 = scalar_lea.sflag [#allocation4], 1
    %21 = vsyncpa %s20, 0
    loop: start=0, step=1, limit=4
    $region2: #{tpu_custom_call.1} parent=1 // loop_pre_header
      _
    $region3: #{tpu_custom_call.1} parent=1 // loop_header
      %s23 = sphi 0, %s27
      %p24 = scmp.ge.s32.totalorder %s23, 4
      %s33 = sphi 0, %s35
      %s36 = sphi 0, %s33
      %s37 = sphi 0, %s36
      %s53 = sphi 0, %s37
      %s57 = sphi 0, %s57
      %s59 = sphi 0, %s57
      %s60 = sphi 0, %s59
      %s74 = sphi 0, %s60
      %s78 = sphi 0, %s78
      %s80 = sphi 0, %s78
      %s81 = sphi 0, %s80
      %s95 = sphi 0, %s81
      %s99 = sphi 0, %s99
      %s101 = sphi 0, %s99
      %s102 = sphi 0, %s101
      %s116 = sphi 0, %s102
      %s120 = sphi 0, %s120
      %s122 = sphi 0, %s120
      %s123 = sphi 0, %s122
      %s137 = sphi 0, %s123
      %s143 = sphi 0, %s145
      %s146 = sphi 0, %s143
      %s147 = sphi 0, %s146
      %s163 = sphi 0, %s147
      %s169 = sphi 0, %s171
      %s172 = sphi 0, %s169
      %s173 = sphi 0, %s172
      %s189 = sphi 0, %s173
      %s195 = sphi 0, %s197
      %s198 = sphi 0, %s195
      %s199 = sphi 0, %s198
      %s215 = sphi 0, %s199
    $region4: #{tpu_custom_call.1} parent=1 // loop_header_branch
      %26 = sbr.rel (%p24) target = $region8
    $region5: #{tpu_custom_call.1} parent=1 // loop_body
      %s28 = ssub.s32 %s23, 1
      %s29 = ssub.s32 %s23, 2
      %s30 = sadd.s32 %s23, 1
      %s31 = ssub.s32 %s23, %s30
      %p32 = scmp.eq.s32.totalorder %s31, 0
      %s34 = sadd.s32 %s33, 1
      %s35 = scalar_select %p32, %s33, %s34
      %p38 = pneg %p32
      %p39 = scmp.eq.s32.totalorder %s23, 1
      %p40 = por %p38, %p39
      %p41 = scmp.ne.s32.totalorder %s33, %s36
      %p42 = scmp.eq.s32.totalorder %s23, 0
      %p43 = por %p41, %p42
      %p44 = scmp.ne.s32.totalorder %s33, %s36
      %p45 = scmp.eq.s32.totalorder %s28, 1
      %p46 = por %p44, %p45
      %p47 = scmp.ne.s32.totalorder %s36, %s37
      %p48 = scmp.eq.s32.totalorder %s28, 0
      %p49 = por %p47, %p48
      %p50 = scmp.ne.s32.totalorder %s36, %s37
      %p51 = scmp.eq.s32.totalorder %s29, 1
      %p52 = por %p50, %p51
      %p54 = scmp.ne.s32.totalorder %s37, %s53
      %p55 = scmp.eq.s32.totalorder %s29, 0
      %p56 = por %p54, %p55
      %s58 = sadd.s32 %s57, 1
      %p61 = scmp.eq.s32.totalorder %s23, 1
      %p62 = scmp.ne.s32.totalorder %s57, %s59
      %p63 = scmp.eq.s32.totalorder %s23, 0
      %p64 = por %p62, %p63
      %p65 = scmp.ne.s32.totalorder %s57, %s59
      %p66 = scmp.eq.s32.totalorder %s28, 1
      %p67 = por %p65, %p66
      %p68 = scmp.ne.s32.totalorder %s59, %s60
      %p69 = scmp.eq.s32.totalorder %s28, 0
      %p70 = por %p68, %p69
      %p71 = scmp.ne.s32.totalorder %s59, %s60
      %p72 = scmp.eq.s32.totalorder %s29, 1
      %p73 = por %p71, %p72
      %p75 = scmp.ne.s32.totalorder %s60, %s74
      %p76 = scmp.eq.s32.totalorder %s29, 0
      %p77 = por %p75, %p76
      %s79 = sadd.s32 %s78, 1
      %p82 = scmp.eq.s32.totalorder %s23, 1
      %p83 = scmp.ne.s32.totalorder %s78, %s80
      %p84 = scmp.eq.s32.totalorder %s23, 0
      %p85 = por %p83, %p84
      %p86 = scmp.ne.s32.totalorder %s78, %s80
      %p87 = scmp.eq.s32.totalorder %s28, 1
      %p88 = por %p86, %p87
      %p89 = scmp.ne.s32.totalorder %s80, %s81
      %p90 = scmp.eq.s32.totalorder %s28, 0
      %p91 = por %p89, %p90
      %p92 = scmp.ne.s32.totalorder %s80, %s81
      %p93 = scmp.eq.s32.totalorder %s29, 1
      %p94 = por %p92, %p93
      %p96 = scmp.ne.s32.totalorder %s81, %s95
      %p97 = scmp.eq.s32.totalorder %s29, 0
      %p98 = por %p96, %p97
      %s100 = sadd.s32 %s99, 1
      %p103 = scmp.eq.s32.totalorder %s23, 1
      %p104 = scmp.ne.s32.totalorder %s99, %s101
      %p105 = scmp.eq.s32.totalorder %s23, 0
      %p106 = por %p104, %p105
      %p107 = scmp.ne.s32.totalorder %s99, %s101
      %p108 = scmp.eq.s32.totalorder %s28, 1
      %p109 = por %p107, %p108
      %p110 = scmp.ne.s32.totalorder %s101, %s102
      %p111 = scmp.eq.s32.totalorder %s28, 0
      %p112 = por %p110, %p111
      %p113 = scmp.ne.s32.totalorder %s101, %s102
      %p114 = scmp.eq.s32.totalorder %s29, 1
      %p115 = por %p113, %p114
      %p117 = scmp.ne.s32.totalorder %s102, %s116
      %p118 = scmp.eq.s32.totalorder %s29, 0
      %p119 = por %p117, %p118
      %s121 = sadd.s32 %s120, 1
      %p124 = scmp.eq.s32.totalorder %s23, 1
      %p125 = scmp.ne.s32.totalorder %s120, %s122
      %p126 = scmp.eq.s32.totalorder %s23, 0
      %p127 = por %p125, %p126
      %p128 = scmp.ne.s32.totalorder %s120, %s122
      %p129 = scmp.eq.s32.totalorder %s28, 1
      %p130 = por %p128, %p129
      %p131 = scmp.ne.s32.totalorder %s122, %s123
      %p132 = scmp.eq.s32.totalorder %s28, 0
      %p133 = por %p131, %p132
      %p134 = scmp.ne.s32.totalorder %s122, %s123
      %p135 = scmp.eq.s32.totalorder %s29, 1
      %p136 = por %p134, %p135
      %p138 = scmp.ne.s32.totalorder %s123, %s137
      %p139 = scmp.eq.s32.totalorder %s29, 0
      %p140 = por %p138, %p139
      %s141 = ssub.s32 %s23, %s30
      %p142 = scmp.eq.s32.totalorder %s141, 0
      %s144 = sadd.s32 %s143, 1
      %s145 = scalar_select %p142, %s143, %s144
      %p148 = pneg %p142
      %p149 = scmp.eq.s32.totalorder %s23, 1
      %p150 = por %p148, %p149
      %p151 = scmp.ne.s32.totalorder %s143, %s146
      %p152 = scmp.eq.s32.totalorder %s23, 0
      %p153 = por %p151, %p152
      %p154 = scmp.ne.s32.totalorder %s143, %s146
      %p155 = scmp.eq.s32.totalorder %s28, 1
      %p156 = por %p154, %p155
      %p157 = scmp.ne.s32.totalorder %s146, %s147
      %p158 = scmp.eq.s32.totalorder %s28, 0
      %p159 = por %p157, %p158
      %p160 = scmp.ne.s32.totalorder %s146, %s147
      %p161 = scmp.eq.s32.totalorder %s29, 1
      %p162 = por %p160, %p161
      %p164 = scmp.ne.s32.totalorder %s147, %s163
      %p165 = scmp.eq.s32.totalorder %s29, 0
      %p166 = por %p164, %p165
      %s167 = ssub.s32 %s23, %s30
      %p168 = scmp.eq.s32.totalorder %s167, 0
      %s170 = sadd.s32 %s169, 1
      %s171 = scalar_select %p168, %s169, %s170
      %p174 = pneg %p168
      %p175 = scmp.eq.s32.totalorder %s23, 1
      %p176 = por %p174, %p175
      %p177 = scmp.ne.s32.totalorder %s169, %s172
      %p178 = scmp.eq.s32.totalorder %s23, 0
      %p179 = por %p177, %p178
      %p180 = scmp.ne.s32.totalorder %s169, %s172
      %p181 = scmp.eq.s32.totalorder %s28, 1
      %p182 = por %p180, %p181
      %p183 = scmp.ne.s32.totalorder %s172, %s173
      %p184 = scmp.eq.s32.totalorder %s28, 0
      %p185 = por %p183, %p184
      %p186 = scmp.ne.s32.totalorder %s172, %s173
      %p187 = scmp.eq.s32.totalorder %s29, 1
      %p188 = por %p186, %p187
      %p190 = scmp.ne.s32.totalorder %s173, %s189
      %p191 = scmp.eq.s32.totalorder %s29, 0
      %p192 = por %p190, %p191
      %s193 = ssub.s32 %s23, %s30
      %p194 = scmp.eq.s32.totalorder %s193, 0
      %s196 = sadd.s32 %s195, 1
      %s197 = scalar_select %p194, %s195, %s196
      %p200 = pneg %p194
      %p201 = scmp.eq.s32.totalorder %s23, 1
      %p202 = por %p200, %p201
      %p203 = scmp.ne.s32.totalorder %s195, %s198
      %p204 = scmp.eq.s32.totalorder %s23, 0
      %p205 = por %p203, %p204
      %p206 = scmp.ne.s32.totalorder %s195, %s198
      %p207 = scmp.eq.s32.totalorder %s28, 1
      %p208 = por %p206, %p207
      %p209 = scmp.ne.s32.totalorder %s198, %s199
      %p210 = scmp.eq.s32.totalorder %s28, 0
      %p211 = por %p209, %p210
      %p212 = scmp.ne.s32.totalorder %s198, %s199
      %p213 = scmp.eq.s32.totalorder %s29, 1
      %p214 = por %p212, %p213
      %p216 = scmp.ne.s32.totalorder %s199, %s215
      %p217 = scmp.eq.s32.totalorder %s29, 0
      %p218 = por %p216, %p217
      %p219 = scmp.le.s32.totalorder 1, %s23
      %p220 = scmp.lt.s32.totalorder %s23, 3
      %p221 = pnand %p219, %p220
      %p222 = pneg %p221
      // Predicated region
      $region9: #{tpu_custom_call.1} parent=5 // pred_check
        _
      $region10: #{tpu_custom_call.1} parent=5 // pred_check_branch
        %224 = sbr.rel (%p221) target = $region12
      $region11: #{tpu_custom_call.1} parent=5 // pred_region
        %s225 = ssub.s32 %s23, 1
        // Predicated region
        $region13: #{tpu_custom_call.1} parent=11 // pred_check
          %p226 = pneg %p70
        $region14: #{tpu_custom_call.1} parent=11 // pred_check_branch
          %228 = sbr.rel (%p226) target = $region16
        $region15: #{tpu_custom_call.1} parent=11 // pred_region
          %230 = vsyncadd [#allocation6], 0
          %s231 = sshll.u32 %s1, 4
          %s232 = int_to_ptr.hbm [resolvable:$true] %s231
          %s233 = sshll.u32 [#allocation5], 4
          %s234 = int_to_ptr.vmem [resolvable:$true] %s233
          %239 = dma.hbm_to_vmem [thread:$0]  %s232, 2048, %s234, [#allocation6], 128, 128, 8
        $region16: #{tpu_custom_call.1} parent=11 // pred_fallthru
          _
        // Predicated region
        $region17: #{tpu_custom_call.1} parent=11 // pred_check
          %p240 = pneg %p91
        $region18: #{tpu_custom_call.1} parent=11 // pred_check_branch
          %242 = sbr.rel (%p240) target = $region20
        $region19: #{tpu_custom_call.1} parent=11 // pred_region
          %244 = vsyncadd [#allocation6], 0
          %s245 = sshll.u32 %s2, 4
          %s246 = int_to_ptr.hbm [resolvable:$true] %s245
          %s247 = sshll.u32 [#allocation7], 4
          %s248 = int_to_ptr.vmem [resolvable:$true] %s247
          %253 = dma.hbm_to_vmem [thread:$0]  %s246, 2048, %s248, [#allocation6], 64, 64, 4
        $region20: #{tpu_custom_call.1} parent=11 // pred_fallthru
          _
        // Predicated region
        $region21: #{tpu_custom_call.1} parent=11 // pred_check
          %p254 = pneg %p112
        $region22: #{tpu_custom_call.1} parent=11 // pred_check_branch
          %256 = sbr.rel (%p254) target = $region24
        $region23: #{tpu_custom_call.1} parent=11 // pred_region
          _
        $region24: #{tpu_custom_call.1} parent=11 // pred_fallthru
          _
        // Predicated region
        $region25: #{tpu_custom_call.1} parent=11 // pred_check
          %p257 = pneg %p133
        $region26: #{tpu_custom_call.1} parent=11 // pred_check_branch
          %259 = sbr.rel (%p257) target = $region28
        $region27: #{tpu_custom_call.1} parent=11 // pred_region
          _
        $region28: #{tpu_custom_call.1} parent=11 // pred_fallthru
          _
      $region12: #{tpu_custom_call.1} parent=5 // pred_fallthru
        _
      %p260 = scmp.lt.s32.totalorder %s23, 2
      // Predicated region
      $region29: #{tpu_custom_call.1} parent=5 // pred_check
        %p261 = pneg %p260
      $region30: #{tpu_custom_call.1} parent=5 // pred_check_branch
        %263 = sbr.rel (%p261) target = $region32
      $region31: #{tpu_custom_call.1} parent=5 // pred_region
        // Predicated region
        $region33: #{tpu_custom_call.1} parent=31 // pred_check
          %p264 = pneg %p43
        $region34: #{tpu_custom_call.1} parent=31 // pred_check_branch
          %266 = sbr.rel (%p264) target = $region36
        $region35: #{tpu_custom_call.1} parent=31 // pred_region
          %s267 = sand.u32 %s33, 1
          %s268 = scalar_lea.sflag [#allocation3], %s267
          %s269 = sand.u32 %s33, 1
          %s270 = smul.addr %s269, 256
          %s271 = scalar_lea.vmem [#allocation2], %s270
          %s272 = smul.u32 16, %s23
          %274 = vsyncadd %s268, 0
          %s275 = smul.addr %s272, 2
          %s276 = smul.addr %s275, 8
          %s277 = scalar_lea.hbm %s0, %s276
          %s278 = sshll.u32 %s277, 4
          %s279 = int_to_ptr.hbm [resolvable:$true] %s278
          %s280 = sshll.u32 %s271, 4
          %s281 = int_to_ptr.vmem [resolvable:$true] %s280
          %286 = dma.hbm_to_vmem [thread:$0]  %s279, 4096, %s281, %s268, 256, 256, 16
        $region36: #{tpu_custom_call.1} parent=31 // pred_fallthru
          _
        // Predicated region
        $region37: #{tpu_custom_call.1} parent=31 // pred_check
          %p287 = pneg %p153
        $region38: #{tpu_custom_call.1} parent=31 // pred_check_branch
          %289 = sbr.rel (%p287) target = $region40
        $region39: #{tpu_custom_call.1} parent=31 // pred_region
          #allocation13 [shape = 'u32[6]{0}', space=smem, size = 0x18, scoped, tag = 'DMA stride descriptor']
          %s290 = sand.u32 %s23, 1
          %s291 = scalar_lea.sflag [#allocation9], %s290
          %s292 = sand.u32 %s143, 1
          %s293 = smul.addr %s292, 256
          %s294 = scalar_lea.vmem [#allocation8], %s293
          %s295 = smul.u32 16, %s23
          %297 = vsyncadd %s291, 0
          %s298 = smul.addr %s295, 8
          %s299 = scalar_lea.hbm %s5, %s298
          %s301 = sshll.u32 1, 14
          %s302 = sxor.u32 4294967295, %s301
          %s304 = sld [smem:[#allocation0]]
          %s305 = sadd.s32 2, %s304
          %s307 = sshll.u32 7, 26
          %s308 = sxor.u32 4294967295, %s307
          %s309 = sand.u32 0, %s308
          %s310 = sshll.u32 %s305, 26
          %s311 = sor.u32 %s309, %s310
          %s312 = sshll.u32 %s299, 4
          %s313 = int_to_ptr.hbm [resolvable:$true] %s312
          %s314 = sshll.u32 %s294, 4
          %s315 = int_to_ptr.vmem [resolvable:$true] %s314
          %321 = sst [smem:[#allocation13]] 4096
          %s322 = scalar_lea.smem [#allocation13], 1
          %323 = sst [smem:[%s322]] 2048
          %s324 = scalar_lea.smem [#allocation13], 2
          %325 = sst [smem:[%s324]] 16
          %s326 = scalar_lea.smem [#allocation13], 3
          %327 = sst [smem:[%s326]] 128
          %s328 = scalar_lea.smem [#allocation13], 4
          %329 = sst [smem:[%s328]] 128
          %s330 = scalar_lea.smem [#allocation13], 5
          %331 = sst [smem:[%s330]] 8
          %333 = dma.general %s313, 4096, %s315, %s291, [#allocation12], [#allocation13], %s311, 0
        $region40: #{tpu_custom_call.1} parent=31 // pred_fallthru
          _
        // Predicated region
        $region41: #{tpu_custom_call.1} parent=31 // pred_check
          %p334 = pneg %p179
        $region42: #{tpu_custom_call.1} parent=31 // pred_check_branch
          %336 = sbr.rel (%p334) target = $region44
        $region43: #{tpu_custom_call.1} parent=31 // pred_region
          #allocation15 [shape = 'u32[6]{0}', space=smem, size = 0x18, scoped, tag = 'DMA stride descriptor']
          %s337 = sand.u32 %s23, 1
          %s338 = scalar_lea.sflag [#allocation9], %s337
          %s339 = sand.u32 %s169, 1
          %s340 = smul.addr %s339, 512
          %s341 = scalar_lea.vmem [#allocation10], %s340
          %s342 = smul.u32 16, %s23
          %344 = vsyncadd %s338, 0
          %s345 = smul.addr %s342, 2
          %s346 = smul.addr %s345, 8
          %s347 = scalar_lea.hbm %s6, %s346
          %s349 = sshll.u32 1, 14
          %s350 = sxor.u32 4294967295, %s349
          %s352 = sld [smem:[#allocation0]]
          %s353 = sadd.s32 2, %s352
          %s355 = sshll.u32 7, 26
          %s356 = sxor.u32 4294967295, %s355
          %s357 = sand.u32 0, %s356
          %s358 = sshll.u32 %s353, 26
          %s359 = sor.u32 %s357, %s358
          %s360 = sshll.u32 %s347, 4
          %s361 = int_to_ptr.hbm [resolvable:$true] %s360
          %s362 = sshll.u32 %s341, 4
          %s363 = int_to_ptr.vmem [resolvable:$true] %s362
          %369 = sst [smem:[#allocation15]] 8192
          %s370 = scalar_lea.smem [#allocation15], 1
          %371 = sst [smem:[%s370]] 4096
          %s372 = scalar_lea.smem [#allocation15], 2
          %373 = sst [smem:[%s372]] 16
          %s374 = scalar_lea.smem [#allocation15], 3
          %375 = sst [smem:[%s374]] 256
          %s376 = scalar_lea.smem [#allocation15], 4
          %377 = sst [smem:[%s376]] 256
          %s378 = scalar_lea.smem [#allocation15], 5
          %379 = sst [smem:[%s378]] 16
          %381 = dma.general %s361, 8192, %s363, %s338, [#allocation14], [#allocation15], %s359, 0
        $region44: #{tpu_custom_call.1} parent=31 // pred_fallthru
          _
      $region32: #{tpu_custom_call.1} parent=5 // pred_fallthru
        _
      %p382 = scmp.le.s32.totalorder 1, %s23
      %p383 = scmp.lt.s32.totalorder %s23, 3
      %p384 = pnand %p382, %p383
      %p385 = pneg %p384
      // Predicated region
      $region45: #{tpu_custom_call.1} parent=5 // pred_check
        _
      $region46: #{tpu_custom_call.1} parent=5 // pred_check_branch
        %387 = sbr.rel (%p384) target = $region48
      $region47: #{tpu_custom_call.1} parent=5 // pred_region
        %s388 = ssub.s32 %s23, 1
        %s389 = sand.u32 %s36, 1
        %s390 = scalar_lea.sflag [#allocation3], %s389
        %s391 = sand.u32 %s36, 1
        %s392 = smul.addr %s391, 256
        %s393 = scalar_lea.vmem [#allocation2], %s392
        // Predicated region
        $region49: #{tpu_custom_call.1} parent=47 // pred_check
          %p394 = pneg %p49
        $region50: #{tpu_custom_call.1} parent=47 // pred_check_branch
          %396 = sbr.rel (%p394) target = $region52
        $region51: #{tpu_custom_call.1} parent=47 // pred_region
          %398 = dma.done %s390, 4096
        $region52: #{tpu_custom_call.1} parent=47 // pred_fallthru
          _
        // Predicated region
        $region53: #{tpu_custom_call.1} parent=47 // pred_check
          %p399 = pneg %p70
        $region54: #{tpu_custom_call.1} parent=47 // pred_check_branch
          %401 = sbr.rel (%p399) target = $region56
        $region55: #{tpu_custom_call.1} parent=47 // pred_region
          %403 = dma.done [#allocation6], 2048
        $region56: #{tpu_custom_call.1} parent=47 // pred_fallthru
          _
        // Predicated region
        $region57: #{tpu_custom_call.1} parent=47 // pred_check
          %p404 = pneg %p91
        $region58: #{tpu_custom_call.1} parent=47 // pred_check_branch
          %406 = sbr.rel (%p404) target = $region60
        $region59: #{tpu_custom_call.1} parent=47 // pred_region
          %408 = dma.done [#allocation6], 2048
        $region60: #{tpu_custom_call.1} parent=47 // pred_fallthru
          _
        %s409 = sand.u32 %s28, 1
        %s410 = scalar_lea.sflag [#allocation9], %s409
        %s411 = sand.u32 %s146, 1
        %s412 = smul.addr %s411, 256
        %s413 = scalar_lea.vmem [#allocation8], %s412
        // Predicated region
        $region61: #{tpu_custom_call.1} parent=47 // pred_check
          %p414 = pneg %p159
        $region62: #{tpu_custom_call.1} parent=47 // pred_check_branch
          %416 = sbr.rel (%p414) target = $region64
        $region63: #{tpu_custom_call.1} parent=47 // pred_region
          %418 = dma.done %s410, 4096
        $region64: #{tpu_custom_call.1} parent=47 // pred_fallthru
          _
        %s419 = sand.u32 %s28, 1
        %s420 = scalar_lea.sflag [#allocation9], %s419
        %s421 = sand.u32 %s172, 1
        %s422 = smul.addr %s421, 512
        %s423 = scalar_lea.vmem [#allocation10], %s422
        // Predicated region
        $region65: #{tpu_custom_call.1} parent=47 // pred_check
          %p424 = pneg %p185
        $region66: #{tpu_custom_call.1} parent=47 // pred_check_branch
          %426 = sbr.rel (%p424) target = $region68
        $region67: #{tpu_custom_call.1} parent=47 // pred_region
          %428 = dma.done %s420, 8192
        $region68: #{tpu_custom_call.1} parent=47 // pred_fallthru
          _
        %s429 = sand.u32 %s36, 1
        %s430 = scalar_lea.sflag [#allocation3], %s429
        %s431 = sand.u32 %s36, 1
        %s432 = smul.addr %s431, 256
        %s433 = scalar_lea.vmem [#allocation2], %s432
        %p434 = pneg %p49
        %p435 = pneg %p46
        %p436 = pneg %p70
        %p437 = pneg %p67
        %p438 = pneg %p91
        %p439 = pneg %p88
        %p440 = pneg %p112
        %p441 = pneg %p109
        %p442 = pneg %p133
        %p443 = pneg %p130
        %s444 = sand.u32 %s28, 1
        %s445 = scalar_lea.sflag [#allocation9], %s444
        %s446 = sand.u32 %s146, 1
        %s447 = smul.addr %s446, 256
        %s448 = scalar_lea.vmem [#allocation8], %s447
        %p449 = pneg %p159
        %p450 = pneg %p156
        %s451 = sand.u32 %s28, 1
        %s452 = scalar_lea.sflag [#allocation9], %s451
        %s453 = sand.u32 %s172, 1
        %s454 = smul.addr %s453, 512
        %s455 = scalar_lea.vmem [#allocation10], %s454
        %p456 = pneg %p185
        %p457 = pneg %p182
        %p458 = pneg %p211
        %p459 = pneg %p208
        %s460 = sand.u32 %s198, 1
        %s461 = scalar_lea.sflag [#allocation4], %s460
        %s462 = sand.u32 %s198, 1
        %s463 = smul.addr %s462, 256
        %s464 = scalar_lea.vmem [#allocation11], %s463
        %s465 = smul.u32 16, %s28
        %s466 = smul.u32 16, %s28
        %s467 = smul.u32 16, %s28
        %s468 = smul.u32 16, %s28
        %v469 = vld [vmem:[%s3] sm:$0x1]
        %v471 = vperm.slane %v469, 0
        %v473 = vld [vmem:[%s4] sm:$0x3]
        %v475 = vperm.slane %v473, 0
        %v476 = vperm.slane %v473, 1
        %v479 = vld [vmem:[%s393] sm:$0xff]
        %v480 = vld [vmem:[%s393 + $0x8] sm:$0xff]
        %v481 = vld [vmem:[%s393 + $0x10] sm:$0xff]
        %v482 = vld [vmem:[%s393 + $0x18] sm:$0xff]
        %v483 = vld [vmem:[%s393 + $0x20] sm:$0xff]
        %v484 = vld [vmem:[%s393 + $0x28] sm:$0xff]
        %v485 = vld [vmem:[%s393 + $0x30] sm:$0xff]
        %v486 = vld [vmem:[%s393 + $0x38] sm:$0xff]
        %v487 = vld [vmem:[%s393 + $0x40] sm:$0xff]
        %v488 = vld [vmem:[%s393 + $0x48] sm:$0xff]
        %v489 = vld [vmem:[%s393 + $0x50] sm:$0xff]
        %v490 = vld [vmem:[%s393 + $0x58] sm:$0xff]
        %v491 = vld [vmem:[%s393 + $0x60] sm:$0xff]
        %v492 = vld [vmem:[%s393 + $0x68] sm:$0xff]
        %v493 = vld [vmem:[%s393 + $0x70] sm:$0xff]
        %v494 = vld [vmem:[%s393 + $0x78] sm:$0xff]
        %v495 = vld [vmem:[%s393 + $0x80] sm:$0xff]
        %v496 = vld [vmem:[%s393 + $0x88] sm:$0xff]
        %v497 = vld [vmem:[%s393 + $0x90] sm:$0xff]
        %v498 = vld [vmem:[%s393 + $0x98] sm:$0xff]
        %v499 = vld [vmem:[%s393 + $0xa0] sm:$0xff]
        %v500 = vld [vmem:[%s393 + $0xa8] sm:$0xff]
        %v501 = vld [vmem:[%s393 + $0xb0] sm:$0xff]
        %v502 = vld [vmem:[%s393 + $0xb8] sm:$0xff]
        %v503 = vld [vmem:[%s393 + $0xc0] sm:$0xff]
        %v504 = vld [vmem:[%s393 + $0xc8] sm:$0xff]
        %v505 = vld [vmem:[%s393 + $0xd0] sm:$0xff]
        %v506 = vld [vmem:[%s393 + $0xd8] sm:$0xff]
        %v507 = vld [vmem:[%s393 + $0xe0] sm:$0xff]
        %v508 = vld [vmem:[%s393 + $0xe8] sm:$0xff]
        %v509 = vld [vmem:[%s393 + $0xf0] sm:$0xff]
        %v510 = vld [vmem:[%s393 + $0xf8] sm:$0xff]
        %v511 = vpack.c.bf16 %v481, %v479
        %v512 = vpack.c.bf16 %v482, %v480
        %v513 = vpack.c.bf16 %v485, %v483
        %v514 = vpack.c.bf16 %v486, %v484
        %v515 = vpack.c.bf16 %v489, %v487
        %v516 = vpack.c.bf16 %v490, %v488
        %v517 = vpack.c.bf16 %v493, %v491
        %v518 = vpack.c.bf16 %v494, %v492
        %v519 = vpack.c.bf16 %v497, %v495
        %v520 = vpack.c.bf16 %v498, %v496
        %v521 = vpack.c.bf16 %v501, %v499
        %v522 = vpack.c.bf16 %v502, %v500
        %v523 = vpack.c.bf16 %v505, %v503
        %v524 = vpack.c.bf16 %v506, %v504
        %v525 = vpack.c.bf16 %v509, %v507
        %v526 = vpack.c.bf16 %v510, %v508
        %v527 = vld [vmem:[%s413] sm:$0xff]
        %v528 = vld [vmem:[%s413 + $0x8] sm:$0xff]
        %v529 = vld [vmem:[%s413 + $0x10] sm:$0xff]
        %v530 = vld [vmem:[%s413 + $0x18] sm:$0xff]
        %v531 = vld [vmem:[%s413 + $0x20] sm:$0xff]
        %v532 = vld [vmem:[%s413 + $0x28] sm:$0xff]
        %v533 = vld [vmem:[%s413 + $0x30] sm:$0xff]
        %v534 = vld [vmem:[%s413 + $0x38] sm:$0xff]
        %v535 = vld [vmem:[%s413 + $0x40] sm:$0xff]
        %v536 = vld [vmem:[%s413 + $0x48] sm:$0xff]
        %v537 = vld [vmem:[%s413 + $0x50] sm:$0xff]
        %v538 = vld [vmem:[%s413 + $0x58] sm:$0xff]
        %v539 = vld [vmem:[%s413 + $0x60] sm:$0xff]
        %v540 = vld [vmem:[%s413 + $0x68] sm:$0xff]
        %v541 = vld [vmem:[%s413 + $0x70] sm:$0xff]
        %v542 = vld [vmem:[%s413 + $0x78] sm:$0xff]
        %v543 = vld [vmem:[#allocation7] sm:$0xf]
        %v544 = vld [vmem:[#allocation7 + $0x4] sm:$0xf]
        %v545 = vld [vmem:[#allocation7 + $0x8] sm:$0xf]
        %v546 = vld [vmem:[#allocation7 + $0xc] sm:$0xf]
        %v547 = vld [vmem:[#allocation7 + $0x10] sm:$0xf]
        %v548 = vld [vmem:[#allocation7 + $0x14] sm:$0xf]
        %v549 = vld [vmem:[#allocation7 + $0x18] sm:$0xf]
        %v550 = vld [vmem:[#allocation7 + $0x1c] sm:$0xf]
        %v551 = vld [vmem:[#allocation7 + $0x20] sm:$0xf]
        %v552 = vld [vmem:[#allocation7 + $0x24] sm:$0xf]
        %v553 = vld [vmem:[#allocation7 + $0x28] sm:$0xf]
        %v554 = vld [vmem:[#allocation7 + $0x2c] sm:$0xf]
        %v555 = vld [vmem:[#allocation7 + $0x30] sm:$0xf]
        %v556 = vld [vmem:[#allocation7 + $0x34] sm:$0xf]
        %v557 = vld [vmem:[#allocation7 + $0x38] sm:$0xf]
        %v558 = vld [vmem:[#allocation7 + $0x3c] sm:$0xf]
        %v559 = vld [vmem:[#allocation7 + $0x40] sm:$0xf]
        %v560 = vld [vmem:[#allocation7 + $0x44] sm:$0xf]
        %v561 = vld [vmem:[#allocation7 + $0x48] sm:$0xf]
        %v562 = vld [vmem:[#allocation7 + $0x4c] sm:$0xf]
        %v563 = vld [vmem:[#allocation7 + $0x50] sm:$0xf]
        %v564 = vld [vmem:[#allocation7 + $0x54] sm:$0xf]
        %v565 = vld [vmem:[#allocation7 + $0x58] sm:$0xf]
        %v566 = vld [vmem:[#allocation7 + $0x5c] sm:$0xf]
        %v567 = vld [vmem:[#allocation7 + $0x60] sm:$0xf]
        %v568 = vld [vmem:[#allocation7 + $0x64] sm:$0xf]
        %v569 = vld [vmem:[#allocation7 + $0x68] sm:$0xf]
        %v570 = vld [vmem:[#allocation7 + $0x6c] sm:$0xf]
        %v571 = vld [vmem:[#allocation7 + $0x70] sm:$0xf]
        %v572 = vld [vmem:[#allocation7 + $0x74] sm:$0xf]
        %v573 = vld [vmem:[#allocation7 + $0x78] sm:$0xf]
        %v574 = vld [vmem:[#allocation7 + $0x7c] sm:$0xf]
        %v607 = vunpack.c.l.b16 %v543
        %v608 = vunpack.c.l.b16 %v544
        %v609 = vunpack.c.l.b16 %v545
        %v610 = vunpack.c.l.b16 %v546
        %v611 = vunpack.c.l.b16 %v547
        %v612 = vunpack.c.l.b16 %v548
        %v613 = vunpack.c.l.b16 %v549
        %v614 = vunpack.c.l.b16 %v550
        %v615 = vunpack.c.l.b16 %v551
        %v616 = vunpack.c.l.b16 %v552
        %v617 = vunpack.c.l.b16 %v553
        %v618 = vunpack.c.l.b16 %v554
        %v619 = vunpack.c.l.b16 %v555
        %v620 = vunpack.c.l.b16 %v556
        %v621 = vunpack.c.l.b16 %v557
        %v622 = vunpack.c.l.b16 %v558
        %v623 = vunpack.c.l.b16 %v559
        %v624 = vunpack.c.l.b16 %v560
        %v625 = vunpack.c.l.b16 %v561
        %v626 = vunpack.c.l.b16 %v562
        %v627 = vunpack.c.l.b16 %v563
        %v628 = vunpack.c.l.b16 %v564
        %v629 = vunpack.c.l.b16 %v565
        %v630 = vunpack.c.l.b16 %v566
        %v631 = vunpack.c.l.b16 %v567
        %v632 = vunpack.c.l.b16 %v568
        %v633 = vunpack.c.l.b16 %v569
        %v634 = vunpack.c.l.b16 %v570
        %v635 = vunpack.c.l.b16 %v571
        %v636 = vunpack.c.l.b16 %v572
        %v637 = vunpack.c.l.b16 %v573
        %v638 = vunpack.c.l.b16 %v574
        %v639 = vpack.c.b16 %v608, %v607
        %v640 = vpack.c.b16 %v610, %v609
        %v641 = vpack.c.b16 %v612, %v611
        %v642 = vpack.c.b16 %v614, %v613
        %v643 = vpack.c.b16 %v616, %v615
        %v644 = vpack.c.b16 %v618, %v617
        %v645 = vpack.c.b16 %v620, %v619
        %v646 = vpack.c.b16 %v622, %v621
        %v647 = vpack.c.b16 %v624, %v623
        %v648 = vpack.c.b16 %v626, %v625
        %v649 = vpack.c.b16 %v628, %v627
        %v650 = vpack.c.b16 %v630, %v629
        %v651 = vpack.c.b16 %v632, %v631
        %v652 = vpack.c.b16 %v634, %v633
        %v653 = vpack.c.b16 %v636, %v635
        %v654 = vpack.c.b16 %v638, %v637
        %671 = vmatpush.bf16.msra.mxu0 %v646
        %672 = vmatpush.bf16.msra.mxu0 %v645
        %673 = vmatpush.bf16.msra.mxu0 %v644
        %674 = vmatpush.bf16.msra.mxu0 %v643
        %675 = vmatpush.bf16.msra.mxu0 %v642
        %676 = vmatpush.bf16.msra.mxu0 %v641
        %677 = vmatpush.bf16.msra.mxu0 %v640
        %678 = vmatpush.bf16.msra.mxu0 %v639
        %679 = vmatmul.bf16.gmra.mxu0 %v511
        %v680 = vpop.f32.mrf.mxu0
        %v681 = vadd.f32 %v471, %v680
        %v682 = vpop.f32.mrf.mxu0
        %v683 = vadd.f32 %v471, %v682
        %684 = vmatmul.bf16.gmra.mxu0 %v513
        %v685 = vpop.f32.mrf.mxu0
        %v686 = vadd.f32 %v471, %v685
        %v687 = vpop.f32.mrf.mxu0
        %v688 = vadd.f32 %v471, %v687
        %689 = vmatmul.bf16.gmra.mxu0 %v515
        %v690 = vpop.f32.mrf.mxu0
        %v691 = vadd.f32 %v471, %v690
        %v692 = vpop.f32.mrf.mxu0
        %v693 = vadd.f32 %v471, %v692
        %694 = vmatmul.bf16.gmra.mxu0 %v517
        %v695 = vpop.f32.mrf.mxu0
        %v696 = vadd.f32 %v471, %v695
        %v697 = vpop.f32.mrf.mxu0
        %v698 = vadd.f32 %v471, %v697
        %699 = vmatmul.bf16.gmra.mxu0 %v519
        %v700 = vpop.f32.mrf.mxu0
        %v701 = vadd.f32 %v471, %v700
        %v702 = vpop.f32.mrf.mxu0
        %v703 = vadd.f32 %v471, %v702
        %704 = vmatmul.bf16.gmra.mxu0 %v521
        %v705 = vpop.f32.mrf.mxu0
        %v706 = vadd.f32 %v471, %v705
        %v707 = vpop.f32.mrf.mxu0
        %v708 = vadd.f32 %v471, %v707
        %709 = vmatmul.bf16.gmra.mxu0 %v523
        %v710 = vpop.f32.mrf.mxu0
        %v711 = vadd.f32 %v471, %v710
        %v712 = vpop.f32.mrf.mxu0
        %v713 = vadd.f32 %v471, %v712
        %714 = vmatmul.bf16.gmra.mxu0 %v525
        %v715 = vpop.f32.mrf.mxu0
        %v716 = vadd.f32 %v471, %v715
        %v717 = vpop.f32.mrf.mxu0
        %v718 = vadd.f32 %v471, %v717
        %719 = vdwg.mxu0
        %720 = vmatpush.bf16.msra.mxu0 %v654
        %721 = vmatpush.bf16.msra.mxu0 %v653
        %722 = vmatpush.bf16.msra.mxu0 %v652
        %723 = vmatpush.bf16.msra.mxu0 %v651
        %724 = vmatpush.bf16.msra.mxu0 %v650
        %725 = vmatpush.bf16.msra.mxu0 %v649
        %726 = vmatpush.bf16.msra.mxu0 %v648
        %727 = vmatpush.bf16.msra.mxu0 %v647
        %728 = vmatmul.bf16.gmra.mxu0 %v512
        %v729 = vpop.f32.mrf.mxu0
        %v730 = vadd.f32 %v681, %v729
        %v731 = vpop.f32.mrf.mxu0
        %v732 = vadd.f32 %v683, %v731
        %733 = vmatmul.bf16.gmra.mxu0 %v514
        %v734 = vpop.f32.mrf.mxu0
        %v735 = vadd.f32 %v686, %v734
        %v736 = vpop.f32.mrf.mxu0
        %v737 = vadd.f32 %v688, %v736
        %738 = vmatmul.bf16.gmra.mxu0 %v516
        %v739 = vpop.f32.mrf.mxu0
        %v740 = vadd.f32 %v691, %v739
        %v741 = vpop.f32.mrf.mxu0
        %v742 = vadd.f32 %v693, %v741
        %743 = vmatmul.bf16.gmra.mxu0 %v518
        %v744 = vpop.f32.mrf.mxu0
        %v745 = vadd.f32 %v696, %v744
        %v746 = vpop.f32.mrf.mxu0
        %v747 = vadd.f32 %v698, %v746
        %748 = vmatmul.bf16.gmra.mxu0 %v520
        %v749 = vpop.f32.mrf.mxu0
        %v750 = vadd.f32 %v701, %v749
        %v751 = vpop.f32.mrf.mxu0
        %v752 = vadd.f32 %v703, %v751
        %753 = vmatmul.bf16.gmra.mxu0 %v522
        %v754 = vpop.f32.mrf.mxu0
        %v755 = vadd.f32 %v706, %v754
        %v756 = vpop.f32.mrf.mxu0
        %v757 = vadd.f32 %v708, %v756
        %758 = vmatmul.bf16.gmra.mxu0 %v524
        %v759 = vpop.f32.mrf.mxu0
        %v760 = vadd.f32 %v711, %v759
        %v761 = vpop.f32.mrf.mxu0
        %v762 = vadd.f32 %v713, %v761
        %763 = vmatmul.bf16.gmra.mxu0 %v526
        %v764 = vpop.f32.mrf.mxu0
        %v765 = vadd.f32 %v716, %v764
        %v766 = vpop.f32.mrf.mxu0
        %v767 = vadd.f32 %v718, %v766
        %768 = vdwg.mxu0
        %v769 = vxor.u32 %v730, 2147483648
        %v770 = vxor.u32 %v732, 2147483648
        %v771 = vxor.u32 %v735, 2147483648
        %v772 = vxor.u32 %v737, 2147483648
        %v773 = vxor.u32 %v740, 2147483648
        %v774 = vxor.u32 %v742, 2147483648
        %v775 = vxor.u32 %v745, 2147483648
        %v776 = vxor.u32 %v747, 2147483648
        %v777 = vxor.u32 %v750, 2147483648
        %v778 = vxor.u32 %v752, 2147483648
        %v779 = vxor.u32 %v755, 2147483648
        %v780 = vxor.u32 %v757, 2147483648
        %v781 = vxor.u32 %v760, 2147483648
        %v782 = vxor.u32 %v762, 2147483648
        %v783 = vxor.u32 %v765, 2147483648
        %v784 = vxor.u32 %v767, 2147483648
        %v785 = vmul.f32 %v769, 1.442695
        %v786 = vpow.pop %v785
        %v787 = vmul.f32 %v770, 1.442695
        %v788 = vpow.pop %v787
        %v789 = vmul.f32 %v771, 1.442695
        %v790 = vpow.pop %v789
        %v791 = vmul.f32 %v772, 1.442695
        %v792 = vpow.pop %v791
        %v793 = vmul.f32 %v773, 1.442695
        %v794 = vpow.pop %v793
        %v795 = vmul.f32 %v774, 1.442695
        %v796 = vpow.pop %v795
        %v797 = vmul.f32 %v775, 1.442695
        %v798 = vpow.pop %v797
        %v799 = vmul.f32 %v776, 1.442695
        %v800 = vpow.pop %v799
        %v801 = vmul.f32 %v777, 1.442695
        %v802 = vpow.pop %v801
        %v803 = vmul.f32 %v778, 1.442695
        %v804 = vpow.pop %v803
        %v805 = vmul.f32 %v779, 1.442695
        %v806 = vpow.pop %v805
        %v807 = vmul.f32 %v780, 1.442695
        %v808 = vpow.pop %v807
        %v809 = vmul.f32 %v781, 1.442695
        %v810 = vpow.pop %v809
        %v811 = vmul.f32 %v782, 1.442695
        %v812 = vpow.pop %v811
        %v813 = vmul.f32 %v783, 1.442695
        %v814 = vpow.pop %v813
        %v815 = vmul.f32 %v784, 1.442695
        %v816 = vpow.pop %v815
        %v817 = vadd.f32 %v786, 1.0
        %v818 = vadd.f32 %v788, 1.0
        %v819 = vadd.f32 %v790, 1.0
        %v820 = vadd.f32 %v792, 1.0
        %v821 = vadd.f32 %v794, 1.0
        %v822 = vadd.f32 %v796, 1.0
        %v823 = vadd.f32 %v798, 1.0
        %v824 = vadd.f32 %v800, 1.0
        %v825 = vadd.f32 %v802, 1.0
        %v826 = vadd.f32 %v804, 1.0
        %v827 = vadd.f32 %v806, 1.0
        %v828 = vadd.f32 %v808, 1.0
        %v829 = vadd.f32 %v810, 1.0
        %v830 = vadd.f32 %v812, 1.0
        %v831 = vadd.f32 %v814, 1.0
        %v832 = vadd.f32 %v816, 1.0
        %v833 = vrcp.pop %v817
        %v834 = vmul.f32 %v817, %v833
        %v835 = vsub.f32 1.0, %v834
        %v836 = vmul.f32 %v833, %v835
        %v837 = vadd.f32 %v833, %v836
        %vm838 = vweird.f32 %v817
        %vm839 = vweird.f32 %v833
        %vm840 = vmor %vm838, %vm839
        %v841 = vsel %vm840, %v833, %v837
        %v842 = vand.u32 2147483647, %v817
        %vm843 = vcmp.eq.f32.partialorder %v842, 8.507059e+37
        %v844 = vand.u32 %v817, 2147483648
        %v845 = vor.u32 1.1754944e-38, %v844
        %v846 = vsel %vm843, %v845, %v841
        %v847 = vmul.f32 1.0, %v846
        %v848 = vrcp.pop %v818
        %v849 = vmul.f32 %v818, %v848
        %v850 = vsub.f32 1.0, %v849
        %v851 = vmul.f32 %v848, %v850
        %v852 = vadd.f32 %v848, %v851
        %vm853 = vweird.f32 %v818
        %vm854 = vweird.f32 %v848
        %vm855 = vmor %vm853, %vm854
        %v856 = vsel %vm855, %v848, %v852
        %v857 = vand.u32 2147483647, %v818
        %vm858 = vcmp.eq.f32.partialorder %v857, 8.507059e+37
        %v859 = vand.u32 %v818, 2147483648
        %v860 = vor.u32 1.1754944e-38, %v859
        %v861 = vsel %vm858, %v860, %v856
        %v862 = vmul.f32 1.0, %v861
        %v863 = vrcp.pop %v819
        %v864 = vmul.f32 %v819, %v863
        %v865 = vsub.f32 1.0, %v864
        %v866 = vmul.f32 %v863, %v865
        %v867 = vadd.f32 %v863, %v866
        %vm868 = vweird.f32 %v819
        %vm869 = vweird.f32 %v863
        %vm870 = vmor %vm868, %vm869
        %v871 = vsel %vm870, %v863, %v867
        %v872 = vand.u32 2147483647, %v819
        %vm873 = vcmp.eq.f32.partialorder %v872, 8.507059e+37
        %v874 = vand.u32 %v819, 2147483648
        %v875 = vor.u32 1.1754944e-38, %v874
        %v876 = vsel %vm873, %v875, %v871
        %v877 = vmul.f32 1.0, %v876
        %v878 = vrcp.pop %v820
        %v879 = vmul.f32 %v820, %v878
        %v880 = vsub.f32 1.0, %v879
        %v881 = vmul.f32 %v878, %v880
        %v882 = vadd.f32 %v878, %v881
        %vm883 = vweird.f32 %v820
        %vm884 = vweird.f32 %v878
        %vm885 = vmor %vm883, %vm884
        %v886 = vsel %vm885, %v878, %v882
        %v887 = vand.u32 2147483647, %v820
        %vm888 = vcmp.eq.f32.partialorder %v887, 8.507059e+37
        %v889 = vand.u32 %v820, 2147483648
        %v890 = vor.u32 1.1754944e-38, %v889
        %v891 = vsel %vm888, %v890, %v886
        %v892 = vmul.f32 1.0, %v891
        %v893 = vrcp.pop %v821
        %v894 = vmul.f32 %v821, %v893
        %v895 = vsub.f32 1.0, %v894
        %v896 = vmul.f32 %v893, %v895
        %v897 = vadd.f32 %v893, %v896
        %vm898 = vweird.f32 %v821
        %vm899 = vweird.f32 %v893
        %vm900 = vmor %vm898, %vm899
        %v901 = vsel %vm900, %v893, %v897
        %v902 = vand.u32 2147483647, %v821
        %vm903 = vcmp.eq.f32.partialorder %v902, 8.507059e+37
        %v904 = vand.u32 %v821, 2147483648
        %v905 = vor.u32 1.1754944e-38, %v904
        %v906 = vsel %vm903, %v905, %v901
        %v907 = vmul.f32 1.0, %v906
        %v908 = vrcp.pop %v822
        %v909 = vmul.f32 %v822, %v908
        %v910 = vsub.f32 1.0, %v909
        %v911 = vmul.f32 %v908, %v910
        %v912 = vadd.f32 %v908, %v911
        %vm913 = vweird.f32 %v822
        %vm914 = vweird.f32 %v908
        %vm915 = vmor %vm913, %vm914
        %v916 = vsel %vm915, %v908, %v912
        %v917 = vand.u32 2147483647, %v822
        %vm918 = vcmp.eq.f32.partialorder %v917, 8.507059e+37
        %v919 = vand.u32 %v822, 2147483648
        %v920 = vor.u32 1.1754944e-38, %v919
        %v921 = vsel %vm918, %v920, %v916
        %v922 = vmul.f32 1.0, %v921
        %v923 = vrcp.pop %v823
        %v924 = vmul.f32 %v823, %v923
        %v925 = vsub.f32 1.0, %v924
        %v926 = vmul.f32 %v923, %v925
        %v927 = vadd.f32 %v923, %v926
        %vm928 = vweird.f32 %v823
        %vm929 = vweird.f32 %v923
        %vm930 = vmor %vm928, %vm929
        %v931 = vsel %vm930, %v923, %v927
        %v932 = vand.u32 2147483647, %v823
        %vm933 = vcmp.eq.f32.partialorder %v932, 8.507059e+37
        %v934 = vand.u32 %v823, 2147483648
        %v935 = vor.u32 1.1754944e-38, %v934
        %v936 = vsel %vm933, %v935, %v931
        %v937 = vmul.f32 1.0, %v936
        %v938 = vrcp.pop %v824
        %v939 = vmul.f32 %v824, %v938
        %v940 = vsub.f32 1.0, %v939
        %v941 = vmul.f32 %v938, %v940
        %v942 = vadd.f32 %v938, %v941
        %vm943 = vweird.f32 %v824
        %vm944 = vweird.f32 %v938
        %vm945 = vmor %vm943, %vm944
        %v946 = vsel %vm945, %v938, %v942
        %v947 = vand.u32 2147483647, %v824
        %vm948 = vcmp.eq.f32.partialorder %v947, 8.507059e+37
        %v949 = vand.u32 %v824, 2147483648
        %v950 = vor.u32 1.1754944e-38, %v949
        %v951 = vsel %vm948, %v950, %v946
        %v952 = vmul.f32 1.0, %v951
        %v953 = vrcp.pop %v825
        %v954 = vmul.f32 %v825, %v953
        %v955 = vsub.f32 1.0, %v954
        %v956 = vmul.f32 %v953, %v955
        %v957 = vadd.f32 %v953, %v956
        %vm958 = vweird.f32 %v825
        %vm959 = vweird.f32 %v953
        %vm960 = vmor %vm958, %vm959
        %v961 = vsel %vm960, %v953, %v957
        %v962 = vand.u32 2147483647, %v825
        %vm963 = vcmp.eq.f32.partialorder %v962, 8.507059e+37
        %v964 = vand.u32 %v825, 2147483648
        %v965 = vor.u32 1.1754944e-38, %v964
        %v966 = vsel %vm963, %v965, %v961
        %v967 = vmul.f32 1.0, %v966
        %v968 = vrcp.pop %v826
        %v969 = vmul.f32 %v826, %v968
        %v970 = vsub.f32 1.0, %v969
        %v971 = vmul.f32 %v968, %v970
        %v972 = vadd.f32 %v968, %v971
        %vm973 = vweird.f32 %v826
        %vm974 = vweird.f32 %v968
        %vm975 = vmor %vm973, %vm974
        %v976 = vsel %vm975, %v968, %v972
        %v977 = vand.u32 2147483647, %v826
        %vm978 = vcmp.eq.f32.partialorder %v977, 8.507059e+37
        %v979 = vand.u32 %v826, 2147483648
        %v980 = vor.u32 1.1754944e-38, %v979
        %v981 = vsel %vm978, %v980, %v976
        %v982 = vmul.f32 1.0, %v981
        %v983 = vrcp.pop %v827
        %v984 = vmul.f32 %v827, %v983
        %v985 = vsub.f32 1.0, %v984
        %v986 = vmul.f32 %v983, %v985
        %v987 = vadd.f32 %v983, %v986
        %vm988 = vweird.f32 %v827
        %vm989 = vweird.f32 %v983
        %vm990 = vmor %vm988, %vm989
        %v991 = vsel %vm990, %v983, %v987
        %v992 = vand.u32 2147483647, %v827
        %vm993 = vcmp.eq.f32.partialorder %v992, 8.507059e+37
        %v994 = vand.u32 %v827, 2147483648
        %v995 = vor.u32 1.1754944e-38, %v994
        %v996 = vsel %vm993, %v995, %v991
        %v997 = vmul.f32 1.0, %v996
        %v998 = vrcp.pop %v828
        %v999 = vmul.f32 %v828, %v998
        %v1000 = vsub.f32 1.0, %v999
        %v1001 = vmul.f32 %v998, %v1000
        %v1002 = vadd.f32 %v998, %v1001
        %vm1003 = vweird.f32 %v828
        %vm1004 = vweird.f32 %v998
        %vm1005 = vmor %vm1003, %vm1004
        %v1006 = vsel %vm1005, %v998, %v1002
        %v1007 = vand.u32 2147483647, %v828
        %vm1008 = vcmp.eq.f32.partialorder %v1007, 8.507059e+37
        %v1009 = vand.u32 %v828, 2147483648
        %v1010 = vor.u32 1.1754944e-38, %v1009
        %v1011 = vsel %vm1008, %v1010, %v1006
        %v1012 = vmul.f32 1.0, %v1011
        %v1013 = vrcp.pop %v829
        %v1014 = vmul.f32 %v829, %v1013
        %v1015 = vsub.f32 1.0, %v1014
        %v1016 = vmul.f32 %v1013, %v1015
        %v1017 = vadd.f32 %v1013, %v1016
        %vm1018 = vweird.f32 %v829
        %vm1019 = vweird.f32 %v1013
        %vm1020 = vmor %vm1018, %vm1019
        %v1021 = vsel %vm1020, %v1013, %v1017
        %v1022 = vand.u32 2147483647, %v829
        %vm1023 = vcmp.eq.f32.partialorder %v1022, 8.507059e+37
        %v1024 = vand.u32 %v829, 2147483648
        %v1025 = vor.u32 1.1754944e-38, %v1024
        %v1026 = vsel %vm1023, %v1025, %v1021
        %v1027 = vmul.f32 1.0, %v1026
        %v1028 = vrcp.pop %v830
        %v1029 = vmul.f32 %v830, %v1028
        %v1030 = vsub.f32 1.0, %v1029
        %v1031 = vmul.f32 %v1028, %v1030
        %v1032 = vadd.f32 %v1028, %v1031
        %vm1033 = vweird.f32 %v830
        %vm1034 = vweird.f32 %v1028
        %vm1035 = vmor %vm1033, %vm1034
        %v1036 = vsel %vm1035, %v1028, %v1032
        %v1037 = vand.u32 2147483647, %v830
        %vm1038 = vcmp.eq.f32.partialorder %v1037, 8.507059e+37
        %v1039 = vand.u32 %v830, 2147483648
        %v1040 = vor.u32 1.1754944e-38, %v1039
        %v1041 = vsel %vm1038, %v1040, %v1036
        %v1042 = vmul.f32 1.0, %v1041
        %v1043 = vrcp.pop %v831
        %v1044 = vmul.f32 %v831, %v1043
        %v1045 = vsub.f32 1.0, %v1044
        %v1046 = vmul.f32 %v1043, %v1045
        %v1047 = vadd.f32 %v1043, %v1046
        %vm1048 = vweird.f32 %v831
        %vm1049 = vweird.f32 %v1043
        %vm1050 = vmor %vm1048, %vm1049
        %v1051 = vsel %vm1050, %v1043, %v1047
        %v1052 = vand.u32 2147483647, %v831
        %vm1053 = vcmp.eq.f32.partialorder %v1052, 8.507059e+37
        %v1054 = vand.u32 %v831, 2147483648
        %v1055 = vor.u32 1.1754944e-38, %v1054
        %v1056 = vsel %vm1053, %v1055, %v1051
        %v1057 = vmul.f32 1.0, %v1056
        %v1058 = vrcp.pop %v832
        %v1059 = vmul.f32 %v832, %v1058
        %v1060 = vsub.f32 1.0, %v1059
        %v1061 = vmul.f32 %v1058, %v1060
        %v1062 = vadd.f32 %v1058, %v1061
        %vm1063 = vweird.f32 %v832
        %vm1064 = vweird.f32 %v1058
        %vm1065 = vmor %vm1063, %vm1064
        %v1066 = vsel %vm1065, %v1058, %v1062
        %v1067 = vand.u32 2147483647, %v832
        %vm1068 = vcmp.eq.f32.partialorder %v1067, 8.507059e+37
        %v1069 = vand.u32 %v832, 2147483648
        %v1070 = vor.u32 1.1754944e-38, %v1069
        %v1071 = vsel %vm1068, %v1070, %v1066
        %v1072 = vmul.f32 1.0, %v1071
        %vm1073 = vcmp.lt.f32.partialorder %v527, %v847
        %vm1074 = vcmp.lt.f32.partialorder %v528, %v862
        %vm1075 = vcmp.lt.f32.partialorder %v529, %v877
        %vm1076 = vcmp.lt.f32.partialorder %v530, %v892
        %vm1077 = vcmp.lt.f32.partialorder %v531, %v907
        %vm1078 = vcmp.lt.f32.partialorder %v532, %v922
        %vm1079 = vcmp.lt.f32.partialorder %v533, %v937
        %vm1080 = vcmp.lt.f32.partialorder %v534, %v952
        %vm1081 = vcmp.lt.f32.partialorder %v535, %v967
        %vm1082 = vcmp.lt.f32.partialorder %v536, %v982
        %vm1083 = vcmp.lt.f32.partialorder %v537, %v997
        %vm1084 = vcmp.lt.f32.partialorder %v538, %v1012
        %vm1085 = vcmp.lt.f32.partialorder %v539, %v1027
        %vm1086 = vcmp.lt.f32.partialorder %v540, %v1042
        %vm1087 = vcmp.lt.f32.partialorder %v541, %v1057
        %vm1088 = vcmp.lt.f32.partialorder %v542, %v1072
        %v1089 = vsel %vm1073, 1, 0
        %v1090 = vsel %vm1074, 1, 0
        %v1091 = vsel %vm1075, 1, 0
        %v1092 = vsel %vm1076, 1, 0
        %v1093 = vsel %vm1077, 1, 0
        %v1094 = vsel %vm1078, 1, 0
        %v1095 = vsel %vm1079, 1, 0
        %v1096 = vsel %vm1080, 1, 0
        %v1097 = vsel %vm1081, 1, 0
        %v1098 = vsel %vm1082, 1, 0
        %v1099 = vsel %vm1083, 1, 0
        %v1100 = vsel %vm1084, 1, 0
        %v1101 = vsel %vm1085, 1, 0
        %v1102 = vsel %vm1086, 1, 0
        %v1103 = vsel %vm1087, 1, 0
        %v1104 = vsel %vm1088, 1, 0
        %v1105 = vcvt.s32.f32 %v1089
        %v1106 = vcvt.s32.f32 %v1090
        %v1107 = vcvt.s32.f32 %v1091
        %v1108 = vcvt.s32.f32 %v1092
        %v1109 = vcvt.s32.f32 %v1093
        %v1110 = vcvt.s32.f32 %v1094
        %v1111 = vcvt.s32.f32 %v1095
        %v1112 = vcvt.s32.f32 %v1096
        %v1113 = vcvt.s32.f32 %v1097
        %v1114 = vcvt.s32.f32 %v1098
        %v1115 = vcvt.s32.f32 %v1099
        %v1116 = vcvt.s32.f32 %v1100
        %v1117 = vcvt.s32.f32 %v1101
        %v1118 = vcvt.s32.f32 %v1102
        %v1119 = vcvt.s32.f32 %v1103
        %v1120 = vcvt.s32.f32 %v1104
        %v1121 = vpack.c.bf16 %v1106, %v1105
        %v1122 = vpack.c.bf16 %v1108, %v1107
        %v1123 = vpack.c.bf16 %v1110, %v1109
        %v1124 = vpack.c.bf16 %v1112, %v1111
        %v1125 = vpack.c.bf16 %v1114, %v1113
        %v1126 = vpack.c.bf16 %v1116, %v1115
        %v1127 = vpack.c.bf16 %v1118, %v1117
        %v1128 = vpack.c.bf16 %v1120, %v1119
        %v1129 = vld [vmem:[%s423] sm:$0xff]
        %v1130 = vld [vmem:[%s423 + $0x8] sm:$0xff]
        %v1131 = vld [vmem:[%s423 + $0x10] sm:$0xff]
        %v1132 = vld [vmem:[%s423 + $0x18] sm:$0xff]
        %v1133 = vld [vmem:[%s423 + $0x20] sm:$0xff]
        %v1134 = vld [vmem:[%s423 + $0x28] sm:$0xff]
        %v1135 = vld [vmem:[%s423 + $0x30] sm:$0xff]
        %v1136 = vld [vmem:[%s423 + $0x38] sm:$0xff]
        %v1137 = vld [vmem:[%s423 + $0x40] sm:$0xff]
        %v1138 = vld [vmem:[%s423 + $0x48] sm:$0xff]
        %v1139 = vld [vmem:[%s423 + $0x50] sm:$0xff]
        %v1140 = vld [vmem:[%s423 + $0x58] sm:$0xff]
        %v1141 = vld [vmem:[%s423 + $0x60] sm:$0xff]
        %v1142 = vld [vmem:[%s423 + $0x68] sm:$0xff]
        %v1143 = vld [vmem:[%s423 + $0x70] sm:$0xff]
        %v1144 = vld [vmem:[%s423 + $0x78] sm:$0xff]
        %v1145 = vld [vmem:[%s423 + $0x80] sm:$0xff]
        %v1146 = vld [vmem:[%s423 + $0x88] sm:$0xff]
        %v1147 = vld [vmem:[%s423 + $0x90] sm:$0xff]
        %v1148 = vld [vmem:[%s423 + $0x98] sm:$0xff]
        %v1149 = vld [vmem:[%s423 + $0xa0] sm:$0xff]
        %v1150 = vld [vmem:[%s423 + $0xa8] sm:$0xff]
        %v1151 = vld [vmem:[%s423 + $0xb0] sm:$0xff]
        %v1152 = vld [vmem:[%s423 + $0xb8] sm:$0xff]
        %v1153 = vld [vmem:[%s423 + $0xc0] sm:$0xff]
        %v1154 = vld [vmem:[%s423 + $0xc8] sm:$0xff]
        %v1155 = vld [vmem:[%s423 + $0xd0] sm:$0xff]
        %v1156 = vld [vmem:[%s423 + $0xd8] sm:$0xff]
        %v1157 = vld [vmem:[%s423 + $0xe0] sm:$0xff]
        %v1158 = vld [vmem:[%s423 + $0xe8] sm:$0xff]
        %v1159 = vld [vmem:[%s423 + $0xf0] sm:$0xff]
        %v1160 = vld [vmem:[%s423 + $0xf8] sm:$0xff]
        %v1161 = vld [vmem:[#allocation5] sm:$0xff]
        %v1162 = vld [vmem:[#allocation5 + $0x8] sm:$0xff]
        %v1163 = vld [vmem:[#allocation5 + $0x10] sm:$0xff]
        %v1164 = vld [vmem:[#allocation5 + $0x18] sm:$0xff]
        %v1165 = vld [vmem:[#allocation5 + $0x20] sm:$0xff]
        %v1166 = vld [vmem:[#allocation5 + $0x28] sm:$0xff]
        %v1167 = vld [vmem:[#allocation5 + $0x30] sm:$0xff]
        %v1168 = vld [vmem:[#allocation5 + $0x38] sm:$0xff]
        %v1169 = vld [vmem:[#allocation5 + $0x40] sm:$0xff]
        %v1170 = vld [vmem:[#allocation5 + $0x48] sm:$0xff]
        %v1171 = vld [vmem:[#allocation5 + $0x50] sm:$0xff]
        %v1172 = vld [vmem:[#allocation5 + $0x58] sm:$0xff]
        %v1173 = vld [vmem:[#allocation5 + $0x60] sm:$0xff]
        %v1174 = vld [vmem:[#allocation5 + $0x68] sm:$0xff]
        %v1175 = vld [vmem:[#allocation5 + $0x70] sm:$0xff]
        %v1176 = vld [vmem:[#allocation5 + $0x78] sm:$0xff]
        %v1193 = vunpack.c.l.b16 %v1161
        %v1194 = vunpack.c.h.b16 %v1161
        %v1195 = vunpack.c.l.b16 %v1162
        %v1196 = vunpack.c.h.b16 %v1162
        %v1197 = vunpack.c.l.b16 %v1163
        %v1198 = vunpack.c.h.b16 %v1163
        %v1199 = vunpack.c.l.b16 %v1164
        %v1200 = vunpack.c.h.b16 %v1164
        %v1201 = vunpack.c.l.b16 %v1165
        %v1202 = vunpack.c.h.b16 %v1165
        %v1203 = vunpack.c.l.b16 %v1166
        %v1204 = vunpack.c.h.b16 %v1166
        %v1205 = vunpack.c.l.b16 %v1167
        %v1206 = vunpack.c.h.b16 %v1167
        %v1207 = vunpack.c.l.b16 %v1168
        %v1208 = vunpack.c.h.b16 %v1168
        %v1209 = vunpack.c.l.b16 %v1169
        %v1210 = vunpack.c.h.b16 %v1169
        %v1211 = vunpack.c.l.b16 %v1170
        %v1212 = vunpack.c.h.b16 %v1170
        %v1213 = vunpack.c.l.b16 %v1171
        %v1214 = vunpack.c.h.b16 %v1171
        %v1215 = vunpack.c.l.b16 %v1172
        %v1216 = vunpack.c.h.b16 %v1172
        %v1217 = vunpack.c.l.b16 %v1173
        %v1218 = vunpack.c.h.b16 %v1173
        %v1219 = vunpack.c.l.b16 %v1174
        %v1220 = vunpack.c.h.b16 %v1174
        %v1221 = vunpack.c.l.b16 %v1175
        %v1222 = vunpack.c.h.b16 %v1175
        %v1223 = vunpack.c.l.b16 %v1176
        %v1224 = vunpack.c.h.b16 %v1176
        %v1225 = vpack.c.b16 %v1195, %v1193
        %v1226 = vpack.c.b16 %v1196, %v1194
        %v1227 = vpack.c.b16 %v1199, %v1197
        %v1228 = vpack.c.b16 %v1200, %v1198
        %v1229 = vpack.c.b16 %v1203, %v1201
        %v1230 = vpack.c.b16 %v1204, %v1202
        %v1231 = vpack.c.b16 %v1207, %v1205
        %v1232 = vpack.c.b16 %v1208, %v1206
        %v1233 = vpack.c.b16 %v1211, %v1209
        %v1234 = vpack.c.b16 %v1212, %v1210
        %v1235 = vpack.c.b16 %v1215, %v1213
        %v1236 = vpack.c.b16 %v1216, %v1214
        %v1237 = vpack.c.b16 %v1219, %v1217
        %v1238 = vpack.c.b16 %v1220, %v1218
        %v1239 = vpack.c.b16 %v1223, %v1221
        %v1240 = vpack.c.b16 %v1224, %v1222
        %1257 = vmatpush.bf16.msra.mxu0 %v1239
        %1258 = vmatpush.bf16.msra.mxu0 %v1237
        %1259 = vmatpush.bf16.msra.mxu0 %v1235
        %1260 = vmatpush.bf16.msra.mxu0 %v1233
        %1261 = vmatpush.bf16.msra.mxu0 %v1231
        %1262 = vmatpush.bf16.msra.mxu0 %v1229
        %1263 = vmatpush.bf16.msra.mxu0 %v1227
        %1264 = vmatpush.bf16.msra.mxu0 %v1225
        %1265 = vmatmul.bf16.gmra.mxu0 %v1121
        %v1266 = vpop.f32.mrf.mxu0
        %v1267 = vadd.f32 %v475, %v1266
        %v1268 = vpop.f32.mrf.mxu0
        %v1269 = vadd.f32 %v475, %v1268
        %1270 = vmatmul.bf16.gmra.mxu0 %v1122
        %v1271 = vpop.f32.mrf.mxu0
        %v1272 = vadd.f32 %v475, %v1271
        %v1273 = vpop.f32.mrf.mxu0
        %v1274 = vadd.f32 %v475, %v1273
        %1275 = vmatmul.bf16.gmra.mxu0 %v1123
        %v1276 = vpop.f32.mrf.mxu0
        %v1277 = vadd.f32 %v475, %v1276
        %v1278 = vpop.f32.mrf.mxu0
        %v1279 = vadd.f32 %v475, %v1278
        %1280 = vmatmul.bf16.gmra.mxu0 %v1124
        %v1281 = vpop.f32.mrf.mxu0
        %v1282 = vadd.f32 %v475, %v1281
        %v1283 = vpop.f32.mrf.mxu0
        %v1284 = vadd.f32 %v475, %v1283
        %1285 = vmatmul.bf16.gmra.mxu0 %v1125
        %v1286 = vpop.f32.mrf.mxu0
        %v1287 = vadd.f32 %v475, %v1286
        %v1288 = vpop.f32.mrf.mxu0
        %v1289 = vadd.f32 %v475, %v1288
        %1290 = vmatmul.bf16.gmra.mxu0 %v1126
        %v1291 = vpop.f32.mrf.mxu0
        %v1292 = vadd.f32 %v475, %v1291
        %v1293 = vpop.f32.mrf.mxu0
        %v1294 = vadd.f32 %v475, %v1293
        %1295 = vmatmul.bf16.gmra.mxu0 %v1127
        %v1296 = vpop.f32.mrf.mxu0
        %v1297 = vadd.f32 %v475, %v1296
        %v1298 = vpop.f32.mrf.mxu0
        %v1299 = vadd.f32 %v475, %v1298
        %1300 = vmatmul.bf16.gmra.mxu0 %v1128
        %v1301 = vpop.f32.mrf.mxu0
        %v1302 = vadd.f32 %v475, %v1301
        %v1303 = vpop.f32.mrf.mxu0
        %v1304 = vadd.f32 %v475, %v1303
        %1305 = vdwg.mxu0
        %1306 = vmatpush.bf16.msra.mxu0 %v1240
        %1307 = vmatpush.bf16.msra.mxu0 %v1238
        %1308 = vmatpush.bf16.msra.mxu0 %v1236
        %1309 = vmatpush.bf16.msra.mxu0 %v1234
        %1310 = vmatpush.bf16.msra.mxu0 %v1232
        %1311 = vmatpush.bf16.msra.mxu0 %v1230
        %1312 = vmatpush.bf16.msra.mxu0 %v1228
        %1313 = vmatpush.bf16.msra.mxu0 %v1226
        %1314 = vmatmul.bf16.gmra.mxu0 %v1121
        %v1315 = vpop.f32.mrf.mxu0
        %v1316 = vadd.f32 %v476, %v1315
        %v1317 = vpop.f32.mrf.mxu0
        %v1318 = vadd.f32 %v476, %v1317
        %1319 = vmatmul.bf16.gmra.mxu0 %v1122
        %v1320 = vpop.f32.mrf.mxu0
        %v1321 = vadd.f32 %v476, %v1320
        %v1322 = vpop.f32.mrf.mxu0
        %v1323 = vadd.f32 %v476, %v1322
        %1324 = vmatmul.bf16.gmra.mxu0 %v1123
        %v1325 = vpop.f32.mrf.mxu0
        %v1326 = vadd.f32 %v476, %v1325
        %v1327 = vpop.f32.mrf.mxu0
        %v1328 = vadd.f32 %v476, %v1327
        %1329 = vmatmul.bf16.gmra.mxu0 %v1124
        %v1330 = vpop.f32.mrf.mxu0
        %v1331 = vadd.f32 %v476, %v1330
        %v1332 = vpop.f32.mrf.mxu0
        %v1333 = vadd.f32 %v476, %v1332
        %1334 = vmatmul.bf16.gmra.mxu0 %v1125
        %v1335 = vpop.f32.mrf.mxu0
        %v1336 = vadd.f32 %v476, %v1335
        %v1337 = vpop.f32.mrf.mxu0
        %v1338 = vadd.f32 %v476, %v1337
        %1339 = vmatmul.bf16.gmra.mxu0 %v1126
        %v1340 = vpop.f32.mrf.mxu0
        %v1341 = vadd.f32 %v476, %v1340
        %v1342 = vpop.f32.mrf.mxu0
        %v1343 = vadd.f32 %v476, %v1342
        %1344 = vmatmul.bf16.gmra.mxu0 %v1127
        %v1345 = vpop.f32.mrf.mxu0
        %v1346 = vadd.f32 %v476, %v1345
        %v1347 = vpop.f32.mrf.mxu0
        %v1348 = vadd.f32 %v476, %v1347
        %1349 = vmatmul.bf16.gmra.mxu0 %v1128
        %v1350 = vpop.f32.mrf.mxu0
        %v1351 = vadd.f32 %v476, %v1350
        %v1352 = vpop.f32.mrf.mxu0
        %v1353 = vadd.f32 %v476, %v1352
        %1354 = vdwg.mxu0
        %v1355 = vxor.u32 %v1267, 2147483648
        %v1356 = vxor.u32 %v1316, 2147483648
        %v1357 = vxor.u32 %v1269, 2147483648
        %v1358 = vxor.u32 %v1318, 2147483648
        %v1359 = vxor.u32 %v1272, 2147483648
        %v1360 = vxor.u32 %v1321, 2147483648
        %v1361 = vxor.u32 %v1274, 2147483648
        %v1362 = vxor.u32 %v1323, 2147483648
        %v1363 = vxor.u32 %v1277, 2147483648
        %v1364 = vxor.u32 %v1326, 2147483648
        %v1365 = vxor.u32 %v1279, 2147483648
        %v1366 = vxor.u32 %v1328, 2147483648
        %v1367 = vxor.u32 %v1282, 2147483648
        %v1368 = vxor.u32 %v1331, 2147483648
        %v1369 = vxor.u32 %v1284, 2147483648
        %v1370 = vxor.u32 %v1333, 2147483648
        %v1371 = vxor.u32 %v1287, 2147483648
        %v1372 = vxor.u32 %v1336, 2147483648
        %v1373 = vxor.u32 %v1289, 2147483648
        %v1374 = vxor.u32 %v1338, 2147483648
        %v1375 = vxor.u32 %v1292, 2147483648
        %v1376 = vxor.u32 %v1341, 2147483648
        %v1377 = vxor.u32 %v1294, 2147483648
        %v1378 = vxor.u32 %v1343, 2147483648
        %v1379 = vxor.u32 %v1297, 2147483648
        %v1380 = vxor.u32 %v1346, 2147483648
        %v1381 = vxor.u32 %v1299, 2147483648
        %v1382 = vxor.u32 %v1348, 2147483648
        %v1383 = vxor.u32 %v1302, 2147483648
        %v1384 = vxor.u32 %v1351, 2147483648
        %v1385 = vxor.u32 %v1304, 2147483648
        %v1386 = vxor.u32 %v1353, 2147483648
        %v1387 = vmul.f32 %v1355, 1.442695
        %v1388 = vpow.pop %v1387
        %v1389 = vmul.f32 %v1356, 1.442695
        %v1390 = vpow.pop %v1389
        %v1391 = vmul.f32 %v1357, 1.442695
        %v1392 = vpow.pop %v1391
        %v1393 = vmul.f32 %v1358, 1.442695
        %v1394 = vpow.pop %v1393
        %v1395 = vmul.f32 %v1359, 1.442695
        %v1396 = vpow.pop %v1395
        %v1397 = vmul.f32 %v1360, 1.442695
        %v1398 = vpow.pop %v1397
        %v1399 = vmul.f32 %v1361, 1.442695
        %v1400 = vpow.pop %v1399
        %v1401 = vmul.f32 %v1362, 1.442695
        %v1402 = vpow.pop %v1401
        %v1403 = vmul.f32 %v1363, 1.442695
        %v1404 = vpow.pop %v1403
        %v1405 = vmul.f32 %v1364, 1.442695
        %v1406 = vpow.pop %v1405
        %v1407 = vmul.f32 %v1365, 1.442695
        %v1408 = vpow.pop %v1407
        %v1409 = vmul.f32 %v1366, 1.442695
        %v1410 = vpow.pop %v1409
        %v1411 = vmul.f32 %v1367, 1.442695
        %v1412 = vpow.pop %v1411
        %v1413 = vmul.f32 %v1368, 1.442695
        %v1414 = vpow.pop %v1413
        %v1415 = vmul.f32 %v1369, 1.442695
        %v1416 = vpow.pop %v1415
        %v1417 = vmul.f32 %v1370, 1.442695
        %v1418 = vpow.pop %v1417
        %v1419 = vmul.f32 %v1371, 1.442695
        %v1420 = vpow.pop %v1419
        %v1421 = vmul.f32 %v1372, 1.442695
        %v1422 = vpow.pop %v1421
        %v1423 = vmul.f32 %v1373, 1.442695
        %v1424 = vpow.pop %v1423
        %v1425 = vmul.f32 %v1374, 1.442695
        %v1426 = vpow.pop %v1425
        %v1427 = vmul.f32 %v1375, 1.442695
        %v1428 = vpow.pop %v1427
        %v1429 = vmul.f32 %v1376, 1.442695
        %v1430 = vpow.pop %v1429
        %v1431 = vmul.f32 %v1377, 1.442695
        %v1432 = vpow.pop %v1431
        %v1433 = vmul.f32 %v1378, 1.442695
        %v1434 = vpow.pop %v1433
        %v1435 = vmul.f32 %v1379, 1.442695
        %v1436 = vpow.pop %v1435
        %v1437 = vmul.f32 %v1380, 1.442695
        %v1438 = vpow.pop %v1437
        %v1439 = vmul.f32 %v1381, 1.442695
        %v1440 = vpow.pop %v1439
        %v1441 = vmul.f32 %v1382, 1.442695
        %v1442 = vpow.pop %v1441
        %v1443 = vmul.f32 %v1383, 1.442695
        %v1444 = vpow.pop %v1443
        %v1445 = vmul.f32 %v1384, 1.442695
        %v1446 = vpow.pop %v1445
        %v1447 = vmul.f32 %v1385, 1.442695
        %v1448 = vpow.pop %v1447
        %v1449 = vmul.f32 %v1386, 1.442695
        %v1450 = vpow.pop %v1449
        %v1451 = vadd.f32 %v1388, 1.0
        %v1452 = vadd.f32 %v1390, 1.0
        %v1453 = vadd.f32 %v1392, 1.0
        %v1454 = vadd.f32 %v1394, 1.0
        %v1455 = vadd.f32 %v1396, 1.0
        %v1456 = vadd.f32 %v1398, 1.0
        %v1457 = vadd.f32 %v1400, 1.0
        %v1458 = vadd.f32 %v1402, 1.0
        %v1459 = vadd.f32 %v1404, 1.0
        %v1460 = vadd.f32 %v1406, 1.0
        %v1461 = vadd.f32 %v1408, 1.0
        %v1462 = vadd.f32 %v1410, 1.0
        %v1463 = vadd.f32 %v1412, 1.0
        %v1464 = vadd.f32 %v1414, 1.0
        %v1465 = vadd.f32 %v1416, 1.0
        %v1466 = vadd.f32 %v1418, 1.0
        %v1467 = vadd.f32 %v1420, 1.0
        %v1468 = vadd.f32 %v1422, 1.0
        %v1469 = vadd.f32 %v1424, 1.0
        %v1470 = vadd.f32 %v1426, 1.0
        %v1471 = vadd.f32 %v1428, 1.0
        %v1472 = vadd.f32 %v1430, 1.0
        %v1473 = vadd.f32 %v1432, 1.0
        %v1474 = vadd.f32 %v1434, 1.0
        %v1475 = vadd.f32 %v1436, 1.0
        %v1476 = vadd.f32 %v1438, 1.0
        %v1477 = vadd.f32 %v1440, 1.0
        %v1478 = vadd.f32 %v1442, 1.0
        %v1479 = vadd.f32 %v1444, 1.0
        %v1480 = vadd.f32 %v1446, 1.0
        %v1481 = vadd.f32 %v1448, 1.0
        %v1482 = vadd.f32 %v1450, 1.0
        %v1483 = vrcp.pop %v1451
        %v1484 = vmul.f32 %v1451, %v1483
        %v1485 = vsub.f32 1.0, %v1484
        %v1486 = vmul.f32 %v1483, %v1485
        %v1487 = vadd.f32 %v1483, %v1486
        %vm1488 = vweird.f32 %v1451
        %vm1489 = vweird.f32 %v1483
        %vm1490 = vmor %vm1488, %vm1489
        %v1491 = vsel %vm1490, %v1483, %v1487
        %v1492 = vand.u32 2147483647, %v1451
        %vm1493 = vcmp.eq.f32.partialorder %v1492, 8.507059e+37
        %v1494 = vand.u32 %v1451, 2147483648
        %v1495 = vor.u32 1.1754944e-38, %v1494
        %v1496 = vsel %vm1493, %v1495, %v1491
        %v1497 = vmul.f32 1.0, %v1496
        %v1498 = vrcp.pop %v1452
        %v1499 = vmul.f32 %v1452, %v1498
        %v1500 = vsub.f32 1.0, %v1499
        %v1501 = vmul.f32 %v1498, %v1500
        %v1502 = vadd.f32 %v1498, %v1501
        %vm1503 = vweird.f32 %v1452
        %vm1504 = vweird.f32 %v1498
        %vm1505 = vmor %vm1503, %vm1504
        %v1506 = vsel %vm1505, %v1498, %v1502
        %v1507 = vand.u32 2147483647, %v1452
        %vm1508 = vcmp.eq.f32.partialorder %v1507, 8.507059e+37
        %v1509 = vand.u32 %v1452, 2147483648
        %v1510 = vor.u32 1.1754944e-38, %v1509
        %v1511 = vsel %vm1508, %v1510, %v1506
        %v1512 = vmul.f32 1.0, %v1511
        %v1513 = vrcp.pop %v1453
        %v1514 = vmul.f32 %v1453, %v1513
        %v1515 = vsub.f32 1.0, %v1514
        %v1516 = vmul.f32 %v1513, %v1515
        %v1517 = vadd.f32 %v1513, %v1516
        %vm1518 = vweird.f32 %v1453
        %vm1519 = vweird.f32 %v1513
        %vm1520 = vmor %vm1518, %vm1519
        %v1521 = vsel %vm1520, %v1513, %v1517
        %v1522 = vand.u32 2147483647, %v1453
        %vm1523 = vcmp.eq.f32.partialorder %v1522, 8.507059e+37
        %v1524 = vand.u32 %v1453, 2147483648
        %v1525 = vor.u32 1.1754944e-38, %v1524
        %v1526 = vsel %vm1523, %v1525, %v1521
        %v1527 = vmul.f32 1.0, %v1526
        %v1528 = vrcp.pop %v1454
        %v1529 = vmul.f32 %v1454, %v1528
        %v1530 = vsub.f32 1.0, %v1529
        %v1531 = vmul.f32 %v1528, %v1530
        %v1532 = vadd.f32 %v1528, %v1531
        %vm1533 = vweird.f32 %v1454
        %vm1534 = vweird.f32 %v1528
        %vm1535 = vmor %vm1533, %vm1534
        %v1536 = vsel %vm1535, %v1528, %v1532
        %v1537 = vand.u32 2147483647, %v1454
        %vm1538 = vcmp.eq.f32.partialorder %v1537, 8.507059e+37
        %v1539 = vand.u32 %v1454, 2147483648
        %v1540 = vor.u32 1.1754944e-38, %v1539
        %v1541 = vsel %vm1538, %v1540, %v1536
        %v1542 = vmul.f32 1.0, %v1541
        %v1543 = vrcp.pop %v1455
        %v1544 = vmul.f32 %v1455, %v1543
        %v1545 = vsub.f32 1.0, %v1544
        %v1546 = vmul.f32 %v1543, %v1545
        %v1547 = vadd.f32 %v1543, %v1546
        %vm1548 = vweird.f32 %v1455
        %vm1549 = vweird.f32 %v1543
        %vm1550 = vmor %vm1548, %vm1549
        %v1551 = vsel %vm1550, %v1543, %v1547
        %v1552 = vand.u32 2147483647, %v1455
        %vm1553 = vcmp.eq.f32.partialorder %v1552, 8.507059e+37
        %v1554 = vand.u32 %v1455, 2147483648
        %v1555 = vor.u32 1.1754944e-38, %v1554
        %v1556 = vsel %vm1553, %v1555, %v1551
        %v1557 = vmul.f32 1.0, %v1556
        %v1558 = vrcp.pop %v1456
        %v1559 = vmul.f32 %v1456, %v1558
        %v1560 = vsub.f32 1.0, %v1559
        %v1561 = vmul.f32 %v1558, %v1560
        %v1562 = vadd.f32 %v1558, %v1561
        %vm1563 = vweird.f32 %v1456
        %vm1564 = vweird.f32 %v1558
        %vm1565 = vmor %vm1563, %vm1564
        %v1566 = vsel %vm1565, %v1558, %v1562
        %v1567 = vand.u32 2147483647, %v1456
        %vm1568 = vcmp.eq.f32.partialorder %v1567, 8.507059e+37
        %v1569 = vand.u32 %v1456, 2147483648
        %v1570 = vor.u32 1.1754944e-38, %v1569
        %v1571 = vsel %vm1568, %v1570, %v1566
        %v1572 = vmul.f32 1.0, %v1571
        %v1573 = vrcp.pop %v1457
        %v1574 = vmul.f32 %v1457, %v1573
        %v1575 = vsub.f32 1.0, %v1574
        %v1576 = vmul.f32 %v1573, %v1575
        %v1577 = vadd.f32 %v1573, %v1576
        %vm1578 = vweird.f32 %v1457
        %vm1579 = vweird.f32 %v1573
        %vm1580 = vmor %vm1578, %vm1579
        %v1581 = vsel %vm1580, %v1573, %v1577
        %v1582 = vand.u32 2147483647, %v1457
        %vm1583 = vcmp.eq.f32.partialorder %v1582, 8.507059e+37
        %v1584 = vand.u32 %v1457, 2147483648
        %v1585 = vor.u32 1.1754944e-38, %v1584
        %v1586 = vsel %vm1583, %v1585, %v1581
        %v1587 = vmul.f32 1.0, %v1586
        %v1588 = vrcp.pop %v1458
        %v1589 = vmul.f32 %v1458, %v1588
        %v1590 = vsub.f32 1.0, %v1589
        %v1591 = vmul.f32 %v1588, %v1590
        %v1592 = vadd.f32 %v1588, %v1591
        %vm1593 = vweird.f32 %v1458
        %vm1594 = vweird.f32 %v1588
        %vm1595 = vmor %vm1593, %vm1594
        %v1596 = vsel %vm1595, %v1588, %v1592
        %v1597 = vand.u32 2147483647, %v1458
        %vm1598 = vcmp.eq.f32.partialorder %v1597, 8.507059e+37
        %v1599 = vand.u32 %v1458, 2147483648
        %v1600 = vor.u32 1.1754944e-38, %v1599
        %v1601 = vsel %vm1598, %v1600, %v1596
        %v1602 = vmul.f32 1.0, %v1601
        %v1603 = vrcp.pop %v1459
        %v1604 = vmul.f32 %v1459, %v1603
        %v1605 = vsub.f32 1.0, %v1604
        %v1606 = vmul.f32 %v1603, %v1605
        %v1607 = vadd.f32 %v1603, %v1606
        %vm1608 = vweird.f32 %v1459
        %vm1609 = vweird.f32 %v1603
        %vm1610 = vmor %vm1608, %vm1609
        %v1611 = vsel %vm1610, %v1603, %v1607
        %v1612 = vand.u32 2147483647, %v1459
        %vm1613 = vcmp.eq.f32.partialorder %v1612, 8.507059e+37
        %v1614 = vand.u32 %v1459, 2147483648
        %v1615 = vor.u32 1.1754944e-38, %v1614
        %v1616 = vsel %vm1613, %v1615, %v1611
        %v1617 = vmul.f32 1.0, %v1616
        %v1618 = vrcp.pop %v1460
        %v1619 = vmul.f32 %v1460, %v1618
        %v1620 = vsub.f32 1.0, %v1619
        %v1621 = vmul.f32 %v1618, %v1620
        %v1622 = vadd.f32 %v1618, %v1621
        %vm1623 = vweird.f32 %v1460
        %vm1624 = vweird.f32 %v1618
        %vm1625 = vmor %vm1623, %vm1624
        %v1626 = vsel %vm1625, %v1618, %v1622
        %v1627 = vand.u32 2147483647, %v1460
        %vm1628 = vcmp.eq.f32.partialorder %v1627, 8.507059e+37
        %v1629 = vand.u32 %v1460, 2147483648
        %v1630 = vor.u32 1.1754944e-38, %v1629
        %v1631 = vsel %vm1628, %v1630, %v1626
        %v1632 = vmul.f32 1.0, %v1631
        %v1633 = vrcp.pop %v1461
        %v1634 = vmul.f32 %v1461, %v1633
        %v1635 = vsub.f32 1.0, %v1634
        %v1636 = vmul.f32 %v1633, %v1635
        %v1637 = vadd.f32 %v1633, %v1636
        %vm1638 = vweird.f32 %v1461
        %vm1639 = vweird.f32 %v1633
        %vm1640 = vmor %vm1638, %vm1639
        %v1641 = vsel %vm1640, %v1633, %v1637
        %v1642 = vand.u32 2147483647, %v1461
        %vm1643 = vcmp.eq.f32.partialorder %v1642, 8.507059e+37
        %v1644 = vand.u32 %v1461, 2147483648
        %v1645 = vor.u32 1.1754944e-38, %v1644
        %v1646 = vsel %vm1643, %v1645, %v1641
        %v1647 = vmul.f32 1.0, %v1646
        %v1648 = vrcp.pop %v1462
        %v1649 = vmul.f32 %v1462, %v1648
        %v1650 = vsub.f32 1.0, %v1649
        %v1651 = vmul.f32 %v1648, %v1650
        %v1652 = vadd.f32 %v1648, %v1651
        %vm1653 = vweird.f32 %v1462
        %vm1654 = vweird.f32 %v1648
        %vm1655 = vmor %vm1653, %vm1654
        %v1656 = vsel %vm1655, %v1648, %v1652
        %v1657 = vand.u32 2147483647, %v1462
        %vm1658 = vcmp.eq.f32.partialorder %v1657, 8.507059e+37
        %v1659 = vand.u32 %v1462, 2147483648
        %v1660 = vor.u32 1.1754944e-38, %v1659
        %v1661 = vsel %vm1658, %v1660, %v1656
        %v1662 = vmul.f32 1.0, %v1661
        %v1663 = vrcp.pop %v1463
        %v1664 = vmul.f32 %v1463, %v1663
        %v1665 = vsub.f32 1.0, %v1664
        %v1666 = vmul.f32 %v1663, %v1665
        %v1667 = vadd.f32 %v1663, %v1666
        %vm1668 = vweird.f32 %v1463
        %vm1669 = vweird.f32 %v1663
        %vm1670 = vmor %vm1668, %vm1669
        %v1671 = vsel %vm1670, %v1663, %v1667
        %v1672 = vand.u32 2147483647, %v1463
        %vm1673 = vcmp.eq.f32.partialorder %v1672, 8.507059e+37
        %v1674 = vand.u32 %v1463, 2147483648
        %v1675 = vor.u32 1.1754944e-38, %v1674
        %v1676 = vsel %vm1673, %v1675, %v1671
        %v1677 = vmul.f32 1.0, %v1676
        %v1678 = vrcp.pop %v1464
        %v1679 = vmul.f32 %v1464, %v1678
        %v1680 = vsub.f32 1.0, %v1679
        %v1681 = vmul.f32 %v1678, %v1680
        %v1682 = vadd.f32 %v1678, %v1681
        %vm1683 = vweird.f32 %v1464
        %vm1684 = vweird.f32 %v1678
        %vm1685 = vmor %vm1683, %vm1684
        %v1686 = vsel %vm1685, %v1678, %v1682
        %v1687 = vand.u32 2147483647, %v1464
        %vm1688 = vcmp.eq.f32.partialorder %v1687, 8.507059e+37
        %v1689 = vand.u32 %v1464, 2147483648
        %v1690 = vor.u32 1.1754944e-38, %v1689
        %v1691 = vsel %vm1688, %v1690, %v1686
        %v1692 = vmul.f32 1.0, %v1691
        %v1693 = vrcp.pop %v1465
        %v1694 = vmul.f32 %v1465, %v1693
        %v1695 = vsub.f32 1.0, %v1694
        %v1696 = vmul.f32 %v1693, %v1695
        %v1697 = vadd.f32 %v1693, %v1696
        %vm1698 = vweird.f32 %v1465
        %vm1699 = vweird.f32 %v1693
        %vm1700 = vmor %vm1698, %vm1699
        %v1701 = vsel %vm1700, %v1693, %v1697
        %v1702 = vand.u32 2147483647, %v1465
        %vm1703 = vcmp.eq.f32.partialorder %v1702, 8.507059e+37
        %v1704 = vand.u32 %v1465, 2147483648
        %v1705 = vor.u32 1.1754944e-38, %v1704
        %v1706 = vsel %vm1703, %v1705, %v1701
        %v1707 = vmul.f32 1.0, %v1706
        %v1708 = vrcp.pop %v1466
        %v1709 = vmul.f32 %v1466, %v1708
        %v1710 = vsub.f32 1.0, %v1709
        %v1711 = vmul.f32 %v1708, %v1710
        %v1712 = vadd.f32 %v1708, %v1711
        %vm1713 = vweird.f32 %v1466
        %vm1714 = vweird.f32 %v1708
        %vm1715 = vmor %vm1713, %vm1714
        %v1716 = vsel %vm1715, %v1708, %v1712
        %v1717 = vand.u32 2147483647, %v1466
        %vm1718 = vcmp.eq.f32.partialorder %v1717, 8.507059e+37
        %v1719 = vand.u32 %v1466, 2147483648
        %v1720 = vor.u32 1.1754944e-38, %v1719
        %v1721 = vsel %vm1718, %v1720, %v1716
        %v1722 = vmul.f32 1.0, %v1721
        %v1723 = vrcp.pop %v1467
        %v1724 = vmul.f32 %v1467, %v1723
        %v1725 = vsub.f32 1.0, %v1724
        %v1726 = vmul.f32 %v1723, %v1725
        %v1727 = vadd.f32 %v1723, %v1726
        %vm1728 = vweird.f32 %v1467
        %vm1729 = vweird.f32 %v1723
        %vm1730 = vmor %vm1728, %vm1729
        %v1731 = vsel %vm1730, %v1723, %v1727
        %v1732 = vand.u32 2147483647, %v1467
        %vm1733 = vcmp.eq.f32.partialorder %v1732, 8.507059e+37
        %v1734 = vand.u32 %v1467, 2147483648
        %v1735 = vor.u32 1.1754944e-38, %v1734
        %v1736 = vsel %vm1733, %v1735, %v1731
        %v1737 = vmul.f32 1.0, %v1736
        %v1738 = vrcp.pop %v1468
        %v1739 = vmul.f32 %v1468, %v1738
        %v1740 = vsub.f32 1.0, %v1739
        %v1741 = vmul.f32 %v1738, %v1740
        %v1742 = vadd.f32 %v1738, %v1741
        %vm1743 = vweird.f32 %v1468
        %vm1744 = vweird.f32 %v1738
        %vm1745 = vmor %vm1743, %vm1744
        %v1746 = vsel %vm1745, %v1738, %v1742
        %v1747 = vand.u32 2147483647, %v1468
        %vm1748 = vcmp.eq.f32.partialorder %v1747, 8.507059e+37
        %v1749 = vand.u32 %v1468, 2147483648
        %v1750 = vor.u32 1.1754944e-38, %v1749
        %v1751 = vsel %vm1748, %v1750, %v1746
        %v1752 = vmul.f32 1.0, %v1751
        %v1753 = vrcp.pop %v1469
        %v1754 = vmul.f32 %v1469, %v1753
        %v1755 = vsub.f32 1.0, %v1754
        %v1756 = vmul.f32 %v1753, %v1755
        %v1757 = vadd.f32 %v1753, %v1756
        %vm1758 = vweird.f32 %v1469
        %vm1759 = vweird.f32 %v1753
        %vm1760 = vmor %vm1758, %vm1759
        %v1761 = vsel %vm1760, %v1753, %v1757
        %v1762 = vand.u32 2147483647, %v1469
        %vm1763 = vcmp.eq.f32.partialorder %v1762, 8.507059e+37
        %v1764 = vand.u32 %v1469, 2147483648
        %v1765 = vor.u32 1.1754944e-38, %v1764
        %v1766 = vsel %vm1763, %v1765, %v1761
        %v1767 = vmul.f32 1.0, %v1766
        %v1768 = vrcp.pop %v1470
        %v1769 = vmul.f32 %v1470, %v1768
        %v1770 = vsub.f32 1.0, %v1769
        %v1771 = vmul.f32 %v1768, %v1770
        %v1772 = vadd.f32 %v1768, %v1771
        %vm1773 = vweird.f32 %v1470
        %vm1774 = vweird.f32 %v1768
        %vm1775 = vmor %vm1773, %vm1774
        %v1776 = vsel %vm1775, %v1768, %v1772
        %v1777 = vand.u32 2147483647, %v1470
        %vm1778 = vcmp.eq.f32.partialorder %v1777, 8.507059e+37
        %v1779 = vand.u32 %v1470, 2147483648
        %v1780 = vor.u32 1.1754944e-38, %v1779
        %v1781 = vsel %vm1778, %v1780, %v1776
        %v1782 = vmul.f32 1.0, %v1781
        %v1783 = vrcp.pop %v1471
        %v1784 = vmul.f32 %v1471, %v1783
        %v1785 = vsub.f32 1.0, %v1784
        %v1786 = vmul.f32 %v1783, %v1785
        %v1787 = vadd.f32 %v1783, %v1786
        %vm1788 = vweird.f32 %v1471
        %vm1789 = vweird.f32 %v1783
        %vm1790 = vmor %vm1788, %vm1789
        %v1791 = vsel %vm1790, %v1783, %v1787
        %v1792 = vand.u32 2147483647, %v1471
        %vm1793 = vcmp.eq.f32.partialorder %v1792, 8.507059e+37
        %v1794 = vand.u32 %v1471, 2147483648
        %v1795 = vor.u32 1.1754944e-38, %v1794
        %v1796 = vsel %vm1793, %v1795, %v1791
        %v1797 = vmul.f32 1.0, %v1796
        %v1798 = vrcp.pop %v1472
        %v1799 = vmul.f32 %v1472, %v1798
        %v1800 = vsub.f32 1.0, %v1799
        %v1801 = vmul.f32 %v1798, %v1800
        %v1802 = vadd.f32 %v1798, %v1801
        %vm1803 = vweird.f32 %v1472
        %vm1804 = vweird.f32 %v1798
        %vm1805 = vmor %vm1803, %vm1804
        %v1806 = vsel %vm1805, %v1798, %v1802
        %v1807 = vand.u32 2147483647, %v1472
        %vm1808 = vcmp.eq.f32.partialorder %v1807, 8.507059e+37
        %v1809 = vand.u32 %v1472, 2147483648
        %v1810 = vor.u32 1.1754944e-38, %v1809
        %v1811 = vsel %vm1808, %v1810, %v1806
        %v1812 = vmul.f32 1.0, %v1811
        %v1813 = vrcp.pop %v1473
        %v1814 = vmul.f32 %v1473, %v1813
        %v1815 = vsub.f32 1.0, %v1814
        %v1816 = vmul.f32 %v1813, %v1815
        %v1817 = vadd.f32 %v1813, %v1816
        %vm1818 = vweird.f32 %v1473
        %vm1819 = vweird.f32 %v1813
        %vm1820 = vmor %vm1818, %vm1819
        %v1821 = vsel %vm1820, %v1813, %v1817
        %v1822 = vand.u32 2147483647, %v1473
        %vm1823 = vcmp.eq.f32.partialorder %v1822, 8.507059e+37
        %v1824 = vand.u32 %v1473, 2147483648
        %v1825 = vor.u32 1.1754944e-38, %v1824
        %v1826 = vsel %vm1823, %v1825, %v1821
        %v1827 = vmul.f32 1.0, %v1826
        %v1828 = vrcp.pop %v1474
        %v1829 = vmul.f32 %v1474, %v1828
        %v1830 = vsub.f32 1.0, %v1829
        %v1831 = vmul.f32 %v1828, %v1830
        %v1832 = vadd.f32 %v1828, %v1831
        %vm1833 = vweird.f32 %v1474
        %vm1834 = vweird.f32 %v1828
        %vm1835 = vmor %vm1833, %vm1834
        %v1836 = vsel %vm1835, %v1828, %v1832
        %v1837 = vand.u32 2147483647, %v1474
        %vm1838 = vcmp.eq.f32.partialorder %v1837, 8.507059e+37
        %v1839 = vand.u32 %v1474, 2147483648
        %v1840 = vor.u32 1.1754944e-38, %v1839
        %v1841 = vsel %vm1838, %v1840, %v1836
        %v1842 = vmul.f32 1.0, %v1841
        %v1843 = vrcp.pop %v1475
        %v1844 = vmul.f32 %v1475, %v1843
        %v1845 = vsub.f32 1.0, %v1844
        %v1846 = vmul.f32 %v1843, %v1845
        %v1847 = vadd.f32 %v1843, %v1846
        %vm1848 = vweird.f32 %v1475
        %vm1849 = vweird.f32 %v1843
        %vm1850 = vmor %vm1848, %vm1849
        %v1851 = vsel %vm1850, %v1843, %v1847
        %v1852 = vand.u32 2147483647, %v1475
        %vm1853 = vcmp.eq.f32.partialorder %v1852, 8.507059e+37
        %v1854 = vand.u32 %v1475, 2147483648
        %v1855 = vor.u32 1.1754944e-38, %v1854
        %v1856 = vsel %vm1853, %v1855, %v1851
        %v1857 = vmul.f32 1.0, %v1856
        %v1858 = vrcp.pop %v1476
        %v1859 = vmul.f32 %v1476, %v1858
        %v1860 = vsub.f32 1.0, %v1859
        %v1861 = vmul.f32 %v1858, %v1860
        %v1862 = vadd.f32 %v1858, %v1861
        %vm1863 = vweird.f32 %v1476
        %vm1864 = vweird.f32 %v1858
        %vm1865 = vmor %vm1863, %vm1864
        %v1866 = vsel %vm1865, %v1858, %v1862
        %v1867 = vand.u32 2147483647, %v1476
        %vm1868 = vcmp.eq.f32.partialorder %v1867, 8.507059e+37
        %v1869 = vand.u32 %v1476, 2147483648
        %v1870 = vor.u32 1.1754944e-38, %v1869
        %v1871 = vsel %vm1868, %v1870, %v1866
        %v1872 = vmul.f32 1.0, %v1871
        %v1873 = vrcp.pop %v1477
        %v1874 = vmul.f32 %v1477, %v1873
        %v1875 = vsub.f32 1.0, %v1874
        %v1876 = vmul.f32 %v1873, %v1875
        %v1877 = vadd.f32 %v1873, %v1876
        %vm1878 = vweird.f32 %v1477
        %vm1879 = vweird.f32 %v1873
        %vm1880 = vmor %vm1878, %vm1879
        %v1881 = vsel %vm1880, %v1873, %v1877
        %v1882 = vand.u32 2147483647, %v1477
        %vm1883 = vcmp.eq.f32.partialorder %v1882, 8.507059e+37
        %v1884 = vand.u32 %v1477, 2147483648
        %v1885 = vor.u32 1.1754944e-38, %v1884
        %v1886 = vsel %vm1883, %v1885, %v1881
        %v1887 = vmul.f32 1.0, %v1886
        %v1888 = vrcp.pop %v1478
        %v1889 = vmul.f32 %v1478, %v1888
        %v1890 = vsub.f32 1.0, %v1889
        %v1891 = vmul.f32 %v1888, %v1890
        %v1892 = vadd.f32 %v1888, %v1891
        %vm1893 = vweird.f32 %v1478
        %vm1894 = vweird.f32 %v1888
        %vm1895 = vmor %vm1893, %vm1894
        %v1896 = vsel %vm1895, %v1888, %v1892
        %v1897 = vand.u32 2147483647, %v1478
        %vm1898 = vcmp.eq.f32.partialorder %v1897, 8.507059e+37
        %v1899 = vand.u32 %v1478, 2147483648
        %v1900 = vor.u32 1.1754944e-38, %v1899
        %v1901 = vsel %vm1898, %v1900, %v1896
        %v1902 = vmul.f32 1.0, %v1901
        %v1903 = vrcp.pop %v1479
        %v1904 = vmul.f32 %v1479, %v1903
        %v1905 = vsub.f32 1.0, %v1904
        %v1906 = vmul.f32 %v1903, %v1905
        %v1907 = vadd.f32 %v1903, %v1906
        %vm1908 = vweird.f32 %v1479
        %vm1909 = vweird.f32 %v1903
        %vm1910 = vmor %vm1908, %vm1909
        %v1911 = vsel %vm1910, %v1903, %v1907
        %v1912 = vand.u32 2147483647, %v1479
        %vm1913 = vcmp.eq.f32.partialorder %v1912, 8.507059e+37
        %v1914 = vand.u32 %v1479, 2147483648
        %v1915 = vor.u32 1.1754944e-38, %v1914
        %v1916 = vsel %vm1913, %v1915, %v1911
        %v1917 = vmul.f32 1.0, %v1916
        %v1918 = vrcp.pop %v1480
        %v1919 = vmul.f32 %v1480, %v1918
        %v1920 = vsub.f32 1.0, %v1919
        %v1921 = vmul.f32 %v1918, %v1920
        %v1922 = vadd.f32 %v1918, %v1921
        %vm1923 = vweird.f32 %v1480
        %vm1924 = vweird.f32 %v1918
        %vm1925 = vmor %vm1923, %vm1924
        %v1926 = vsel %vm1925, %v1918, %v1922
        %v1927 = vand.u32 2147483647, %v1480
        %vm1928 = vcmp.eq.f32.partialorder %v1927, 8.507059e+37
        %v1929 = vand.u32 %v1480, 2147483648
        %v1930 = vor.u32 1.1754944e-38, %v1929
        %v1931 = vsel %vm1928, %v1930, %v1926
        %v1932 = vmul.f32 1.0, %v1931
        %v1933 = vrcp.pop %v1481
        %v1934 = vmul.f32 %v1481, %v1933
        %v1935 = vsub.f32 1.0, %v1934
        %v1936 = vmul.f32 %v1933, %v1935
        %v1937 = vadd.f32 %v1933, %v1936
        %vm1938 = vweird.f32 %v1481
        %vm1939 = vweird.f32 %v1933
        %vm1940 = vmor %vm1938, %vm1939
        %v1941 = vsel %vm1940, %v1933, %v1937
        %v1942 = vand.u32 2147483647, %v1481
        %vm1943 = vcmp.eq.f32.partialorder %v1942, 8.507059e+37
        %v1944 = vand.u32 %v1481, 2147483648
        %v1945 = vor.u32 1.1754944e-38, %v1944
        %v1946 = vsel %vm1943, %v1945, %v1941
        %v1947 = vmul.f32 1.0, %v1946
        %v1948 = vrcp.pop %v1482
        %v1949 = vmul.f32 %v1482, %v1948
        %v1950 = vsub.f32 1.0, %v1949
        %v1951 = vmul.f32 %v1948, %v1950
        %v1952 = vadd.f32 %v1948, %v1951
        %vm1953 = vweird.f32 %v1482
        %vm1954 = vweird.f32 %v1948
        %vm1955 = vmor %vm1953, %vm1954
        %v1956 = vsel %vm1955, %v1948, %v1952
        %v1957 = vand.u32 2147483647, %v1482
        %vm1958 = vcmp.eq.f32.partialorder %v1957, 8.507059e+37
        %v1959 = vand.u32 %v1482, 2147483648
        %v1960 = vor.u32 1.1754944e-38, %v1959
        %v1961 = vsel %vm1958, %v1960, %v1956
        %v1962 = vmul.f32 1.0, %v1961
        %vm1963 = vcmp.lt.f32.partialorder %v1129, %v1497
        %vm1964 = vcmp.lt.f32.partialorder %v1130, %v1512
        %vm1965 = vcmp.lt.f32.partialorder %v1131, %v1527
        %vm1966 = vcmp.lt.f32.partialorder %v1132, %v1542
        %vm1967 = vcmp.lt.f32.partialorder %v1133, %v1557
        %vm1968 = vcmp.lt.f32.partialorder %v1134, %v1572
        %vm1969 = vcmp.lt.f32.partialorder %v1135, %v1587
        %vm1970 = vcmp.lt.f32.partialorder %v1136, %v1602
        %vm1971 = vcmp.lt.f32.partialorder %v1137, %v1617
        %vm1972 = vcmp.lt.f32.partialorder %v1138, %v1632
        %vm1973 = vcmp.lt.f32.partialorder %v1139, %v1647
        %vm1974 = vcmp.lt.f32.partialorder %v1140, %v1662
        %vm1975 = vcmp.lt.f32.partialorder %v1141, %v1677
        %vm1976 = vcmp.lt.f32.partialorder %v1142, %v1692
        %vm1977 = vcmp.lt.f32.partialorder %v1143, %v1707
        %vm1978 = vcmp.lt.f32.partialorder %v1144, %v1722
        %vm1979 = vcmp.lt.f32.partialorder %v1145, %v1737
        %vm1980 = vcmp.lt.f32.partialorder %v1146, %v1752
        %vm1981 = vcmp.lt.f32.partialorder %v1147, %v1767
        %vm1982 = vcmp.lt.f32.partialorder %v1148, %v1782
        %vm1983 = vcmp.lt.f32.partialorder %v1149, %v1797
        %vm1984 = vcmp.lt.f32.partialorder %v1150, %v1812
        %vm1985 = vcmp.lt.f32.partialorder %v1151, %v1827
        %vm1986 = vcmp.lt.f32.partialorder %v1152, %v1842
        %vm1987 = vcmp.lt.f32.partialorder %v1153, %v1857
        %vm1988 = vcmp.lt.f32.partialorder %v1154, %v1872
        %vm1989 = vcmp.lt.f32.partialorder %v1155, %v1887
        %vm1990 = vcmp.lt.f32.partialorder %v1156, %v1902
        %vm1991 = vcmp.lt.f32.partialorder %v1157, %v1917
        %vm1992 = vcmp.lt.f32.partialorder %v1158, %v1932
        %vm1993 = vcmp.lt.f32.partialorder %v1159, %v1947
        %vm1994 = vcmp.lt.f32.partialorder %v1160, %v1962
        %v1995 = vsel %vm1963, 1, 0
        %v1996 = vsel %vm1964, 1, 0
        %v1997 = vsel %vm1965, 1, 0
        %v1998 = vsel %vm1966, 1, 0
        %v1999 = vsel %vm1967, 1, 0
        %v2000 = vsel %vm1968, 1, 0
        %v2001 = vsel %vm1969, 1, 0
        %v2002 = vsel %vm1970, 1, 0
        %v2003 = vsel %vm1971, 1, 0
        %v2004 = vsel %vm1972, 1, 0
        %v2005 = vsel %vm1973, 1, 0
        %v2006 = vsel %vm1974, 1, 0
        %v2007 = vsel %vm1975, 1, 0
        %v2008 = vsel %vm1976, 1, 0
        %v2009 = vsel %vm1977, 1, 0
        %v2010 = vsel %vm1978, 1, 0
        %v2011 = vsel %vm1979, 1, 0
        %v2012 = vsel %vm1980, 1, 0
        %v2013 = vsel %vm1981, 1, 0
        %v2014 = vsel %vm1982, 1, 0
        %v2015 = vsel %vm1983, 1, 0
        %v2016 = vsel %vm1984, 1, 0
        %v2017 = vsel %vm1985, 1, 0
        %v2018 = vsel %vm1986, 1, 0
        %v2019 = vsel %vm1987, 1, 0
        %v2020 = vsel %vm1988, 1, 0
        %v2021 = vsel %vm1989, 1, 0
        %v2022 = vsel %vm1990, 1, 0
        %v2023 = vsel %vm1991, 1, 0
        %v2024 = vsel %vm1992, 1, 0
        %v2025 = vsel %vm1993, 1, 0
        %v2026 = vsel %vm1994, 1, 0
        %v2027 = vcvt.s32.f32 %v1995
        %v2028 = vcvt.s32.f32 %v1996
        %v2029 = vcvt.s32.f32 %v1997
        %v2030 = vcvt.s32.f32 %v1998
        %v2031 = vcvt.s32.f32 %v1999
        %v2032 = vcvt.s32.f32 %v2000
        %v2033 = vcvt.s32.f32 %v2001
        %v2034 = vcvt.s32.f32 %v2002
        %v2035 = vcvt.s32.f32 %v2003
        %v2036 = vcvt.s32.f32 %v2004
        %v2037 = vcvt.s32.f32 %v2005
        %v2038 = vcvt.s32.f32 %v2006
        %v2039 = vcvt.s32.f32 %v2007
        %v2040 = vcvt.s32.f32 %v2008
        %v2041 = vcvt.s32.f32 %v2009
        %v2042 = vcvt.s32.f32 %v2010
        %v2043 = vcvt.s32.f32 %v2011
        %v2044 = vcvt.s32.f32 %v2012
        %v2045 = vcvt.s32.f32 %v2013
        %v2046 = vcvt.s32.f32 %v2014
        %v2047 = vcvt.s32.f32 %v2015
        %v2048 = vcvt.s32.f32 %v2016
        %v2049 = vcvt.s32.f32 %v2017
        %v2050 = vcvt.s32.f32 %v2018
        %v2051 = vcvt.s32.f32 %v2019
        %v2052 = vcvt.s32.f32 %v2020
        %v2053 = vcvt.s32.f32 %v2021
        %v2054 = vcvt.s32.f32 %v2022
        %v2055 = vcvt.s32.f32 %v2023
        %v2056 = vcvt.s32.f32 %v2024
        %v2057 = vcvt.s32.f32 %v2025
        %v2058 = vcvt.s32.f32 %v2026
        %v2059 = vpack.c.bf16 %v2029, %v2027
        %v2060 = vpack.c.bf16 %v2030, %v2028
        %v2061 = vpack.c.bf16 %v2033, %v2031
        %v2062 = vpack.c.bf16 %v2034, %v2032
        %v2063 = vpack.c.bf16 %v2037, %v2035
        %v2064 = vpack.c.bf16 %v2038, %v2036
        %v2065 = vpack.c.bf16 %v2041, %v2039
        %v2066 = vpack.c.bf16 %v2042, %v2040
        %v2067 = vpack.c.bf16 %v2045, %v2043
        %v2068 = vpack.c.bf16 %v2046, %v2044
        %v2069 = vpack.c.bf16 %v2049, %v2047
        %v2070 = vpack.c.bf16 %v2050, %v2048
        %v2071 = vpack.c.bf16 %v2053, %v2051
        %v2072 = vpack.c.bf16 %v2054, %v2052
        %v2073 = vpack.c.bf16 %v2057, %v2055
        %v2074 = vpack.c.bf16 %v2058, %v2056
        %s2075 = scalar_lea.vmem %s413, 128 [#allocation8]
        %v2076 = vld [vmem:[%s2075] sm:$0xff]
        %v2077 = vld [vmem:[%s2075 + $0x8] sm:$0xff]
        %v2078 = vld [vmem:[%s2075 + $0x10] sm:$0xff]
        %v2079 = vld [vmem:[%s2075 + $0x18] sm:$0xff]
        %v2080 = vld [vmem:[%s2075 + $0x20] sm:$0xff]
        %v2081 = vld [vmem:[%s2075 + $0x28] sm:$0xff]
        %v2082 = vld [vmem:[%s2075 + $0x30] sm:$0xff]
        %v2083 = vld [vmem:[%s2075 + $0x38] sm:$0xff]
        %v2084 = vld [vmem:[%s2075 + $0x40] sm:$0xff]
        %v2085 = vld [vmem:[%s2075 + $0x48] sm:$0xff]
        %v2086 = vld [vmem:[%s2075 + $0x50] sm:$0xff]
        %v2087 = vld [vmem:[%s2075 + $0x58] sm:$0xff]
        %v2088 = vld [vmem:[%s2075 + $0x60] sm:$0xff]
        %v2089 = vld [vmem:[%s2075 + $0x68] sm:$0xff]
        %v2090 = vld [vmem:[%s2075 + $0x70] sm:$0xff]
        %v2091 = vld [vmem:[%s2075 + $0x78] sm:$0xff]
        %2092 = vmatpush.bf16.msra.mxu0 %v646
        %2093 = vmatpush.bf16.msra.mxu0 %v645
        %2094 = vmatpush.bf16.msra.mxu0 %v644
        %2095 = vmatpush.bf16.msra.mxu0 %v643
        %2096 = vmatpush.bf16.msra.mxu0 %v642
        %2097 = vmatpush.bf16.msra.mxu0 %v641
        %2098 = vmatpush.bf16.msra.mxu0 %v640
        %2099 = vmatpush.bf16.msra.mxu0 %v639
        %2100 = vmatmul.bf16.gmra.mxu0 %v2059
        %v2101 = vpop.f32.mrf.mxu0
        %v2102 = vadd.f32 %v471, %v2101
        %v2103 = vpop.f32.mrf.mxu0
        %v2104 = vadd.f32 %v471, %v2103
        %2105 = vmatmul.bf16.gmra.mxu0 %v2061
        %v2106 = vpop.f32.mrf.mxu0
        %v2107 = vadd.f32 %v471, %v2106
        %v2108 = vpop.f32.mrf.mxu0
        %v2109 = vadd.f32 %v471, %v2108
        %2110 = vmatmul.bf16.gmra.mxu0 %v2063
        %v2111 = vpop.f32.mrf.mxu0
        %v2112 = vadd.f32 %v471, %v2111
        %v2113 = vpop.f32.mrf.mxu0
        %v2114 = vadd.f32 %v471, %v2113
        %2115 = vmatmul.bf16.gmra.mxu0 %v2065
        %v2116 = vpop.f32.mrf.mxu0
        %v2117 = vadd.f32 %v471, %v2116
        %v2118 = vpop.f32.mrf.mxu0
        %v2119 = vadd.f32 %v471, %v2118
        %2120 = vmatmul.bf16.gmra.mxu0 %v2067
        %v2121 = vpop.f32.mrf.mxu0
        %v2122 = vadd.f32 %v471, %v2121
        %v2123 = vpop.f32.mrf.mxu0
        %v2124 = vadd.f32 %v471, %v2123
        %2125 = vmatmul.bf16.gmra.mxu0 %v2069
        %v2126 = vpop.f32.mrf.mxu0
        %v2127 = vadd.f32 %v471, %v2126
        %v2128 = vpop.f32.mrf.mxu0
        %v2129 = vadd.f32 %v471, %v2128
        %2130 = vmatmul.bf16.gmra.mxu0 %v2071
        %v2131 = vpop.f32.mrf.mxu0
        %v2132 = vadd.f32 %v471, %v2131
        %v2133 = vpop.f32.mrf.mxu0
        %v2134 = vadd.f32 %v471, %v2133
        %2135 = vmatmul.bf16.gmra.mxu0 %v2073
        %v2136 = vpop.f32.mrf.mxu0
        %v2137 = vadd.f32 %v471, %v2136
        %v2138 = vpop.f32.mrf.mxu0
        %v2139 = vadd.f32 %v471, %v2138
        %2140 = vdwg.mxu0
        %2141 = vmatpush.bf16.msra.mxu0 %v654
        %2142 = vmatpush.bf16.msra.mxu0 %v653
        %2143 = vmatpush.bf16.msra.mxu0 %v652
        %2144 = vmatpush.bf16.msra.mxu0 %v651
        %2145 = vmatpush.bf16.msra.mxu0 %v650
        %2146 = vmatpush.bf16.msra.mxu0 %v649
        %2147 = vmatpush.bf16.msra.mxu0 %v648
        %2148 = vmatpush.bf16.msra.mxu0 %v647
        %2149 = vmatmul.bf16.gmra.mxu0 %v2060
        %v2150 = vpop.f32.mrf.mxu0
        %v2151 = vadd.f32 %v2102, %v2150
        %v2152 = vpop.f32.mrf.mxu0
        %v2153 = vadd.f32 %v2104, %v2152
        %2154 = vmatmul.bf16.gmra.mxu0 %v2062
        %v2155 = vpop.f32.mrf.mxu0
        %v2156 = vadd.f32 %v2107, %v2155
        %v2157 = vpop.f32.mrf.mxu0
        %v2158 = vadd.f32 %v2109, %v2157
        %2159 = vmatmul.bf16.gmra.mxu0 %v2064
        %v2160 = vpop.f32.mrf.mxu0
        %v2161 = vadd.f32 %v2112, %v2160
        %v2162 = vpop.f32.mrf.mxu0
        %v2163 = vadd.f32 %v2114, %v2162
        %2164 = vmatmul.bf16.gmra.mxu0 %v2066
        %v2165 = vpop.f32.mrf.mxu0
        %v2166 = vadd.f32 %v2117, %v2165
        %v2167 = vpop.f32.mrf.mxu0
        %v2168 = vadd.f32 %v2119, %v2167
        %2169 = vmatmul.bf16.gmra.mxu0 %v2068
        %v2170 = vpop.f32.mrf.mxu0
        %v2171 = vadd.f32 %v2122, %v2170
        %v2172 = vpop.f32.mrf.mxu0
        %v2173 = vadd.f32 %v2124, %v2172
        %2174 = vmatmul.bf16.gmra.mxu0 %v2070
        %v2175 = vpop.f32.mrf.mxu0
        %v2176 = vadd.f32 %v2127, %v2175
        %v2177 = vpop.f32.mrf.mxu0
        %v2178 = vadd.f32 %v2129, %v2177
        %2179 = vmatmul.bf16.gmra.mxu0 %v2072
        %v2180 = vpop.f32.mrf.mxu0
        %v2181 = vadd.f32 %v2132, %v2180
        %v2182 = vpop.f32.mrf.mxu0
        %v2183 = vadd.f32 %v2134, %v2182
        %2184 = vmatmul.bf16.gmra.mxu0 %v2074
        %v2185 = vpop.f32.mrf.mxu0
        %v2186 = vadd.f32 %v2137, %v2185
        %v2187 = vpop.f32.mrf.mxu0
        %v2188 = vadd.f32 %v2139, %v2187
        %2189 = vdwg.mxu0
        %v2190 = vxor.u32 %v2151, 2147483648
        %v2191 = vxor.u32 %v2153, 2147483648
        %v2192 = vxor.u32 %v2156, 2147483648
        %v2193 = vxor.u32 %v2158, 2147483648
        %v2194 = vxor.u32 %v2161, 2147483648
        %v2195 = vxor.u32 %v2163, 2147483648
        %v2196 = vxor.u32 %v2166, 2147483648
        %v2197 = vxor.u32 %v2168, 2147483648
        %v2198 = vxor.u32 %v2171, 2147483648
        %v2199 = vxor.u32 %v2173, 2147483648
        %v2200 = vxor.u32 %v2176, 2147483648
        %v2201 = vxor.u32 %v2178, 2147483648
        %v2202 = vxor.u32 %v2181, 2147483648
        %v2203 = vxor.u32 %v2183, 2147483648
        %v2204 = vxor.u32 %v2186, 2147483648
        %v2205 = vxor.u32 %v2188, 2147483648
        %v2206 = vmul.f32 %v2190, 1.442695
        %v2207 = vpow.pop %v2206
        %v2208 = vmul.f32 %v2191, 1.442695
        %v2209 = vpow.pop %v2208
        %v2210 = vmul.f32 %v2192, 1.442695
        %v2211 = vpow.pop %v2210
        %v2212 = vmul.f32 %v2193, 1.442695
        %v2213 = vpow.pop %v2212
        %v2214 = vmul.f32 %v2194, 1.442695
        %v2215 = vpow.pop %v2214
        %v2216 = vmul.f32 %v2195, 1.442695
        %v2217 = vpow.pop %v2216
        %v2218 = vmul.f32 %v2196, 1.442695
        %v2219 = vpow.pop %v2218
        %v2220 = vmul.f32 %v2197, 1.442695
        %v2221 = vpow.pop %v2220
        %v2222 = vmul.f32 %v2198, 1.442695
        %v2223 = vpow.pop %v2222
        %v2224 = vmul.f32 %v2199, 1.442695
        %v2225 = vpow.pop %v2224
        %v2226 = vmul.f32 %v2200, 1.442695
        %v2227 = vpow.pop %v2226
        %v2228 = vmul.f32 %v2201, 1.442695
        %v2229 = vpow.pop %v2228
        %v2230 = vmul.f32 %v2202, 1.442695
        %v2231 = vpow.pop %v2230
        %v2232 = vmul.f32 %v2203, 1.442695
        %v2233 = vpow.pop %v2232
        %v2234 = vmul.f32 %v2204, 1.442695
        %v2235 = vpow.pop %v2234
        %v2236 = vmul.f32 %v2205, 1.442695
        %v2237 = vpow.pop %v2236
        %v2238 = vadd.f32 %v2207, 1.0
        %v2239 = vadd.f32 %v2209, 1.0
        %v2240 = vadd.f32 %v2211, 1.0
        %v2241 = vadd.f32 %v2213, 1.0
        %v2242 = vadd.f32 %v2215, 1.0
        %v2243 = vadd.f32 %v2217, 1.0
        %v2244 = vadd.f32 %v2219, 1.0
        %v2245 = vadd.f32 %v2221, 1.0
        %v2246 = vadd.f32 %v2223, 1.0
        %v2247 = vadd.f32 %v2225, 1.0
        %v2248 = vadd.f32 %v2227, 1.0
        %v2249 = vadd.f32 %v2229, 1.0
        %v2250 = vadd.f32 %v2231, 1.0
        %v2251 = vadd.f32 %v2233, 1.0
        %v2252 = vadd.f32 %v2235, 1.0
        %v2253 = vadd.f32 %v2237, 1.0
        %v2254 = vrcp.pop %v2238
        %v2255 = vmul.f32 %v2238, %v2254
        %v2256 = vsub.f32 1.0, %v2255
        %v2257 = vmul.f32 %v2254, %v2256
        %v2258 = vadd.f32 %v2254, %v2257
        %vm2259 = vweird.f32 %v2238
        %vm2260 = vweird.f32 %v2254
        %vm2261 = vmor %vm2259, %vm2260
        %v2262 = vsel %vm2261, %v2254, %v2258
        %v2263 = vand.u32 2147483647, %v2238
        %vm2264 = vcmp.eq.f32.partialorder %v2263, 8.507059e+37
        %v2265 = vand.u32 %v2238, 2147483648
        %v2266 = vor.u32 1.1754944e-38, %v2265
        %v2267 = vsel %vm2264, %v2266, %v2262
        %v2268 = vmul.f32 1.0, %v2267
        %v2269 = vrcp.pop %v2239
        %v2270 = vmul.f32 %v2239, %v2269
        %v2271 = vsub.f32 1.0, %v2270
        %v2272 = vmul.f32 %v2269, %v2271
        %v2273 = vadd.f32 %v2269, %v2272
        %vm2274 = vweird.f32 %v2239
        %vm2275 = vweird.f32 %v2269
        %vm2276 = vmor %vm2274, %vm2275
        %v2277 = vsel %vm2276, %v2269, %v2273
        %v2278 = vand.u32 2147483647, %v2239
        %vm2279 = vcmp.eq.f32.partialorder %v2278, 8.507059e+37
        %v2280 = vand.u32 %v2239, 2147483648
        %v2281 = vor.u32 1.1754944e-38, %v2280
        %v2282 = vsel %vm2279, %v2281, %v2277
        %v2283 = vmul.f32 1.0, %v2282
        %v2284 = vrcp.pop %v2240
        %v2285 = vmul.f32 %v2240, %v2284
        %v2286 = vsub.f32 1.0, %v2285
        %v2287 = vmul.f32 %v2284, %v2286
        %v2288 = vadd.f32 %v2284, %v2287
        %vm2289 = vweird.f32 %v2240
        %vm2290 = vweird.f32 %v2284
        %vm2291 = vmor %vm2289, %vm2290
        %v2292 = vsel %vm2291, %v2284, %v2288
        %v2293 = vand.u32 2147483647, %v2240
        %vm2294 = vcmp.eq.f32.partialorder %v2293, 8.507059e+37
        %v2295 = vand.u32 %v2240, 2147483648
        %v2296 = vor.u32 1.1754944e-38, %v2295
        %v2297 = vsel %vm2294, %v2296, %v2292
        %v2298 = vmul.f32 1.0, %v2297
        %v2299 = vrcp.pop %v2241
        %v2300 = vmul.f32 %v2241, %v2299
        %v2301 = vsub.f32 1.0, %v2300
        %v2302 = vmul.f32 %v2299, %v2301
        %v2303 = vadd.f32 %v2299, %v2302
        %vm2304 = vweird.f32 %v2241
        %vm2305 = vweird.f32 %v2299
        %vm2306 = vmor %vm2304, %vm2305
        %v2307 = vsel %vm2306, %v2299, %v2303
        %v2308 = vand.u32 2147483647, %v2241
        %vm2309 = vcmp.eq.f32.partialorder %v2308, 8.507059e+37
        %v2310 = vand.u32 %v2241, 2147483648
        %v2311 = vor.u32 1.1754944e-38, %v2310
        %v2312 = vsel %vm2309, %v2311, %v2307
        %v2313 = vmul.f32 1.0, %v2312
        %v2314 = vrcp.pop %v2242
        %v2315 = vmul.f32 %v2242, %v2314
        %v2316 = vsub.f32 1.0, %v2315
        %v2317 = vmul.f32 %v2314, %v2316
        %v2318 = vadd.f32 %v2314, %v2317
        %vm2319 = vweird.f32 %v2242
        %vm2320 = vweird.f32 %v2314
        %vm2321 = vmor %vm2319, %vm2320
        %v2322 = vsel %vm2321, %v2314, %v2318
        %v2323 = vand.u32 2147483647, %v2242
        %vm2324 = vcmp.eq.f32.partialorder %v2323, 8.507059e+37
        %v2325 = vand.u32 %v2242, 2147483648
        %v2326 = vor.u32 1.1754944e-38, %v2325
        %v2327 = vsel %vm2324, %v2326, %v2322
        %v2328 = vmul.f32 1.0, %v2327
        %v2329 = vrcp.pop %v2243
        %v2330 = vmul.f32 %v2243, %v2329
        %v2331 = vsub.f32 1.0, %v2330
        %v2332 = vmul.f32 %v2329, %v2331
        %v2333 = vadd.f32 %v2329, %v2332
        %vm2334 = vweird.f32 %v2243
        %vm2335 = vweird.f32 %v2329
        %vm2336 = vmor %vm2334, %vm2335
        %v2337 = vsel %vm2336, %v2329, %v2333
        %v2338 = vand.u32 2147483647, %v2243
        %vm2339 = vcmp.eq.f32.partialorder %v2338, 8.507059e+37
        %v2340 = vand.u32 %v2243, 2147483648
        %v2341 = vor.u32 1.1754944e-38, %v2340
        %v2342 = vsel %vm2339, %v2341, %v2337
        %v2343 = vmul.f32 1.0, %v2342
        %v2344 = vrcp.pop %v2244
        %v2345 = vmul.f32 %v2244, %v2344
        %v2346 = vsub.f32 1.0, %v2345
        %v2347 = vmul.f32 %v2344, %v2346
        %v2348 = vadd.f32 %v2344, %v2347
        %vm2349 = vweird.f32 %v2244
        %vm2350 = vweird.f32 %v2344
        %vm2351 = vmor %vm2349, %vm2350
        %v2352 = vsel %vm2351, %v2344, %v2348
        %v2353 = vand.u32 2147483647, %v2244
        %vm2354 = vcmp.eq.f32.partialorder %v2353, 8.507059e+37
        %v2355 = vand.u32 %v2244, 2147483648
        %v2356 = vor.u32 1.1754944e-38, %v2355
        %v2357 = vsel %vm2354, %v2356, %v2352
        %v2358 = vmul.f32 1.0, %v2357
        %v2359 = vrcp.pop %v2245
        %v2360 = vmul.f32 %v2245, %v2359
        %v2361 = vsub.f32 1.0, %v2360
        %v2362 = vmul.f32 %v2359, %v2361
        %v2363 = vadd.f32 %v2359, %v2362
        %vm2364 = vweird.f32 %v2245
        %vm2365 = vweird.f32 %v2359
        %vm2366 = vmor %vm2364, %vm2365
        %v2367 = vsel %vm2366, %v2359, %v2363
        %v2368 = vand.u32 2147483647, %v2245
        %vm2369 = vcmp.eq.f32.partialorder %v2368, 8.507059e+37
        %v2370 = vand.u32 %v2245, 2147483648
        %v2371 = vor.u32 1.1754944e-38, %v2370
        %v2372 = vsel %vm2369, %v2371, %v2367
        %v2373 = vmul.f32 1.0, %v2372
        %v2374 = vrcp.pop %v2246
        %v2375 = vmul.f32 %v2246, %v2374
        %v2376 = vsub.f32 1.0, %v2375
        %v2377 = vmul.f32 %v2374, %v2376
        %v2378 = vadd.f32 %v2374, %v2377
        %vm2379 = vweird.f32 %v2246
        %vm2380 = vweird.f32 %v2374
        %vm2381 = vmor %vm2379, %vm2380
        %v2382 = vsel %vm2381, %v2374, %v2378
        %v2383 = vand.u32 2147483647, %v2246
        %vm2384 = vcmp.eq.f32.partialorder %v2383, 8.507059e+37
        %v2385 = vand.u32 %v2246, 2147483648
        %v2386 = vor.u32 1.1754944e-38, %v2385
        %v2387 = vsel %vm2384, %v2386, %v2382
        %v2388 = vmul.f32 1.0, %v2387
        %v2389 = vrcp.pop %v2247
        %v2390 = vmul.f32 %v2247, %v2389
        %v2391 = vsub.f32 1.0, %v2390
        %v2392 = vmul.f32 %v2389, %v2391
        %v2393 = vadd.f32 %v2389, %v2392
        %vm2394 = vweird.f32 %v2247
        %vm2395 = vweird.f32 %v2389
        %vm2396 = vmor %vm2394, %vm2395
        %v2397 = vsel %vm2396, %v2389, %v2393
        %v2398 = vand.u32 2147483647, %v2247
        %vm2399 = vcmp.eq.f32.partialorder %v2398, 8.507059e+37
        %v2400 = vand.u32 %v2247, 2147483648
        %v2401 = vor.u32 1.1754944e-38, %v2400
        %v2402 = vsel %vm2399, %v2401, %v2397
        %v2403 = vmul.f32 1.0, %v2402
        %v2404 = vrcp.pop %v2248
        %v2405 = vmul.f32 %v2248, %v2404
        %v2406 = vsub.f32 1.0, %v2405
        %v2407 = vmul.f32 %v2404, %v2406
        %v2408 = vadd.f32 %v2404, %v2407
        %vm2409 = vweird.f32 %v2248
        %vm2410 = vweird.f32 %v2404
        %vm2411 = vmor %vm2409, %vm2410
        %v2412 = vsel %vm2411, %v2404, %v2408
        %v2413 = vand.u32 2147483647, %v2248
        %vm2414 = vcmp.eq.f32.partialorder %v2413, 8.507059e+37
        %v2415 = vand.u32 %v2248, 2147483648
        %v2416 = vor.u32 1.1754944e-38, %v2415
        %v2417 = vsel %vm2414, %v2416, %v2412
        %v2418 = vmul.f32 1.0, %v2417
        %v2419 = vrcp.pop %v2249
        %v2420 = vmul.f32 %v2249, %v2419
        %v2421 = vsub.f32 1.0, %v2420
        %v2422 = vmul.f32 %v2419, %v2421
        %v2423 = vadd.f32 %v2419, %v2422
        %vm2424 = vweird.f32 %v2249
        %vm2425 = vweird.f32 %v2419
        %vm2426 = vmor %vm2424, %vm2425
        %v2427 = vsel %vm2426, %v2419, %v2423
        %v2428 = vand.u32 2147483647, %v2249
        %vm2429 = vcmp.eq.f32.partialorder %v2428, 8.507059e+37
        %v2430 = vand.u32 %v2249, 2147483648
        %v2431 = vor.u32 1.1754944e-38, %v2430
        %v2432 = vsel %vm2429, %v2431, %v2427
        %v2433 = vmul.f32 1.0, %v2432
        %v2434 = vrcp.pop %v2250
        %v2435 = vmul.f32 %v2250, %v2434
        %v2436 = vsub.f32 1.0, %v2435
        %v2437 = vmul.f32 %v2434, %v2436
        %v2438 = vadd.f32 %v2434, %v2437
        %vm2439 = vweird.f32 %v2250
        %vm2440 = vweird.f32 %v2434
        %vm2441 = vmor %vm2439, %vm2440
        %v2442 = vsel %vm2441, %v2434, %v2438
        %v2443 = vand.u32 2147483647, %v2250
        %vm2444 = vcmp.eq.f32.partialorder %v2443, 8.507059e+37
        %v2445 = vand.u32 %v2250, 2147483648
        %v2446 = vor.u32 1.1754944e-38, %v2445
        %v2447 = vsel %vm2444, %v2446, %v2442
        %v2448 = vmul.f32 1.0, %v2447
        %v2449 = vrcp.pop %v2251
        %v2450 = vmul.f32 %v2251, %v2449
        %v2451 = vsub.f32 1.0, %v2450
        %v2452 = vmul.f32 %v2449, %v2451
        %v2453 = vadd.f32 %v2449, %v2452
        %vm2454 = vweird.f32 %v2251
        %vm2455 = vweird.f32 %v2449
        %vm2456 = vmor %vm2454, %vm2455
        %v2457 = vsel %vm2456, %v2449, %v2453
        %v2458 = vand.u32 2147483647, %v2251
        %vm2459 = vcmp.eq.f32.partialorder %v2458, 8.507059e+37
        %v2460 = vand.u32 %v2251, 2147483648
        %v2461 = vor.u32 1.1754944e-38, %v2460
        %v2462 = vsel %vm2459, %v2461, %v2457
        %v2463 = vmul.f32 1.0, %v2462
        %v2464 = vrcp.pop %v2252
        %v2465 = vmul.f32 %v2252, %v2464
        %v2466 = vsub.f32 1.0, %v2465
        %v2467 = vmul.f32 %v2464, %v2466
        %v2468 = vadd.f32 %v2464, %v2467
        %vm2469 = vweird.f32 %v2252
        %vm2470 = vweird.f32 %v2464
        %vm2471 = vmor %vm2469, %vm2470
        %v2472 = vsel %vm2471, %v2464, %v2468
        %v2473 = vand.u32 2147483647, %v2252
        %vm2474 = vcmp.eq.f32.partialorder %v2473, 8.507059e+37
        %v2475 = vand.u32 %v2252, 2147483648
        %v2476 = vor.u32 1.1754944e-38, %v2475
        %v2477 = vsel %vm2474, %v2476, %v2472
        %v2478 = vmul.f32 1.0, %v2477
        %v2479 = vrcp.pop %v2253
        %v2480 = vmul.f32 %v2253, %v2479
        %v2481 = vsub.f32 1.0, %v2480
        %v2482 = vmul.f32 %v2479, %v2481
        %v2483 = vadd.f32 %v2479, %v2482
        %vm2484 = vweird.f32 %v2253
        %vm2485 = vweird.f32 %v2479
        %vm2486 = vmor %vm2484, %vm2485
        %v2487 = vsel %vm2486, %v2479, %v2483
        %v2488 = vand.u32 2147483647, %v2253
        %vm2489 = vcmp.eq.f32.partialorder %v2488, 8.507059e+37
        %v2490 = vand.u32 %v2253, 2147483648
        %v2491 = vor.u32 1.1754944e-38, %v2490
        %v2492 = vsel %vm2489, %v2491, %v2487
        %v2493 = vmul.f32 1.0, %v2492
        %vm2494 = vcmp.lt.f32.partialorder %v2076, %v2268
        %vm2495 = vcmp.lt.f32.partialorder %v2077, %v2283
        %vm2496 = vcmp.lt.f32.partialorder %v2078, %v2298
        %vm2497 = vcmp.lt.f32.partialorder %v2079, %v2313
        %vm2498 = vcmp.lt.f32.partialorder %v2080, %v2328
        %vm2499 = vcmp.lt.f32.partialorder %v2081, %v2343
        %vm2500 = vcmp.lt.f32.partialorder %v2082, %v2358
        %vm2501 = vcmp.lt.f32.partialorder %v2083, %v2373
        %vm2502 = vcmp.lt.f32.partialorder %v2084, %v2388
        %vm2503 = vcmp.lt.f32.partialorder %v2085, %v2403
        %vm2504 = vcmp.lt.f32.partialorder %v2086, %v2418
        %vm2505 = vcmp.lt.f32.partialorder %v2087, %v2433
        %vm2506 = vcmp.lt.f32.partialorder %v2088, %v2448
        %vm2507 = vcmp.lt.f32.partialorder %v2089, %v2463
        %vm2508 = vcmp.lt.f32.partialorder %v2090, %v2478
        %vm2509 = vcmp.lt.f32.partialorder %v2091, %v2493
        %v2510 = vsel %vm2494, 1, 0
        %v2511 = vsel %vm2495, 1, 0
        %v2512 = vsel %vm2496, 1, 0
        %v2513 = vsel %vm2497, 1, 0
        %v2514 = vsel %vm2498, 1, 0
        %v2515 = vsel %vm2499, 1, 0
        %v2516 = vsel %vm2500, 1, 0
        %v2517 = vsel %vm2501, 1, 0
        %v2518 = vsel %vm2502, 1, 0
        %v2519 = vsel %vm2503, 1, 0
        %v2520 = vsel %vm2504, 1, 0
        %v2521 = vsel %vm2505, 1, 0
        %v2522 = vsel %vm2506, 1, 0
        %v2523 = vsel %vm2507, 1, 0
        %v2524 = vsel %vm2508, 1, 0
        %v2525 = vsel %vm2509, 1, 0
        %v2526 = vcvt.s32.f32 %v2510
        %v2527 = vcvt.s32.f32 %v2511
        %v2528 = vcvt.s32.f32 %v2512
        %v2529 = vcvt.s32.f32 %v2513
        %v2530 = vcvt.s32.f32 %v2514
        %v2531 = vcvt.s32.f32 %v2515
        %v2532 = vcvt.s32.f32 %v2516
        %v2533 = vcvt.s32.f32 %v2517
        %v2534 = vcvt.s32.f32 %v2518
        %v2535 = vcvt.s32.f32 %v2519
        %v2536 = vcvt.s32.f32 %v2520
        %v2537 = vcvt.s32.f32 %v2521
        %v2538 = vcvt.s32.f32 %v2522
        %v2539 = vcvt.s32.f32 %v2523
        %v2540 = vcvt.s32.f32 %v2524
        %v2541 = vcvt.s32.f32 %v2525
        %v2542 = vpack.c.bf16 %v2527, %v2526
        %v2543 = vpack.c.bf16 %v2529, %v2528
        %v2544 = vpack.c.bf16 %v2531, %v2530
        %v2545 = vpack.c.bf16 %v2533, %v2532
        %v2546 = vpack.c.bf16 %v2535, %v2534
        %v2547 = vpack.c.bf16 %v2537, %v2536
        %v2548 = vpack.c.bf16 %v2539, %v2538
        %v2549 = vpack.c.bf16 %v2541, %v2540
        %s2550 = scalar_lea.vmem %s423, 256 [#allocation10]
        %v2551 = vld [vmem:[%s2550] sm:$0xff]
        %v2552 = vld [vmem:[%s2550 + $0x8] sm:$0xff]
        %v2553 = vld [vmem:[%s2550 + $0x10] sm:$0xff]
        %v2554 = vld [vmem:[%s2550 + $0x18] sm:$0xff]
        %v2555 = vld [vmem:[%s2550 + $0x20] sm:$0xff]
        %v2556 = vld [vmem:[%s2550 + $0x28] sm:$0xff]
        %v2557 = vld [vmem:[%s2550 + $0x30] sm:$0xff]
        %v2558 = vld [vmem:[%s2550 + $0x38] sm:$0xff]
        %v2559 = vld [vmem:[%s2550 + $0x40] sm:$0xff]
        %v2560 = vld [vmem:[%s2550 + $0x48] sm:$0xff]
        %v2561 = vld [vmem:[%s2550 + $0x50] sm:$0xff]
        %v2562 = vld [vmem:[%s2550 + $0x58] sm:$0xff]
        %v2563 = vld [vmem:[%s2550 + $0x60] sm:$0xff]
        %v2564 = vld [vmem:[%s2550 + $0x68] sm:$0xff]
        %v2565 = vld [vmem:[%s2550 + $0x70] sm:$0xff]
        %v2566 = vld [vmem:[%s2550 + $0x78] sm:$0xff]
        %v2567 = vld [vmem:[%s2550 + $0x80] sm:$0xff]
        %v2568 = vld [vmem:[%s2550 + $0x88] sm:$0xff]
        %v2569 = vld [vmem:[%s2550 + $0x90] sm:$0xff]
        %v2570 = vld [vmem:[%s2550 + $0x98] sm:$0xff]
        %v2571 = vld [vmem:[%s2550 + $0xa0] sm:$0xff]
        %v2572 = vld [vmem:[%s2550 + $0xa8] sm:$0xff]
        %v2573 = vld [vmem:[%s2550 + $0xb0] sm:$0xff]
        %v2574 = vld [vmem:[%s2550 + $0xb8] sm:$0xff]
        %v2575 = vld [vmem:[%s2550 + $0xc0] sm:$0xff]
        %v2576 = vld [vmem:[%s2550 + $0xc8] sm:$0xff]
        %v2577 = vld [vmem:[%s2550 + $0xd0] sm:$0xff]
        %v2578 = vld [vmem:[%s2550 + $0xd8] sm:$0xff]
        %v2579 = vld [vmem:[%s2550 + $0xe0] sm:$0xff]
        %v2580 = vld [vmem:[%s2550 + $0xe8] sm:$0xff]
        %v2581 = vld [vmem:[%s2550 + $0xf0] sm:$0xff]
        %v2582 = vld [vmem:[%s2550 + $0xf8] sm:$0xff]
        %2583 = vmatpush.bf16.msra.mxu0 %v1239
        %2584 = vmatpush.bf16.msra.mxu0 %v1237
        %2585 = vmatpush.bf16.msra.mxu0 %v1235
        %2586 = vmatpush.bf16.msra.mxu0 %v1233
        %2587 = vmatpush.bf16.msra.mxu0 %v1231
        %2588 = vmatpush.bf16.msra.mxu0 %v1229
        %2589 = vmatpush.bf16.msra.mxu0 %v1227
        %2590 = vmatpush.bf16.msra.mxu0 %v1225
        %2591 = vmatmul.bf16.gmra.mxu0 %v2542
        %v2592 = vpop.f32.mrf.mxu0
        %v2593 = vadd.f32 %v475, %v2592
        %v2594 = vpop.f32.mrf.mxu0
        %v2595 = vadd.f32 %v475, %v2594
        %2596 = vmatmul.bf16.gmra.mxu0 %v2543
        %v2597 = vpop.f32.mrf.mxu0
        %v2598 = vadd.f32 %v475, %v2597
        %v2599 = vpop.f32.mrf.mxu0
        %v2600 = vadd.f32 %v475, %v2599
        %2601 = vmatmul.bf16.gmra.mxu0 %v2544
        %v2602 = vpop.f32.mrf.mxu0
        %v2603 = vadd.f32 %v475, %v2602
        %v2604 = vpop.f32.mrf.mxu0
        %v2605 = vadd.f32 %v475, %v2604
        %2606 = vmatmul.bf16.gmra.mxu0 %v2545
        %v2607 = vpop.f32.mrf.mxu0
        %v2608 = vadd.f32 %v475, %v2607
        %v2609 = vpop.f32.mrf.mxu0
        %v2610 = vadd.f32 %v475, %v2609
        %2611 = vmatmul.bf16.gmra.mxu0 %v2546
        %v2612 = vpop.f32.mrf.mxu0
        %v2613 = vadd.f32 %v475, %v2612
        %v2614 = vpop.f32.mrf.mxu0
        %v2615 = vadd.f32 %v475, %v2614
        %2616 = vmatmul.bf16.gmra.mxu0 %v2547
        %v2617 = vpop.f32.mrf.mxu0
        %v2618 = vadd.f32 %v475, %v2617
        %v2619 = vpop.f32.mrf.mxu0
        %v2620 = vadd.f32 %v475, %v2619
        %2621 = vmatmul.bf16.gmra.mxu0 %v2548
        %v2622 = vpop.f32.mrf.mxu0
        %v2623 = vadd.f32 %v475, %v2622
        %v2624 = vpop.f32.mrf.mxu0
        %v2625 = vadd.f32 %v475, %v2624
        %2626 = vmatmul.bf16.gmra.mxu0 %v2549
        %v2627 = vpop.f32.mrf.mxu0
        %v2628 = vadd.f32 %v475, %v2627
        %v2629 = vpop.f32.mrf.mxu0
        %v2630 = vadd.f32 %v475, %v2629
        %2631 = vdwg.mxu0
        %2632 = vmatpush.bf16.msra.mxu0 %v1240
        %2633 = vmatpush.bf16.msra.mxu0 %v1238
        %2634 = vmatpush.bf16.msra.mxu0 %v1236
        %2635 = vmatpush.bf16.msra.mxu0 %v1234
        %2636 = vmatpush.bf16.msra.mxu0 %v1232
        %2637 = vmatpush.bf16.msra.mxu0 %v1230
        %2638 = vmatpush.bf16.msra.mxu0 %v1228
        %2639 = vmatpush.bf16.msra.mxu0 %v1226
        %2640 = vmatmul.bf16.gmra.mxu0 %v2542
        %v2641 = vpop.f32.mrf.mxu0
        %v2642 = vadd.f32 %v476, %v2641
        %v2643 = vpop.f32.mrf.mxu0
        %v2644 = vadd.f32 %v476, %v2643
        %2645 = vmatmul.bf16.gmra.mxu0 %v2543
        %v2646 = vpop.f32.mrf.mxu0
        %v2647 = vadd.f32 %v476, %v2646
        %v2648 = vpop.f32.mrf.mxu0
        %v2649 = vadd.f32 %v476, %v2648
        %2650 = vmatmul.bf16.gmra.mxu0 %v2544
        %v2651 = vpop.f32.mrf.mxu0
        %v2652 = vadd.f32 %v476, %v2651
        %v2653 = vpop.f32.mrf.mxu0
        %v2654 = vadd.f32 %v476, %v2653
        %2655 = vmatmul.bf16.gmra.mxu0 %v2545
        %v2656 = vpop.f32.mrf.mxu0
        %v2657 = vadd.f32 %v476, %v2656
        %v2658 = vpop.f32.mrf.mxu0
        %v2659 = vadd.f32 %v476, %v2658
        %2660 = vmatmul.bf16.gmra.mxu0 %v2546
        %v2661 = vpop.f32.mrf.mxu0
        %v2662 = vadd.f32 %v476, %v2661
        %v2663 = vpop.f32.mrf.mxu0
        %v2664 = vadd.f32 %v476, %v2663
        %2665 = vmatmul.bf16.gmra.mxu0 %v2547
        %v2666 = vpop.f32.mrf.mxu0
        %v2667 = vadd.f32 %v476, %v2666
        %v2668 = vpop.f32.mrf.mxu0
        %v2669 = vadd.f32 %v476, %v2668
        %2670 = vmatmul.bf16.gmra.mxu0 %v2548
        %v2671 = vpop.f32.mrf.mxu0
        %v2672 = vadd.f32 %v476, %v2671
        %v2673 = vpop.f32.mrf.mxu0
        %v2674 = vadd.f32 %v476, %v2673
        %2675 = vmatmul.bf16.gmra.mxu0 %v2549
        %v2676 = vpop.f32.mrf.mxu0
        %v2677 = vadd.f32 %v476, %v2676
        %v2678 = vpop.f32.mrf.mxu0
        %v2679 = vadd.f32 %v476, %v2678
        %2680 = vdwg.mxu0
        %v2681 = vxor.u32 %v2593, 2147483648
        %v2682 = vxor.u32 %v2642, 2147483648
        %v2683 = vxor.u32 %v2595, 2147483648
        %v2684 = vxor.u32 %v2644, 2147483648
        %v2685 = vxor.u32 %v2598, 2147483648
        %v2686 = vxor.u32 %v2647, 2147483648
        %v2687 = vxor.u32 %v2600, 2147483648
        %v2688 = vxor.u32 %v2649, 2147483648
        %v2689 = vxor.u32 %v2603, 2147483648
        %v2690 = vxor.u32 %v2652, 2147483648
        %v2691 = vxor.u32 %v2605, 2147483648
        %v2692 = vxor.u32 %v2654, 2147483648
        %v2693 = vxor.u32 %v2608, 2147483648
        %v2694 = vxor.u32 %v2657, 2147483648
        %v2695 = vxor.u32 %v2610, 2147483648
        %v2696 = vxor.u32 %v2659, 2147483648
        %v2697 = vxor.u32 %v2613, 2147483648
        %v2698 = vxor.u32 %v2662, 2147483648
        %v2699 = vxor.u32 %v2615, 2147483648
        %v2700 = vxor.u32 %v2664, 2147483648
        %v2701 = vxor.u32 %v2618, 2147483648
        %v2702 = vxor.u32 %v2667, 2147483648
        %v2703 = vxor.u32 %v2620, 2147483648
        %v2704 = vxor.u32 %v2669, 2147483648
        %v2705 = vxor.u32 %v2623, 2147483648
        %v2706 = vxor.u32 %v2672, 2147483648
        %v2707 = vxor.u32 %v2625, 2147483648
        %v2708 = vxor.u32 %v2674, 2147483648
        %v2709 = vxor.u32 %v2628, 2147483648
        %v2710 = vxor.u32 %v2677, 2147483648
        %v2711 = vxor.u32 %v2630, 2147483648
        %v2712 = vxor.u32 %v2679, 2147483648
        %v2713 = vmul.f32 %v2681, 1.442695
        %v2714 = vpow.pop %v2713
        %v2715 = vmul.f32 %v2682, 1.442695
        %v2716 = vpow.pop %v2715
        %v2717 = vmul.f32 %v2683, 1.442695
        %v2718 = vpow.pop %v2717
        %v2719 = vmul.f32 %v2684, 1.442695
        %v2720 = vpow.pop %v2719
        %v2721 = vmul.f32 %v2685, 1.442695
        %v2722 = vpow.pop %v2721
        %v2723 = vmul.f32 %v2686, 1.442695
        %v2724 = vpow.pop %v2723
        %v2725 = vmul.f32 %v2687, 1.442695
        %v2726 = vpow.pop %v2725
        %v2727 = vmul.f32 %v2688, 1.442695
        %v2728 = vpow.pop %v2727
        %v2729 = vmul.f32 %v2689, 1.442695
        %v2730 = vpow.pop %v2729
        %v2731 = vmul.f32 %v2690, 1.442695
        %v2732 = vpow.pop %v2731
        %v2733 = vmul.f32 %v2691, 1.442695
        %v2734 = vpow.pop %v2733
        %v2735 = vmul.f32 %v2692, 1.442695
        %v2736 = vpow.pop %v2735
        %v2737 = vmul.f32 %v2693, 1.442695
        %v2738 = vpow.pop %v2737
        %v2739 = vmul.f32 %v2694, 1.442695
        %v2740 = vpow.pop %v2739
        %v2741 = vmul.f32 %v2695, 1.442695
        %v2742 = vpow.pop %v2741
        %v2743 = vmul.f32 %v2696, 1.442695
        %v2744 = vpow.pop %v2743
        %v2745 = vmul.f32 %v2697, 1.442695
        %v2746 = vpow.pop %v2745
        %v2747 = vmul.f32 %v2698, 1.442695
        %v2748 = vpow.pop %v2747
        %v2749 = vmul.f32 %v2699, 1.442695
        %v2750 = vpow.pop %v2749
        %v2751 = vmul.f32 %v2700, 1.442695
        %v2752 = vpow.pop %v2751
        %v2753 = vmul.f32 %v2701, 1.442695
        %v2754 = vpow.pop %v2753
        %v2755 = vmul.f32 %v2702, 1.442695
        %v2756 = vpow.pop %v2755
        %v2757 = vmul.f32 %v2703, 1.442695
        %v2758 = vpow.pop %v2757
        %v2759 = vmul.f32 %v2704, 1.442695
        %v2760 = vpow.pop %v2759
        %v2761 = vmul.f32 %v2705, 1.442695
        %v2762 = vpow.pop %v2761
        %v2763 = vmul.f32 %v2706, 1.442695
        %v2764 = vpow.pop %v2763
        %v2765 = vmul.f32 %v2707, 1.442695
        %v2766 = vpow.pop %v2765
        %v2767 = vmul.f32 %v2708, 1.442695
        %v2768 = vpow.pop %v2767
        %v2769 = vmul.f32 %v2709, 1.442695
        %v2770 = vpow.pop %v2769
        %v2771 = vmul.f32 %v2710, 1.442695
        %v2772 = vpow.pop %v2771
        %v2773 = vmul.f32 %v2711, 1.442695
        %v2774 = vpow.pop %v2773
        %v2775 = vmul.f32 %v2712, 1.442695
        %v2776 = vpow.pop %v2775
        %v2777 = vadd.f32 %v2714, 1.0
        %v2778 = vadd.f32 %v2716, 1.0
        %v2779 = vadd.f32 %v2718, 1.0
        %v2780 = vadd.f32 %v2720, 1.0
        %v2781 = vadd.f32 %v2722, 1.0
        %v2782 = vadd.f32 %v2724, 1.0
        %v2783 = vadd.f32 %v2726, 1.0
        %v2784 = vadd.f32 %v2728, 1.0
        %v2785 = vadd.f32 %v2730, 1.0
        %v2786 = vadd.f32 %v2732, 1.0
        %v2787 = vadd.f32 %v2734, 1.0
        %v2788 = vadd.f32 %v2736, 1.0
        %v2789 = vadd.f32 %v2738, 1.0
        %v2790 = vadd.f32 %v2740, 1.0
        %v2791 = vadd.f32 %v2742, 1.0
        %v2792 = vadd.f32 %v2744, 1.0
        %v2793 = vadd.f32 %v2746, 1.0
        %v2794 = vadd.f32 %v2748, 1.0
        %v2795 = vadd.f32 %v2750, 1.0
        %v2796 = vadd.f32 %v2752, 1.0
        %v2797 = vadd.f32 %v2754, 1.0
        %v2798 = vadd.f32 %v2756, 1.0
        %v2799 = vadd.f32 %v2758, 1.0
        %v2800 = vadd.f32 %v2760, 1.0
        %v2801 = vadd.f32 %v2762, 1.0
        %v2802 = vadd.f32 %v2764, 1.0
        %v2803 = vadd.f32 %v2766, 1.0
        %v2804 = vadd.f32 %v2768, 1.0
        %v2805 = vadd.f32 %v2770, 1.0
        %v2806 = vadd.f32 %v2772, 1.0
        %v2807 = vadd.f32 %v2774, 1.0
        %v2808 = vadd.f32 %v2776, 1.0
        %v2809 = vrcp.pop %v2777
        %v2810 = vmul.f32 %v2777, %v2809
        %v2811 = vsub.f32 1.0, %v2810
        %v2812 = vmul.f32 %v2809, %v2811
        %v2813 = vadd.f32 %v2809, %v2812
        %vm2814 = vweird.f32 %v2777
        %vm2815 = vweird.f32 %v2809
        %vm2816 = vmor %vm2814, %vm2815
        %v2817 = vsel %vm2816, %v2809, %v2813
        %v2818 = vand.u32 2147483647, %v2777
        %vm2819 = vcmp.eq.f32.partialorder %v2818, 8.507059e+37
        %v2820 = vand.u32 %v2777, 2147483648
        %v2821 = vor.u32 1.1754944e-38, %v2820
        %v2822 = vsel %vm2819, %v2821, %v2817
        %v2823 = vmul.f32 1.0, %v2822
        %v2824 = vrcp.pop %v2778
        %v2825 = vmul.f32 %v2778, %v2824
        %v2826 = vsub.f32 1.0, %v2825
        %v2827 = vmul.f32 %v2824, %v2826
        %v2828 = vadd.f32 %v2824, %v2827
        %vm2829 = vweird.f32 %v2778
        %vm2830 = vweird.f32 %v2824
        %vm2831 = vmor %vm2829, %vm2830
        %v2832 = vsel %vm2831, %v2824, %v2828
        %v2833 = vand.u32 2147483647, %v2778
        %vm2834 = vcmp.eq.f32.partialorder %v2833, 8.507059e+37
        %v2835 = vand.u32 %v2778, 2147483648
        %v2836 = vor.u32 1.1754944e-38, %v2835
        %v2837 = vsel %vm2834, %v2836, %v2832
        %v2838 = vmul.f32 1.0, %v2837
        %v2839 = vrcp.pop %v2779
        %v2840 = vmul.f32 %v2779, %v2839
        %v2841 = vsub.f32 1.0, %v2840
        %v2842 = vmul.f32 %v2839, %v2841
        %v2843 = vadd.f32 %v2839, %v2842
        %vm2844 = vweird.f32 %v2779
        %vm2845 = vweird.f32 %v2839
        %vm2846 = vmor %vm2844, %vm2845
        %v2847 = vsel %vm2846, %v2839, %v2843
        %v2848 = vand.u32 2147483647, %v2779
        %vm2849 = vcmp.eq.f32.partialorder %v2848, 8.507059e+37
        %v2850 = vand.u32 %v2779, 2147483648
        %v2851 = vor.u32 1.1754944e-38, %v2850
        %v2852 = vsel %vm2849, %v2851, %v2847
        %v2853 = vmul.f32 1.0, %v2852
        %v2854 = vrcp.pop %v2780
        %v2855 = vmul.f32 %v2780, %v2854
        %v2856 = vsub.f32 1.0, %v2855
        %v2857 = vmul.f32 %v2854, %v2856
        %v2858 = vadd.f32 %v2854, %v2857
        %vm2859 = vweird.f32 %v2780
        %vm2860 = vweird.f32 %v2854
        %vm2861 = vmor %vm2859, %vm2860
        %v2862 = vsel %vm2861, %v2854, %v2858
        %v2863 = vand.u32 2147483647, %v2780
        %vm2864 = vcmp.eq.f32.partialorder %v2863, 8.507059e+37
        %v2865 = vand.u32 %v2780, 2147483648
        %v2866 = vor.u32 1.1754944e-38, %v2865
        %v2867 = vsel %vm2864, %v2866, %v2862
        %v2868 = vmul.f32 1.0, %v2867
        %v2869 = vrcp.pop %v2781
        %v2870 = vmul.f32 %v2781, %v2869
        %v2871 = vsub.f32 1.0, %v2870
        %v2872 = vmul.f32 %v2869, %v2871
        %v2873 = vadd.f32 %v2869, %v2872
        %vm2874 = vweird.f32 %v2781
        %vm2875 = vweird.f32 %v2869
        %vm2876 = vmor %vm2874, %vm2875
        %v2877 = vsel %vm2876, %v2869, %v2873
        %v2878 = vand.u32 2147483647, %v2781
        %vm2879 = vcmp.eq.f32.partialorder %v2878, 8.507059e+37
        %v2880 = vand.u32 %v2781, 2147483648
        %v2881 = vor.u32 1.1754944e-38, %v2880
        %v2882 = vsel %vm2879, %v2881, %v2877
        %v2883 = vmul.f32 1.0, %v2882
        %v2884 = vrcp.pop %v2782
        %v2885 = vmul.f32 %v2782, %v2884
        %v2886 = vsub.f32 1.0, %v2885
        %v2887 = vmul.f32 %v2884, %v2886
        %v2888 = vadd.f32 %v2884, %v2887
        %vm2889 = vweird.f32 %v2782
        %vm2890 = vweird.f32 %v2884
        %vm2891 = vmor %vm2889, %vm2890
        %v2892 = vsel %vm2891, %v2884, %v2888
        %v2893 = vand.u32 2147483647, %v2782
        %vm2894 = vcmp.eq.f32.partialorder %v2893, 8.507059e+37
        %v2895 = vand.u32 %v2782, 2147483648
        %v2896 = vor.u32 1.1754944e-38, %v2895
        %v2897 = vsel %vm2894, %v2896, %v2892
        %v2898 = vmul.f32 1.0, %v2897
        %v2899 = vrcp.pop %v2783
        %v2900 = vmul.f32 %v2783, %v2899
        %v2901 = vsub.f32 1.0, %v2900
        %v2902 = vmul.f32 %v2899, %v2901
        %v2903 = vadd.f32 %v2899, %v2902
        %vm2904 = vweird.f32 %v2783
        %vm2905 = vweird.f32 %v2899
        %vm2906 = vmor %vm2904, %vm2905
        %v2907 = vsel %vm2906, %v2899, %v2903
        %v2908 = vand.u32 2147483647, %v2783
        %vm2909 = vcmp.eq.f32.partialorder %v2908, 8.507059e+37
        %v2910 = vand.u32 %v2783, 2147483648
        %v2911 = vor.u32 1.1754944e-38, %v2910
        %v2912 = vsel %vm2909, %v2911, %v2907
        %v2913 = vmul.f32 1.0, %v2912
        %v2914 = vrcp.pop %v2784
        %v2915 = vmul.f32 %v2784, %v2914
        %v2916 = vsub.f32 1.0, %v2915
        %v2917 = vmul.f32 %v2914, %v2916
        %v2918 = vadd.f32 %v2914, %v2917
        %vm2919 = vweird.f32 %v2784
        %vm2920 = vweird.f32 %v2914
        %vm2921 = vmor %vm2919, %vm2920
        %v2922 = vsel %vm2921, %v2914, %v2918
        %v2923 = vand.u32 2147483647, %v2784
        %vm2924 = vcmp.eq.f32.partialorder %v2923, 8.507059e+37
        %v2925 = vand.u32 %v2784, 2147483648
        %v2926 = vor.u32 1.1754944e-38, %v2925
        %v2927 = vsel %vm2924, %v2926, %v2922
        %v2928 = vmul.f32 1.0, %v2927
        %v2929 = vrcp.pop %v2785
        %v2930 = vmul.f32 %v2785, %v2929
        %v2931 = vsub.f32 1.0, %v2930
        %v2932 = vmul.f32 %v2929, %v2931
        %v2933 = vadd.f32 %v2929, %v2932
        %vm2934 = vweird.f32 %v2785
        %vm2935 = vweird.f32 %v2929
        %vm2936 = vmor %vm2934, %vm2935
        %v2937 = vsel %vm2936, %v2929, %v2933
        %v2938 = vand.u32 2147483647, %v2785
        %vm2939 = vcmp.eq.f32.partialorder %v2938, 8.507059e+37
        %v2940 = vand.u32 %v2785, 2147483648
        %v2941 = vor.u32 1.1754944e-38, %v2940
        %v2942 = vsel %vm2939, %v2941, %v2937
        %v2943 = vmul.f32 1.0, %v2942
        %v2944 = vrcp.pop %v2786
        %v2945 = vmul.f32 %v2786, %v2944
        %v2946 = vsub.f32 1.0, %v2945
        %v2947 = vmul.f32 %v2944, %v2946
        %v2948 = vadd.f32 %v2944, %v2947
        %vm2949 = vweird.f32 %v2786
        %vm2950 = vweird.f32 %v2944
        %vm2951 = vmor %vm2949, %vm2950
        %v2952 = vsel %vm2951, %v2944, %v2948
        %v2953 = vand.u32 2147483647, %v2786
        %vm2954 = vcmp.eq.f32.partialorder %v2953, 8.507059e+37
        %v2955 = vand.u32 %v2786, 2147483648
        %v2956 = vor.u32 1.1754944e-38, %v2955
        %v2957 = vsel %vm2954, %v2956, %v2952
        %v2958 = vmul.f32 1.0, %v2957
        %v2959 = vrcp.pop %v2787
        %v2960 = vmul.f32 %v2787, %v2959
        %v2961 = vsub.f32 1.0, %v2960
        %v2962 = vmul.f32 %v2959, %v2961
        %v2963 = vadd.f32 %v2959, %v2962
        %vm2964 = vweird.f32 %v2787
        %vm2965 = vweird.f32 %v2959
        %vm2966 = vmor %vm2964, %vm2965
        %v2967 = vsel %vm2966, %v2959, %v2963
        %v2968 = vand.u32 2147483647, %v2787
        %vm2969 = vcmp.eq.f32.partialorder %v2968, 8.507059e+37
        %v2970 = vand.u32 %v2787, 2147483648
        %v2971 = vor.u32 1.1754944e-38, %v2970
        %v2972 = vsel %vm2969, %v2971, %v2967
        %v2973 = vmul.f32 1.0, %v2972
        %v2974 = vrcp.pop %v2788
        %v2975 = vmul.f32 %v2788, %v2974
        %v2976 = vsub.f32 1.0, %v2975
        %v2977 = vmul.f32 %v2974, %v2976
        %v2978 = vadd.f32 %v2974, %v2977
        %vm2979 = vweird.f32 %v2788
        %vm2980 = vweird.f32 %v2974
        %vm2981 = vmor %vm2979, %vm2980
        %v2982 = vsel %vm2981, %v2974, %v2978
        %v2983 = vand.u32 2147483647, %v2788
        %vm2984 = vcmp.eq.f32.partialorder %v2983, 8.507059e+37
        %v2985 = vand.u32 %v2788, 2147483648
        %v2986 = vor.u32 1.1754944e-38, %v2985
        %v2987 = vsel %vm2984, %v2986, %v2982
        %v2988 = vmul.f32 1.0, %v2987
        %v2989 = vrcp.pop %v2789
        %v2990 = vmul.f32 %v2789, %v2989
        %v2991 = vsub.f32 1.0, %v2990
        %v2992 = vmul.f32 %v2989, %v2991
        %v2993 = vadd.f32 %v2989, %v2992
        %vm2994 = vweird.f32 %v2789
        %vm2995 = vweird.f32 %v2989
        %vm2996 = vmor %vm2994, %vm2995
        %v2997 = vsel %vm2996, %v2989, %v2993
        %v2998 = vand.u32 2147483647, %v2789
        %vm2999 = vcmp.eq.f32.partialorder %v2998, 8.507059e+37
        %v3000 = vand.u32 %v2789, 2147483648
        %v3001 = vor.u32 1.1754944e-38, %v3000
        %v3002 = vsel %vm2999, %v3001, %v2997
        %v3003 = vmul.f32 1.0, %v3002
        %v3004 = vrcp.pop %v2790
        %v3005 = vmul.f32 %v2790, %v3004
        %v3006 = vsub.f32 1.0, %v3005
        %v3007 = vmul.f32 %v3004, %v3006
        %v3008 = vadd.f32 %v3004, %v3007
        %vm3009 = vweird.f32 %v2790
        %vm3010 = vweird.f32 %v3004
        %vm3011 = vmor %vm3009, %vm3010
        %v3012 = vsel %vm3011, %v3004, %v3008
        %v3013 = vand.u32 2147483647, %v2790
        %vm3014 = vcmp.eq.f32.partialorder %v3013, 8.507059e+37
        %v3015 = vand.u32 %v2790, 2147483648
        %v3016 = vor.u32 1.1754944e-38, %v3015
        %v3017 = vsel %vm3014, %v3016, %v3012
        %v3018 = vmul.f32 1.0, %v3017
        %v3019 = vrcp.pop %v2791
        %v3020 = vmul.f32 %v2791, %v3019
        %v3021 = vsub.f32 1.0, %v3020
        %v3022 = vmul.f32 %v3019, %v3021
        %v3023 = vadd.f32 %v3019, %v3022
        %vm3024 = vweird.f32 %v2791
        %vm3025 = vweird.f32 %v3019
        %vm3026 = vmor %vm3024, %vm3025
        %v3027 = vsel %vm3026, %v3019, %v3023
        %v3028 = vand.u32 2147483647, %v2791
        %vm3029 = vcmp.eq.f32.partialorder %v3028, 8.507059e+37
        %v3030 = vand.u32 %v2791, 2147483648
        %v3031 = vor.u32 1.1754944e-38, %v3030
        %v3032 = vsel %vm3029, %v3031, %v3027
        %v3033 = vmul.f32 1.0, %v3032
        %v3034 = vrcp.pop %v2792
        %v3035 = vmul.f32 %v2792, %v3034
        %v3036 = vsub.f32 1.0, %v3035
        %v3037 = vmul.f32 %v3034, %v3036
        %v3038 = vadd.f32 %v3034, %v3037
        %vm3039 = vweird.f32 %v2792
        %vm3040 = vweird.f32 %v3034
        %vm3041 = vmor %vm3039, %vm3040
        %v3042 = vsel %vm3041, %v3034, %v3038
        %v3043 = vand.u32 2147483647, %v2792
        %vm3044 = vcmp.eq.f32.partialorder %v3043, 8.507059e+37
        %v3045 = vand.u32 %v2792, 2147483648
        %v3046 = vor.u32 1.1754944e-38, %v3045
        %v3047 = vsel %vm3044, %v3046, %v3042
        %v3048 = vmul.f32 1.0, %v3047
        %v3049 = vrcp.pop %v2793
        %v3050 = vmul.f32 %v2793, %v3049
        %v3051 = vsub.f32 1.0, %v3050
        %v3052 = vmul.f32 %v3049, %v3051
        %v3053 = vadd.f32 %v3049, %v3052
        %vm3054 = vweird.f32 %v2793
        %vm3055 = vweird.f32 %v3049
        %vm3056 = vmor %vm3054, %vm3055
        %v3057 = vsel %vm3056, %v3049, %v3053
        %v3058 = vand.u32 2147483647, %v2793
        %vm3059 = vcmp.eq.f32.partialorder %v3058, 8.507059e+37
        %v3060 = vand.u32 %v2793, 2147483648
        %v3061 = vor.u32 1.1754944e-38, %v3060
        %v3062 = vsel %vm3059, %v3061, %v3057
        %v3063 = vmul.f32 1.0, %v3062
        %v3064 = vrcp.pop %v2794
        %v3065 = vmul.f32 %v2794, %v3064
        %v3066 = vsub.f32 1.0, %v3065
        %v3067 = vmul.f32 %v3064, %v3066
        %v3068 = vadd.f32 %v3064, %v3067
        %vm3069 = vweird.f32 %v2794
        %vm3070 = vweird.f32 %v3064
        %vm3071 = vmor %vm3069, %vm3070
        %v3072 = vsel %vm3071, %v3064, %v3068
        %v3073 = vand.u32 2147483647, %v2794
        %vm3074 = vcmp.eq.f32.partialorder %v3073, 8.507059e+37
        %v3075 = vand.u32 %v2794, 2147483648
        %v3076 = vor.u32 1.1754944e-38, %v3075
        %v3077 = vsel %vm3074, %v3076, %v3072
        %v3078 = vmul.f32 1.0, %v3077
        %v3079 = vrcp.pop %v2795
        %v3080 = vmul.f32 %v2795, %v3079
        %v3081 = vsub.f32 1.0, %v3080
        %v3082 = vmul.f32 %v3079, %v3081
        %v3083 = vadd.f32 %v3079, %v3082
        %vm3084 = vweird.f32 %v2795
        %vm3085 = vweird.f32 %v3079
        %vm3086 = vmor %vm3084, %vm3085
        %v3087 = vsel %vm3086, %v3079, %v3083
        %v3088 = vand.u32 2147483647, %v2795
        %vm3089 = vcmp.eq.f32.partialorder %v3088, 8.507059e+37
        %v3090 = vand.u32 %v2795, 2147483648
        %v3091 = vor.u32 1.1754944e-38, %v3090
        %v3092 = vsel %vm3089, %v3091, %v3087
        %v3093 = vmul.f32 1.0, %v3092
        %v3094 = vrcp.pop %v2796
        %v3095 = vmul.f32 %v2796, %v3094
        %v3096 = vsub.f32 1.0, %v3095
        %v3097 = vmul.f32 %v3094, %v3096
        %v3098 = vadd.f32 %v3094, %v3097
        %vm3099 = vweird.f32 %v2796
        %vm3100 = vweird.f32 %v3094
        %vm3101 = vmor %vm3099, %vm3100
        %v3102 = vsel %vm3101, %v3094, %v3098
        %v3103 = vand.u32 2147483647, %v2796
        %vm3104 = vcmp.eq.f32.partialorder %v3103, 8.507059e+37
        %v3105 = vand.u32 %v2796, 2147483648
        %v3106 = vor.u32 1.1754944e-38, %v3105
        %v3107 = vsel %vm3104, %v3106, %v3102
        %v3108 = vmul.f32 1.0, %v3107
        %v3109 = vrcp.pop %v2797
        %v3110 = vmul.f32 %v2797, %v3109
        %v3111 = vsub.f32 1.0, %v3110
        %v3112 = vmul.f32 %v3109, %v3111
        %v3113 = vadd.f32 %v3109, %v3112
        %vm3114 = vweird.f32 %v2797
        %vm3115 = vweird.f32 %v3109
        %vm3116 = vmor %vm3114, %vm3115
        %v3117 = vsel %vm3116, %v3109, %v3113
        %v3118 = vand.u32 2147483647, %v2797
        %vm3119 = vcmp.eq.f32.partialorder %v3118, 8.507059e+37
        %v3120 = vand.u32 %v2797, 2147483648
        %v3121 = vor.u32 1.1754944e-38, %v3120
        %v3122 = vsel %vm3119, %v3121, %v3117
        %v3123 = vmul.f32 1.0, %v3122
        %v3124 = vrcp.pop %v2798
        %v3125 = vmul.f32 %v2798, %v3124
        %v3126 = vsub.f32 1.0, %v3125
        %v3127 = vmul.f32 %v3124, %v3126
        %v3128 = vadd.f32 %v3124, %v3127
        %vm3129 = vweird.f32 %v2798
        %vm3130 = vweird.f32 %v3124
        %vm3131 = vmor %vm3129, %vm3130
        %v3132 = vsel %vm3131, %v3124, %v3128
        %v3133 = vand.u32 2147483647, %v2798
        %vm3134 = vcmp.eq.f32.partialorder %v3133, 8.507059e+37
        %v3135 = vand.u32 %v2798, 2147483648
        %v3136 = vor.u32 1.1754944e-38, %v3135
        %v3137 = vsel %vm3134, %v3136, %v3132
        %v3138 = vmul.f32 1.0, %v3137
        %v3139 = vrcp.pop %v2799
        %v3140 = vmul.f32 %v2799, %v3139
        %v3141 = vsub.f32 1.0, %v3140
        %v3142 = vmul.f32 %v3139, %v3141
        %v3143 = vadd.f32 %v3139, %v3142
        %vm3144 = vweird.f32 %v2799
        %vm3145 = vweird.f32 %v3139
        %vm3146 = vmor %vm3144, %vm3145
        %v3147 = vsel %vm3146, %v3139, %v3143
        %v3148 = vand.u32 2147483647, %v2799
        %vm3149 = vcmp.eq.f32.partialorder %v3148, 8.507059e+37
        %v3150 = vand.u32 %v2799, 2147483648
        %v3151 = vor.u32 1.1754944e-38, %v3150
        %v3152 = vsel %vm3149, %v3151, %v3147
        %v3153 = vmul.f32 1.0, %v3152
        %v3154 = vrcp.pop %v2800
        %v3155 = vmul.f32 %v2800, %v3154
        %v3156 = vsub.f32 1.0, %v3155
        %v3157 = vmul.f32 %v3154, %v3156
        %v3158 = vadd.f32 %v3154, %v3157
        %vm3159 = vweird.f32 %v2800
        %vm3160 = vweird.f32 %v3154
        %vm3161 = vmor %vm3159, %vm3160
        %v3162 = vsel %vm3161, %v3154, %v3158
        %v3163 = vand.u32 2147483647, %v2800
        %vm3164 = vcmp.eq.f32.partialorder %v3163, 8.507059e+37
        %v3165 = vand.u32 %v2800, 2147483648
        %v3166 = vor.u32 1.1754944e-38, %v3165
        %v3167 = vsel %vm3164, %v3166, %v3162
        %v3168 = vmul.f32 1.0, %v3167
        %v3169 = vrcp.pop %v2801
        %v3170 = vmul.f32 %v2801, %v3169
        %v3171 = vsub.f32 1.0, %v3170
        %v3172 = vmul.f32 %v3169, %v3171
        %v3173 = vadd.f32 %v3169, %v3172
        %vm3174 = vweird.f32 %v2801
        %vm3175 = vweird.f32 %v3169
        %vm3176 = vmor %vm3174, %vm3175
        %v3177 = vsel %vm3176, %v3169, %v3173
        %v3178 = vand.u32 2147483647, %v2801
        %vm3179 = vcmp.eq.f32.partialorder %v3178, 8.507059e+37
        %v3180 = vand.u32 %v2801, 2147483648
        %v3181 = vor.u32 1.1754944e-38, %v3180
        %v3182 = vsel %vm3179, %v3181, %v3177
        %v3183 = vmul.f32 1.0, %v3182
        %v3184 = vrcp.pop %v2802
        %v3185 = vmul.f32 %v2802, %v3184
        %v3186 = vsub.f32 1.0, %v3185
        %v3187 = vmul.f32 %v3184, %v3186
        %v3188 = vadd.f32 %v3184, %v3187
        %vm3189 = vweird.f32 %v2802
        %vm3190 = vweird.f32 %v3184
        %vm3191 = vmor %vm3189, %vm3190
        %v3192 = vsel %vm3191, %v3184, %v3188
        %v3193 = vand.u32 2147483647, %v2802
        %vm3194 = vcmp.eq.f32.partialorder %v3193, 8.507059e+37
        %v3195 = vand.u32 %v2802, 2147483648
        %v3196 = vor.u32 1.1754944e-38, %v3195
        %v3197 = vsel %vm3194, %v3196, %v3192
        %v3198 = vmul.f32 1.0, %v3197
        %v3199 = vrcp.pop %v2803
        %v3200 = vmul.f32 %v2803, %v3199
        %v3201 = vsub.f32 1.0, %v3200
        %v3202 = vmul.f32 %v3199, %v3201
        %v3203 = vadd.f32 %v3199, %v3202
        %vm3204 = vweird.f32 %v2803
        %vm3205 = vweird.f32 %v3199
        %vm3206 = vmor %vm3204, %vm3205
        %v3207 = vsel %vm3206, %v3199, %v3203
        %v3208 = vand.u32 2147483647, %v2803
        %vm3209 = vcmp.eq.f32.partialorder %v3208, 8.507059e+37
        %v3210 = vand.u32 %v2803, 2147483648
        %v3211 = vor.u32 1.1754944e-38, %v3210
        %v3212 = vsel %vm3209, %v3211, %v3207
        %v3213 = vmul.f32 1.0, %v3212
        %v3214 = vrcp.pop %v2804
        %v3215 = vmul.f32 %v2804, %v3214
        %v3216 = vsub.f32 1.0, %v3215
        %v3217 = vmul.f32 %v3214, %v3216
        %v3218 = vadd.f32 %v3214, %v3217
        %vm3219 = vweird.f32 %v2804
        %vm3220 = vweird.f32 %v3214
        %vm3221 = vmor %vm3219, %vm3220
        %v3222 = vsel %vm3221, %v3214, %v3218
        %v3223 = vand.u32 2147483647, %v2804
        %vm3224 = vcmp.eq.f32.partialorder %v3223, 8.507059e+37
        %v3225 = vand.u32 %v2804, 2147483648
        %v3226 = vor.u32 1.1754944e-38, %v3225
        %v3227 = vsel %vm3224, %v3226, %v3222
        %v3228 = vmul.f32 1.0, %v3227
        %v3229 = vrcp.pop %v2805
        %v3230 = vmul.f32 %v2805, %v3229
        %v3231 = vsub.f32 1.0, %v3230
        %v3232 = vmul.f32 %v3229, %v3231
        %v3233 = vadd.f32 %v3229, %v3232
        %vm3234 = vweird.f32 %v2805
        %vm3235 = vweird.f32 %v3229
        %vm3236 = vmor %vm3234, %vm3235
        %v3237 = vsel %vm3236, %v3229, %v3233
        %v3238 = vand.u32 2147483647, %v2805
        %vm3239 = vcmp.eq.f32.partialorder %v3238, 8.507059e+37
        %v3240 = vand.u32 %v2805, 2147483648
        %v3241 = vor.u32 1.1754944e-38, %v3240
        %v3242 = vsel %vm3239, %v3241, %v3237
        %v3243 = vmul.f32 1.0, %v3242
        %v3244 = vrcp.pop %v2806
        %v3245 = vmul.f32 %v2806, %v3244
        %v3246 = vsub.f32 1.0, %v3245
        %v3247 = vmul.f32 %v3244, %v3246
        %v3248 = vadd.f32 %v3244, %v3247
        %vm3249 = vweird.f32 %v2806
        %vm3250 = vweird.f32 %v3244
        %vm3251 = vmor %vm3249, %vm3250
        %v3252 = vsel %vm3251, %v3244, %v3248
        %v3253 = vand.u32 2147483647, %v2806
        %vm3254 = vcmp.eq.f32.partialorder %v3253, 8.507059e+37
        %v3255 = vand.u32 %v2806, 2147483648
        %v3256 = vor.u32 1.1754944e-38, %v3255
        %v3257 = vsel %vm3254, %v3256, %v3252
        %v3258 = vmul.f32 1.0, %v3257
        %v3259 = vrcp.pop %v2807
        %v3260 = vmul.f32 %v2807, %v3259
        %v3261 = vsub.f32 1.0, %v3260
        %v3262 = vmul.f32 %v3259, %v3261
        %v3263 = vadd.f32 %v3259, %v3262
        %vm3264 = vweird.f32 %v2807
        %vm3265 = vweird.f32 %v3259
        %vm3266 = vmor %vm3264, %vm3265
        %v3267 = vsel %vm3266, %v3259, %v3263
        %v3268 = vand.u32 2147483647, %v2807
        %vm3269 = vcmp.eq.f32.partialorder %v3268, 8.507059e+37
        %v3270 = vand.u32 %v2807, 2147483648
        %v3271 = vor.u32 1.1754944e-38, %v3270
        %v3272 = vsel %vm3269, %v3271, %v3267
        %v3273 = vmul.f32 1.0, %v3272
        %v3274 = vrcp.pop %v2808
        %v3275 = vmul.f32 %v2808, %v3274
        %v3276 = vsub.f32 1.0, %v3275
        %v3277 = vmul.f32 %v3274, %v3276
        %v3278 = vadd.f32 %v3274, %v3277
        %vm3279 = vweird.f32 %v2808
        %vm3280 = vweird.f32 %v3274
        %vm3281 = vmor %vm3279, %vm3280
        %v3282 = vsel %vm3281, %v3274, %v3278
        %v3283 = vand.u32 2147483647, %v2808
        %vm3284 = vcmp.eq.f32.partialorder %v3283, 8.507059e+37
        %v3285 = vand.u32 %v2808, 2147483648
        %v3286 = vor.u32 1.1754944e-38, %v3285
        %v3287 = vsel %vm3284, %v3286, %v3282
        %v3288 = vmul.f32 1.0, %v3287
        %vm3289 = vcmp.lt.f32.partialorder %v2551, %v2823
        %vm3290 = vcmp.lt.f32.partialorder %v2552, %v2838
        %vm3291 = vcmp.lt.f32.partialorder %v2553, %v2853
        %vm3292 = vcmp.lt.f32.partialorder %v2554, %v2868
        %vm3293 = vcmp.lt.f32.partialorder %v2555, %v2883
        %vm3294 = vcmp.lt.f32.partialorder %v2556, %v2898
        %vm3295 = vcmp.lt.f32.partialorder %v2557, %v2913
        %vm3296 = vcmp.lt.f32.partialorder %v2558, %v2928
        %vm3297 = vcmp.lt.f32.partialorder %v2559, %v2943
        %vm3298 = vcmp.lt.f32.partialorder %v2560, %v2958
        %vm3299 = vcmp.lt.f32.partialorder %v2561, %v2973
        %vm3300 = vcmp.lt.f32.partialorder %v2562, %v2988
        %vm3301 = vcmp.lt.f32.partialorder %v2563, %v3003
        %vm3302 = vcmp.lt.f32.partialorder %v2564, %v3018
        %vm3303 = vcmp.lt.f32.partialorder %v2565, %v3033
        %vm3304 = vcmp.lt.f32.partialorder %v2566, %v3048
        %vm3305 = vcmp.lt.f32.partialorder %v2567, %v3063
        %vm3306 = vcmp.lt.f32.partialorder %v2568, %v3078
        %vm3307 = vcmp.lt.f32.partialorder %v2569, %v3093
        %vm3308 = vcmp.lt.f32.partialorder %v2570, %v3108
        %vm3309 = vcmp.lt.f32.partialorder %v2571, %v3123
        %vm3310 = vcmp.lt.f32.partialorder %v2572, %v3138
        %vm3311 = vcmp.lt.f32.partialorder %v2573, %v3153
        %vm3312 = vcmp.lt.f32.partialorder %v2574, %v3168
        %vm3313 = vcmp.lt.f32.partialorder %v2575, %v3183
        %vm3314 = vcmp.lt.f32.partialorder %v2576, %v3198
        %vm3315 = vcmp.lt.f32.partialorder %v2577, %v3213
        %vm3316 = vcmp.lt.f32.partialorder %v2578, %v3228
        %vm3317 = vcmp.lt.f32.partialorder %v2579, %v3243
        %vm3318 = vcmp.lt.f32.partialorder %v2580, %v3258
        %vm3319 = vcmp.lt.f32.partialorder %v2581, %v3273
        %vm3320 = vcmp.lt.f32.partialorder %v2582, %v3288
        %v3321 = vsel %vm3289, 1, 0
        %v3322 = vsel %vm3290, 1, 0
        %v3323 = vsel %vm3291, 1, 0
        %v3324 = vsel %vm3292, 1, 0
        %v3325 = vsel %vm3293, 1, 0
        %v3326 = vsel %vm3294, 1, 0
        %v3327 = vsel %vm3295, 1, 0
        %v3328 = vsel %vm3296, 1, 0
        %v3329 = vsel %vm3297, 1, 0
        %v3330 = vsel %vm3298, 1, 0
        %v3331 = vsel %vm3299, 1, 0
        %v3332 = vsel %vm3300, 1, 0
        %v3333 = vsel %vm3301, 1, 0
        %v3334 = vsel %vm3302, 1, 0
        %v3335 = vsel %vm3303, 1, 0
        %v3336 = vsel %vm3304, 1, 0
        %v3337 = vsel %vm3305, 1, 0
        %v3338 = vsel %vm3306, 1, 0
        %v3339 = vsel %vm3307, 1, 0
        %v3340 = vsel %vm3308, 1, 0
        %v3341 = vsel %vm3309, 1, 0
        %v3342 = vsel %vm3310, 1, 0
        %v3343 = vsel %vm3311, 1, 0
        %v3344 = vsel %vm3312, 1, 0
        %v3345 = vsel %vm3313, 1, 0
        %v3346 = vsel %vm3314, 1, 0
        %v3347 = vsel %vm3315, 1, 0
        %v3348 = vsel %vm3316, 1, 0
        %v3349 = vsel %vm3317, 1, 0
        %v3350 = vsel %vm3318, 1, 0
        %v3351 = vsel %vm3319, 1, 0
        %v3352 = vsel %vm3320, 1, 0
        %v3353 = vcvt.s32.f32 %v3321
        %v3354 = vcvt.s32.f32 %v3322
        %v3355 = vcvt.s32.f32 %v3323
        %v3356 = vcvt.s32.f32 %v3324
        %v3357 = vcvt.s32.f32 %v3325
        %v3358 = vcvt.s32.f32 %v3326
        %v3359 = vcvt.s32.f32 %v3327
        %v3360 = vcvt.s32.f32 %v3328
        %v3361 = vcvt.s32.f32 %v3329
        %v3362 = vcvt.s32.f32 %v3330
        %v3363 = vcvt.s32.f32 %v3331
        %v3364 = vcvt.s32.f32 %v3332
        %v3365 = vcvt.s32.f32 %v3333
        %v3366 = vcvt.s32.f32 %v3334
        %v3367 = vcvt.s32.f32 %v3335
        %v3368 = vcvt.s32.f32 %v3336
        %v3369 = vcvt.s32.f32 %v3337
        %v3370 = vcvt.s32.f32 %v3338
        %v3371 = vcvt.s32.f32 %v3339
        %v3372 = vcvt.s32.f32 %v3340
        %v3373 = vcvt.s32.f32 %v3341
        %v3374 = vcvt.s32.f32 %v3342
        %v3375 = vcvt.s32.f32 %v3343
        %v3376 = vcvt.s32.f32 %v3344
        %v3377 = vcvt.s32.f32 %v3345
        %v3378 = vcvt.s32.f32 %v3346
        %v3379 = vcvt.s32.f32 %v3347
        %v3380 = vcvt.s32.f32 %v3348
        %v3381 = vcvt.s32.f32 %v3349
        %v3382 = vcvt.s32.f32 %v3350
        %v3383 = vcvt.s32.f32 %v3351
        %v3384 = vcvt.s32.f32 %v3352
        %3385 = vst [vmem:[%s464] sm:$0xff] %v3353
        %3386 = vst [vmem:[%s464 + $0x8] sm:$0xff] %v3354
        %3387 = vst [vmem:[%s464 + $0x10] sm:$0xff] %v3355
        %3388 = vst [vmem:[%s464 + $0x18] sm:$0xff] %v3356
        %3389 = vst [vmem:[%s464 + $0x20] sm:$0xff] %v3357
        %3390 = vst [vmem:[%s464 + $0x28] sm:$0xff] %v3358
        %3391 = vst [vmem:[%s464 + $0x30] sm:$0xff] %v3359
        %3392 = vst [vmem:[%s464 + $0x38] sm:$0xff] %v3360
        %3393 = vst [vmem:[%s464 + $0x40] sm:$0xff] %v3361
        %3394 = vst [vmem:[%s464 + $0x48] sm:$0xff] %v3362
        %3395 = vst [vmem:[%s464 + $0x50] sm:$0xff] %v3363
        %3396 = vst [vmem:[%s464 + $0x58] sm:$0xff] %v3364
        %3397 = vst [vmem:[%s464 + $0x60] sm:$0xff] %v3365
        %3398 = vst [vmem:[%s464 + $0x68] sm:$0xff] %v3366
        %3399 = vst [vmem:[%s464 + $0x70] sm:$0xff] %v3367
        %3400 = vst [vmem:[%s464 + $0x78] sm:$0xff] %v3368
        %3401 = vst [vmem:[%s464 + $0x80] sm:$0xff] %v3369
        %3402 = vst [vmem:[%s464 + $0x88] sm:$0xff] %v3370
        %3403 = vst [vmem:[%s464 + $0x90] sm:$0xff] %v3371
        %3404 = vst [vmem:[%s464 + $0x98] sm:$0xff] %v3372
        %3405 = vst [vmem:[%s464 + $0xa0] sm:$0xff] %v3373
        %3406 = vst [vmem:[%s464 + $0xa8] sm:$0xff] %v3374
        %3407 = vst [vmem:[%s464 + $0xb0] sm:$0xff] %v3375
        %3408 = vst [vmem:[%s464 + $0xb8] sm:$0xff] %v3376
        %3409 = vst [vmem:[%s464 + $0xc0] sm:$0xff] %v3377
        %3410 = vst [vmem:[%s464 + $0xc8] sm:$0xff] %v3378
        %3411 = vst [vmem:[%s464 + $0xd0] sm:$0xff] %v3379
        %3412 = vst [vmem:[%s464 + $0xd8] sm:$0xff] %v3380
        %3413 = vst [vmem:[%s464 + $0xe0] sm:$0xff] %v3381
        %3414 = vst [vmem:[%s464 + $0xe8] sm:$0xff] %v3382
        %3415 = vst [vmem:[%s464 + $0xf0] sm:$0xff] %v3383
        %3416 = vst [vmem:[%s464 + $0xf8] sm:$0xff] %v3384
        %s3417 = sand.u32 %s198, 1
        %s3418 = scalar_lea.sflag [#allocation4], %s3417
        %s3419 = sand.u32 %s198, 1
        %s3420 = smul.addr %s3419, 256
        %s3421 = scalar_lea.vmem [#allocation11], %s3420
        // Predicated region
        $region69: #{tpu_custom_call.1} parent=47 // pred_check
          %p3422 = pneg %p208
        $region70: #{tpu_custom_call.1} parent=47 // pred_check_branch
          %3424 = sbr.rel (%p3422) target = $region72
        $region71: #{tpu_custom_call.1} parent=47 // pred_region
          %s3425 = smul.u32 16, %s28
          %3427 = vsyncadd %s3418, 0
          %s3428 = smul.addr %s3425, 2
          %s3429 = smul.addr %s3428, 8
          %s3430 = scalar_lea.hbm %s7, %s3429
          %s3431 = sshll.u32 %s3421, 4
          %s3432 = int_to_ptr.vmem [resolvable:$true] %s3431
          %s3433 = sshll.u32 %s3430, 4
          %s3434 = int_to_ptr.hbm [resolvable:$true] %s3433
          %3439 = dma.vmem_to_hbm [thread:$0]  %s3432, 4096, %s3434, %s3418, 256, 256, 16
        $region72: #{tpu_custom_call.1} parent=47 // pred_fallthru
          _
      $region48: #{tpu_custom_call.1} parent=5 // pred_fallthru
        _
      %p3440 = scmp.le.s32.totalorder 2, %s23
      // Predicated region
      $region73: #{tpu_custom_call.1} parent=5 // pred_check
        %p3441 = pneg %p3440
      $region74: #{tpu_custom_call.1} parent=5 // pred_check_branch
        %3443 = sbr.rel (%p3441) target = $region76
      $region75: #{tpu_custom_call.1} parent=5 // pred_region
        %s3444 = ssub.s32 %s23, 2
        // Predicated region
        $region77: #{tpu_custom_call.1} parent=75 // pred_check
          %p3445 = pneg %p214
        $region78: #{tpu_custom_call.1} parent=75 // pred_check_branch
          %3447 = sbr.rel (%p3445) target = $region80
        $region79: #{tpu_custom_call.1} parent=75 // pred_region
          %s3448 = sand.u32 %s199, 1
          %s3449 = scalar_lea.sflag [#allocation4], %s3448
          %s3450 = sand.u32 %s199, 1
          %s3451 = smul.addr %s3450, 256
          %s3452 = scalar_lea.vmem [#allocation11], %s3451
          %3454 = dma.done %s3449, 4096
        $region80: #{tpu_custom_call.1} parent=75 // pred_fallthru
          _
      $region76: #{tpu_custom_call.1} parent=5 // pred_fallthru
        _
    $region6: #{tpu_custom_call.1} parent=1 // loop_footer
      %s27 = sadd.s32 1, %s23
    $region7: #{tpu_custom_call.1} parent=1 // loop_footer_branch
      %22 = sbr.rel target = $region3
    $region8: #{tpu_custom_call.1} parent=1 // loop_exit
      _
    %3455 = vsyncpa [#allocation3], 1
    %s3456 = scalar_lea.sflag [#allocation3], 1
    %3457 = vsyncpa %s3456, 1
    %3458 = vsyncpa [#allocation6], 1
    %3459 = vsyncpa [#allocation9], 1
    %s3460 = scalar_lea.sflag [#allocation9], 1
    %3461 = vsyncpa %s3460, 1
    %3462 = vsyncpa [#allocation4], 1
    %s3463 = scalar_lea.sflag [#allocation4], 1
    %3464 = vsyncpa %s3463, 1

</llo_original>
